<compile_context>
chip_gen: v5e
topology: v5e:2x2
jax: 0.10.0
libtpu: 0.0.40
codegen_flags: <defaults>
</compile_context>

<pallas_src>
import math

import jax
import jax.numpy as jnp
from jax.experimental import pallas as pl
from jax.experimental.pallas import tpu as pltpu


# ------------------------------ constants ---------------------------------- #
TB = 128          # batch rows per grid step (MXU-friendly M tile)
OUT_PAD = 128     # lane-padded width of every layer / the output slab
D_MAX = 128       # weight rows reserved per layer block in the packed slab
L_STRIDE = 144    # per-layer slab stride: 128 weight rows + 1 bias row, 16-aligned
W_ROWS = 3 * L_STRIDE   # 432 rows total (bf16 sublane pack = 16; 432 = 27*16)


# ----------------------------- Pallas kernel ------------------------------- #
def simclr_fused_kernel(ids_ref, emb_ref, w_ref, o_ref):
    """Fused token-embedding mean-pool + ClassificationHead (one batch tile).

    ids_ref : int32 [TB, S]        token ids for this batch tile
    emb_ref : bf16  [V, D]         embedding table with 1/S pre-folded in
    w_ref   : bf16  [432, 128]     packed weight+bias slab (3 layers, lane-padded)
    o_ref   : f32   [TB, 128]      lane-dense output slab (cols >= out_dim are 0)
    """
    tb, S = ids_ref.shape
    V, D = emb_ref.shape

    # ---- embedding gather + mean-pool as a one-hot-counts matmul (MXU) ----
    # mean_s emb[ids[b, s]] == counts[b, :] @ (emb / S);  1/S is folded into emb.
    ids = ids_ref[...]                                                  # [TB, S]
    iota_v = jax.lax.broadcasted_iota(jnp.int32, (tb, V, S), 1)         # [TB, V, S]
    counts = jnp.sum((ids[:, None, :] == iota_v).astype(jnp.float32),
                     axis=-1)                                           # [TB, V]
    q = jnp.dot(counts.astype(jnp.bfloat16), emb_ref[...],
                preferred_element_type=jnp.float32)                     # [TB, D] f32

    # ---- three Linears from one packed slab (bf16 MXU, f32 accumulation) ----
    def dense(x_f32, base, k_rows):
        wk = w_ref[base:base + k_rows, :]                               # bf16 [K,128]
        b = w_ref[base + D_MAX:base + D_MAX + 1, :].astype(jnp.float32)  # [1,128]
        return jnp.dot(x_f32.astype(jnp.bfloat16), wk,
                       preferred_element_type=jnp.float32) + b

    h1 = jnp.tanh(dense(q, 0, D))                    # [TB,128]; cols >= H1 exactly 0
    h2 = jnp.tanh(dense(h1, L_STRIDE, D_MAX))        # [TB,128]; cols >= H2 exactly 0
    o_ref[...] = dense(h2, 2 * L_STRIDE, D_MAX)      # lane-dense f32 store


# ------------------------------- wrapper ------------------------------------ #
def simclr_classifier_test_forward(batch_token_ids, params, classifier_dim,
                                   *, return_padded=False):
    """q = self.model(batch) (embedding stand-in); out = self.classifier(q)."""
    emb_scaled, w_slab = params
    B, S = batch_token_ids.shape
    V, D = emb_scaled.shape
    assert S <= 256, "counts exact in bf16 only for S <= 256"

    n_blocks = pl.cdiv(B, TB)
    b_pad = n_blocks * TB
    ids = batch_token_ids
    if b_pad != B:
        # pad rows use token 0; their outputs are sliced off / ignored below
        ids = jnp.pad(ids, ((0, b_pad - B), (0, 0)))

    out_padded = pl.pallas_call(
        simclr_fused_kernel,
        out_shape=jax.ShapeDtypeStruct((b_pad, OUT_PAD), jnp.float32),
        grid=(n_blocks,),
        in_specs=[
            pl.BlockSpec((TB, S), lambda i: (i, 0)),          # ids: batch-tiled
            pl.BlockSpec((V, D), lambda i: (0, 0)),           # emb: broadcast
            pl.BlockSpec((W_ROWS, OUT_PAD), lambda i: (0, 0)),  # weights: broadcast
        ],
        out_specs=pl.BlockSpec((TB, OUT_PAD), lambda i: (i, 0)),
        compiler_params=pltpu.CompilerParams(
            dimension_semantics=("parallel",)),               # v7x: split grid across TCs
    )(ids, emb_scaled, w_slab)

    if return_padded:
        return out_padded                       # consumer fuses/skips the slice
    return out_padded[:B, :classifier_dim]


# --------------------------- parameter creation ----------------------------- #
def xavier_uniform(key, fan_out, fan_in):
    # matches nn.init.xavier_uniform_ on a [out, in] weight
    bound = math.sqrt(6.0 / (fan_in + fan_out))
    return jax.random.uniform(key, (fan_out, fan_in), jnp.float32, -bound, bound)


def make_params(key, vocab, in_dim, out_dim, seq_len):
    """Packed bf16 embedding table (1/S folded in) + one [432,128] weight slab."""
    h1, h2 = in_dim // 4, in_dim // 16
    assert in_dim <= D_MAX and h1 <= OUT_PAD and h2 <= OUT_PAD and out_dim <= OUT_PAD
    assert in_dim % 16 == 0, "keep K offsets aligned to the bf16 sublane pack"

    ks = jax.random.split(key, 7)
    # PyTorch Linear computes x @ W.T + b; pre-transpose so the kernel does x @ W.
    w1 = xavier_uniform(ks[0], h1, in_dim).T            # [in_dim, h1]
    w2 = xavier_uniform(ks[1], h2, h1).T                # [h1, h2]
    w3 = xavier_uniform(ks[2], out_dim, h2).T           # [h2, out_dim]
    b1 = 1e-6 * jax.random.normal(ks[3], (h1,), jnp.float32)
    b2 = 1e-6 * jax.random.normal(ks[4], (h2,), jnp.float32)
    b3 = 1e-6 * jax.random.normal(ks[5], (out_dim,), jnp.float32)
    emb = 0.02 * jax.random.normal(ks[6], (vocab, in_dim), jnp.float32)

    # One lane-128-padded slab; each layer block = [128 weight rows | 1 bias row],
    # stride 144 so every static slice offset is a multiple of 16.
    slab = jnp.zeros((W_ROWS, OUT_PAD), jnp.float32)
    slab = slab.at[0:in_dim, 0:h1].set(w1)
    slab = slab.at[D_MAX, 0:h1].set(b1)
    slab = slab.at[L_STRIDE:L_STRIDE + h1, 0:h2].set(w2)
    slab = slab.at[L_STRIDE + D_MAX, 0:h2].set(b2)
    slab = slab.at[2 * L_STRIDE:2 * L_STRIDE + h2, 0:out_dim].set(w3)
    slab = slab.at[2 * L_STRIDE + D_MAX, 0:out_dim].set(b3)

    emb_scaled = (emb / float(seq_len)).astype(jnp.bfloat16)   # fold the mean's 1/S
    return emb_scaled, slab.astype(jnp.bfloat16)


# ------------------------- plain-JAX reference check ------------------------ #
def reference_forward(batch_token_ids, params, classifier_dim):
    """Mirrors the kernel's precision (bf16 operands, f32 accumulation)."""
    emb_scaled, w_slab = params
    w = w_slab.astype(jnp.float32)
    q = jnp.sum(emb_scaled.astype(jnp.float32)[batch_token_ids], axis=1)

    def dense(x, base):
        return (x.astype(jnp.bfloat16).astype(jnp.float32) @ w[base:base + D_MAX]
                + w[base + D_MAX:base + D_MAX + 1])

    h1 = jnp.tanh(dense(q, 0))
    h2 = jnp.tanh(dense(h1, L_STRIDE))
    out = dense(h2, 2 * L_STRIDE)
    return out[:, :classifier_dim]


if __name__ == "__main__":
    # small, module-consistent shapes (batch chosen so the grid has >1 step)
    B, S = 256, 8                    # batch, sequence length
    VOCAB = 32
    PROJECTION_SIZE = 128            # opt.projection_size (in_dim of the head)
    CLASSIFIER_DIM = 4               # opt.classifier_dim  (out_dim of the head)

    key = jax.random.PRNGKey(0)
    k_ids, k_par = jax.random.split(key)
    batch = jax.random.randint(k_ids, (B, S), 0, VOCAB, dtype=jnp.int32)
    params = make_params(k_par, VOCAB, PROJECTION_SIZE, CLASSIFIER_DIM, S)

    out = simclr_classifier_test_forward(batch, params, CLASSIFIER_DIM)
    jax.block_until_ready(out)
    assert out.shape == (B, CLASSIFIER_DIM), out.shape

    ref = reference_forward(batch, params, CLASSIFIER_DIM)
    max_err = float(jnp.max(jnp.abs(out - ref)))
    assert jnp.allclose(out, ref, atol=5e-4, rtol=5e-2), max_err
    print("KERNEL_OK")
</pallas_src>

<mosaic_0001>
module attributes {stable_mosaic.version = 11 : i64} {
  func.func @simclr_fused_kernel(%arg0: i32, %arg1: memref<128x8xi32, #tpu.memory_space<vmem>>, %arg2: memref<32x128xbf16, #tpu.memory_space<vmem>>, %arg3: memref<432x128xbf16, #tpu.memory_space<vmem>>, %arg4: memref<128x128xf32, #tpu.memory_space<vmem>>) attributes {dimension_semantics = [#tpu.dimension_semantics<parallel>], iteration_bounds = array<i64: 2>, scalar_prefetch = 0 : i64, scratch_operands = 0 : i64, tpu.core_type = #tpu.core_type<tc>, window_params = [{transform_indices = @transform_0, window_bounds = array<i64: 128, 8>}, {pipeline_mode = #tpu.pipeline_mode<synchronous>, transform_indices = @transform_1, window_bounds = array<i64: 32, 128>}, {pipeline_mode = #tpu.pipeline_mode<synchronous>, transform_indices = @transform_2, window_bounds = array<i64: 432, 128>}, {transform_indices = @transform_3, window_bounds = array<i64: 128, 128>}]} {
    %c0 = arith.constant 0 : index
    %c0_0 = arith.constant 0 : index
    %0 = vector.load %arg1[%c0, %c0_0] : memref<128x8xi32, #tpu.memory_space<vmem>>, vector<128x8xi32>
    %1 = tpu.iota {dimensions = array<i32: 1>} : vector<128x32x8xi32>
    %2 = vector.shape_cast %0 : vector<128x8xi32> to vector<128x1x8xi32>
    %3 = vector.broadcast %2 : vector<128x1x8xi32> to vector<128x32x8xi32>
    %4 = arith.cmpi eq, %3, %1 : vector<128x32x8xi32>
    %5 = arith.extui %4 : vector<128x32x8xi1> to vector<128x32x8xi32>
    %6 = arith.sitofp %5 : vector<128x32x8xi32> to vector<128x32x8xf32>
    %cst = arith.constant dense<0.000000e+00> : vector<128x32xf32>
    %7 = vector.multi_reduction <add>, %6, %cst [2] : vector<128x32x8xf32> to vector<128x32xf32>
    %8 = arith.truncf %7 : vector<128x32xf32> to vector<128x32xbf16>
    %c0_1 = arith.constant 0 : index
    %c0_2 = arith.constant 0 : index
    %9 = vector.load %arg2[%c0_1, %c0_2] : memref<32x128xbf16, #tpu.memory_space<vmem>>, vector<32x128xbf16>
    %cst_3 = arith.constant dense<0.000000e+00> : vector<128x128xf32>
    %10 = tpu.matmul %8, %9, %cst_3 {dimension_numbers = #tpu.dot_dimension_numbers<[1], [0], [0], [1], [0, 0, 1, 1], [], []>} : vector<128x32xbf16>, vector<32x128xbf16>, vector<128x128xf32> -> vector<128x128xf32>
    %c0_4 = arith.constant 0 : index
    %c0_5 = arith.constant 0 : index
    %11 = vector.load %arg3[%c0_4, %c0_5] : memref<432x128xbf16, #tpu.memory_space<vmem>>, vector<128x128xbf16>
    %c128 = arith.constant 128 : index
    %c0_6 = arith.constant 0 : index
    %12 = vector.load %arg3[%c128, %c0_6] : memref<432x128xbf16, #tpu.memory_space<vmem>>, vector<1x128xbf16>
    %13 = arith.extf %12 : vector<1x128xbf16> to vector<1x128xf32>
    %14 = arith.truncf %10 : vector<128x128xf32> to vector<128x128xbf16>
    %cst_7 = arith.constant dense<0.000000e+00> : vector<128x128xf32>
    %15 = tpu.matmul %14, %11, %cst_7 {dimension_numbers = #tpu.dot_dimension_numbers<[1], [0], [0], [1], [0, 0, 1, 1], [], []>} : vector<128x128xbf16>, vector<128x128xbf16>, vector<128x128xf32> -> vector<128x128xf32>
    %16 = vector.broadcast %13 : vector<1x128xf32> to vector<128x128xf32>
    %17 = arith.addf %15, %16 : vector<128x128xf32>
    %18 = math.tanh %17 : vector<128x128xf32>
    %c144 = arith.constant 144 : index
    %c0_8 = arith.constant 0 : index
    %19 = vector.load %arg3[%c144, %c0_8] : memref<432x128xbf16, #tpu.memory_space<vmem>>, vector<128x128xbf16>
    %c272 = arith.constant 272 : index
    %c0_9 = arith.constant 0 : index
    %20 = vector.load %arg3[%c272, %c0_9] : memref<432x128xbf16, #tpu.memory_space<vmem>>, vector<1x128xbf16>
    %21 = arith.extf %20 : vector<1x128xbf16> to vector<1x128xf32>
    %22 = arith.truncf %18 : vector<128x128xf32> to vector<128x128xbf16>
    %cst_10 = arith.constant dense<0.000000e+00> : vector<128x128xf32>
    %23 = tpu.matmul %22, %19, %cst_10 {dimension_numbers = #tpu.dot_dimension_numbers<[1], [0], [0], [1], [0, 0, 1, 1], [], []>} : vector<128x128xbf16>, vector<128x128xbf16>, vector<128x128xf32> -> vector<128x128xf32>
    %24 = vector.broadcast %21 : vector<1x128xf32> to vector<128x128xf32>
    %25 = arith.addf %23, %24 : vector<128x128xf32>
    %26 = math.tanh %25 : vector<128x128xf32>
    %c288 = arith.constant 288 : index
    %c0_11 = arith.constant 0 : index
    %27 = vector.load %arg3[%c288, %c0_11] : memref<432x128xbf16, #tpu.memory_space<vmem>>, vector<128x128xbf16>
    %c416 = arith.constant 416 : index
    %c0_12 = arith.constant 0 : index
    %28 = vector.load %arg3[%c416, %c0_12] : memref<432x128xbf16, #tpu.memory_space<vmem>>, vector<1x128xbf16>
    %29 = arith.extf %28 : vector<1x128xbf16> to vector<1x128xf32>
    %30 = arith.truncf %26 : vector<128x128xf32> to vector<128x128xbf16>
    %cst_13 = arith.constant dense<0.000000e+00> : vector<128x128xf32>
    %31 = tpu.matmul %30, %27, %cst_13 {dimension_numbers = #tpu.dot_dimension_numbers<[1], [0], [0], [1], [0, 0, 1, 1], [], []>} : vector<128x128xbf16>, vector<128x128xbf16>, vector<128x128xf32> -> vector<128x128xf32>
    %32 = vector.broadcast %29 : vector<1x128xf32> to vector<128x128xf32>
    %33 = arith.addf %31, %32 : vector<128x128xf32>
    %c0_14 = arith.constant 0 : index
    %c0_15 = arith.constant 0 : index
    %34 = vector.load %arg4[%c0_14, %c0_15] : memref<128x128xf32, #tpu.memory_space<vmem>>, vector<128x128xf32>
    tpu.vector_store %arg4[%c0_14, %c0_15], %33 {strides = array<i32>} : memref<128x128xf32, #tpu.memory_space<vmem>>, vector<128x128xf32>,
    return
  }
  func.func @transform_0(%arg0: i32) -> (i32, i32) {
    %c0_i32 = arith.constant 0 : i32
    %c0_i32_0 = arith.constant 0 : i32
    return %arg0, %c0_i32 : i32, i32
  }
  func.func @transform_1(%arg0: i32) -> (i32, i32) {
    %c0_i32 = arith.constant 0 : i32
    %c0_i32_0 = arith.constant 0 : i32
    %c0_i32_1 = arith.constant 0 : i32
    return %c0_i32, %c0_i32_0 : i32, i32
  }
  func.func @transform_2(%arg0: i32) -> (i32, i32) {
    %c0_i32 = arith.constant 0 : i32
    %c0_i32_0 = arith.constant 0 : i32
    %c0_i32_1 = arith.constant 0 : i32
    return %c0_i32, %c0_i32_0 : i32, i32
  }
  func.func @transform_3(%arg0: i32) -> (i32, i32) {
    %c0_i32 = arith.constant 0 : i32
    %c0_i32_0 = arith.constant 0 : i32
    return %arg0, %c0_i32 : i32, i32
  }
}

</mosaic_0001>

<llo_original>
// kernel: tpu_custom_call.1
$region0: #{tpu_custom_call.1}
  #allocation0 [shape = 'u32[]', space=smem, size = 0x4, offset = 0x4, fixed_abs, tag = 'smem constant byte address 0x4 - core index']
  #allocation1 [shape = 'u32[72,128]{1,0:T(1,128)}', space=vmem, size = 0x9000, scoped, tag = 'internal scratch']
  %s0 = inlined_call_operand.vmem [shape: s32[256,8], index: 0, kind: input, shape index: {}]
  %s1 = inlined_call_operand.vmem [shape: bf16[32,128], index: 1, kind: input, shape index: {}]
  %s2 = inlined_call_operand.vmem [shape: bf16[432,128], index: 2, kind: input, shape index: {}]
  %s3 = inlined_call_operand.hbm [shape: f32[256,128], index: 3, kind: output, shape index: {}]
  %s4 = sld [smem:[#allocation0]]
  $region45: #{tpu_custom_call.1} parent=0
    _
  %s6 = ssub.s32 1, %s4
  %s7 = scalar_select 0, %s6, %s4
  $region1: #{tpu_custom_call.1} parent=0
    #allocation2 [shape = 'u8[131072]{0}', space=vmem, size = 0x20000, scoped, tag = 'output window, operand 0']
    #allocation3 [shape = 's32[2]{0}', space=sflag, size = 0x8, scoped, tag = 'scoped memory for tpu_custom_call.1']
    %8 = vsyncpa [#allocation3], 0
    %s9 = scalar_lea.sflag [#allocation3], 1
    %10 = vsyncpa %s9, 0
    loop: start=0, step=1, limit=4
    $region2: #{tpu_custom_call.1} parent=1 // loop_pre_header
      _
    $region3: #{tpu_custom_call.1} parent=1 // loop_header
      %s12 = sphi 0, %s16
      %p13 = scmp.ge.s32.totalorder %s12, 4
      %s22 = sphi 0, %s24
      %s25 = sphi 0, %s22
      %s26 = sphi 0, %s25
      %s42 = sphi 0, %s26
      %s46 = sphi 0, %s46
      %s48 = sphi 0, %s46
      %s49 = sphi 0, %s48
      %s63 = sphi 0, %s49
      %s67 = sphi 0, %s67
      %s69 = sphi 0, %s67
      %s70 = sphi 0, %s69
      %s84 = sphi 0, %s70
      %s90 = sphi 0, %s92
      %s93 = sphi 0, %s90
      %s94 = sphi 0, %s93
      %s110 = sphi 0, %s94
    $region4: #{tpu_custom_call.1} parent=1 // loop_header_branch
      %15 = sbr.rel (%p13) target = $region8
    $region5: #{tpu_custom_call.1} parent=1 // loop_body
      %s17 = ssub.s32 %s12, 1
      %s18 = ssub.s32 %s12, 2
      %s19 = sadd.s32 %s12, 1
      %s20 = ssub.s32 %s12, %s19
      %p21 = scmp.eq.s32.totalorder %s20, 0
      %s23 = sadd.s32 %s22, 1
      %s24 = scalar_select %p21, %s22, %s23
      %p27 = pneg %p21
      %p28 = scmp.eq.s32.totalorder %s12, 1
      %p29 = por %p27, %p28
      %p30 = scmp.ne.s32.totalorder %s22, %s25
      %p31 = scmp.eq.s32.totalorder %s12, 0
      %p32 = por %p30, %p31
      %p33 = scmp.ne.s32.totalorder %s22, %s25
      %p34 = scmp.eq.s32.totalorder %s17, 1
      %p35 = por %p33, %p34
      %p36 = scmp.ne.s32.totalorder %s25, %s26
      %p37 = scmp.eq.s32.totalorder %s17, 0
      %p38 = por %p36, %p37
      %p39 = scmp.ne.s32.totalorder %s25, %s26
      %p40 = scmp.eq.s32.totalorder %s18, 1
      %p41 = por %p39, %p40
      %p43 = scmp.ne.s32.totalorder %s26, %s42
      %p44 = scmp.eq.s32.totalorder %s18, 0
      %p45 = por %p43, %p44
      %s47 = sadd.s32 %s46, 1
      %p50 = scmp.eq.s32.totalorder %s12, 1
      %p51 = scmp.ne.s32.totalorder %s46, %s48
      %p52 = scmp.eq.s32.totalorder %s12, 0
      %p53 = por %p51, %p52
      %p54 = scmp.ne.s32.totalorder %s46, %s48
      %p55 = scmp.eq.s32.totalorder %s17, 1
      %p56 = por %p54, %p55
      %p57 = scmp.ne.s32.totalorder %s48, %s49
      %p58 = scmp.eq.s32.totalorder %s17, 0
      %p59 = por %p57, %p58
      %p60 = scmp.ne.s32.totalorder %s48, %s49
      %p61 = scmp.eq.s32.totalorder %s18, 1
      %p62 = por %p60, %p61
      %p64 = scmp.ne.s32.totalorder %s49, %s63
      %p65 = scmp.eq.s32.totalorder %s18, 0
      %p66 = por %p64, %p65
      %s68 = sadd.s32 %s67, 1
      %p71 = scmp.eq.s32.totalorder %s12, 1
      %p72 = scmp.ne.s32.totalorder %s67, %s69
      %p73 = scmp.eq.s32.totalorder %s12, 0
      %p74 = por %p72, %p73
      %p75 = scmp.ne.s32.totalorder %s67, %s69
      %p76 = scmp.eq.s32.totalorder %s17, 1
      %p77 = por %p75, %p76
      %p78 = scmp.ne.s32.totalorder %s69, %s70
      %p79 = scmp.eq.s32.totalorder %s17, 0
      %p80 = por %p78, %p79
      %p81 = scmp.ne.s32.totalorder %s69, %s70
      %p82 = scmp.eq.s32.totalorder %s18, 1
      %p83 = por %p81, %p82
      %p85 = scmp.ne.s32.totalorder %s70, %s84
      %p86 = scmp.eq.s32.totalorder %s18, 0
      %p87 = por %p85, %p86
      %s88 = ssub.s32 %s12, %s19
      %p89 = scmp.eq.s32.totalorder %s88, 0
      %s91 = sadd.s32 %s90, 1
      %s92 = scalar_select %p89, %s90, %s91
      %p95 = pneg %p89
      %p96 = scmp.eq.s32.totalorder %s12, 1
      %p97 = por %p95, %p96
      %p98 = scmp.ne.s32.totalorder %s90, %s93
      %p99 = scmp.eq.s32.totalorder %s12, 0
      %p100 = por %p98, %p99
      %p101 = scmp.ne.s32.totalorder %s90, %s93
      %p102 = scmp.eq.s32.totalorder %s17, 1
      %p103 = por %p101, %p102
      %p104 = scmp.ne.s32.totalorder %s93, %s94
      %p105 = scmp.eq.s32.totalorder %s17, 0
      %p106 = por %p104, %p105
      %p107 = scmp.ne.s32.totalorder %s93, %s94
      %p108 = scmp.eq.s32.totalorder %s18, 1
      %p109 = por %p107, %p108
      %p111 = scmp.ne.s32.totalorder %s94, %s110
      %p112 = scmp.eq.s32.totalorder %s18, 0
      %p113 = por %p111, %p112
      %p114 = scmp.le.s32.totalorder 1, %s12
      %p115 = scmp.lt.s32.totalorder %s12, 3
      %p116 = pnand %p114, %p115
      %p117 = pneg %p116
      // Predicated region
      $region9: #{tpu_custom_call.1} parent=5 // pred_check
        _
      $region10: #{tpu_custom_call.1} parent=5 // pred_check_branch
        %119 = sbr.rel (%p116) target = $region12
      $region11: #{tpu_custom_call.1} parent=5 // pred_region
        %s120 = ssub.s32 %s12, 1
        // Predicated region
        $region13: #{tpu_custom_call.1} parent=11 // pred_check
          %p121 = pneg %p59
        $region14: #{tpu_custom_call.1} parent=11 // pred_check_branch
          %123 = sbr.rel (%p121) target = $region16
        $region15: #{tpu_custom_call.1} parent=11 // pred_region
          _
        $region16: #{tpu_custom_call.1} parent=11 // pred_fallthru
          _
        // Predicated region
        $region17: #{tpu_custom_call.1} parent=11 // pred_check
          %p124 = pneg %p80
        $region18: #{tpu_custom_call.1} parent=11 // pred_check_branch
          %126 = sbr.rel (%p124) target = $region20
        $region19: #{tpu_custom_call.1} parent=11 // pred_region
          _
        $region20: #{tpu_custom_call.1} parent=11 // pred_fallthru
          _
      $region12: #{tpu_custom_call.1} parent=5 // pred_fallthru
        _
      %p127 = scmp.lt.s32.totalorder %s12, 2
      // Predicated region
      $region21: #{tpu_custom_call.1} parent=5 // pred_check
        %p128 = pneg %p127
      $region22: #{tpu_custom_call.1} parent=5 // pred_check_branch
        %130 = sbr.rel (%p128) target = $region24
      $region23: #{tpu_custom_call.1} parent=5 // pred_region
        // Predicated region
        $region25: #{tpu_custom_call.1} parent=23 // pred_check
          %p131 = pneg %p32
        $region26: #{tpu_custom_call.1} parent=23 // pred_check_branch
          %133 = sbr.rel (%p131) target = $region28
        $region27: #{tpu_custom_call.1} parent=23 // pred_region
          %s134 = smul.u32 16, %s12
          %p135 = scmp.lt.s32.totalorder %s134, 31
          %s136 = scalar_select %p135, %s134, 31
          %s137 = smul.addr %s136, 8
          %s138 = scalar_lea.vmem %s0, %s137
          %s139 = smul.u32 16, %s12
        $region28: #{tpu_custom_call.1} parent=23 // pred_fallthru
          _
      $region24: #{tpu_custom_call.1} parent=5 // pred_fallthru
        _
      %p140 = scmp.le.s32.totalorder 1, %s12
      %p141 = scmp.lt.s32.totalorder %s12, 3
      %p142 = pnand %p140, %p141
      %p143 = pneg %p142
      // Predicated region
      $region29: #{tpu_custom_call.1} parent=5 // pred_check
        _
      $region30: #{tpu_custom_call.1} parent=5 // pred_check_branch
        %145 = sbr.rel (%p142) target = $region32
      $region31: #{tpu_custom_call.1} parent=5 // pred_region
        %s146 = ssub.s32 %s12, 1
        %s147 = smul.u32 16, %s17
        %p148 = scmp.lt.s32.totalorder %s147, 31
        %s149 = scalar_select %p148, %s147, 31
        %s150 = smul.addr %s149, 8
        %s151 = scalar_lea.vmem %s0, %s150
        %p152 = pneg %p38
        %p153 = pneg %p35
        %p154 = pneg %p59
        %p155 = pneg %p56
        %p156 = pneg %p80
        %p157 = pneg %p77
        %p158 = pneg %p106
        %p159 = pneg %p103
        %s160 = sand.u32 %s93, 1
        %s161 = scalar_lea.sflag [#allocation3], %s160
        %s162 = sand.u32 %s93, 1
        %s163 = smul.addr %s162, 128
        %s164 = scalar_lea.vmem [#allocation2], %s163
        %s165 = smul.u32 16, %s17
        %p166 = scmp.lt.s32.totalorder %s165, 31
        %s167 = scalar_select %p166, %s165, 31
        %s168 = smul.addr %s167, 8
        %s169 = scalar_lea.vmem %s0, %s168
        %s170 = smul.u32 16, %s17
        %s171 = smul.u32 16, %s17
        %v173 = vld [vmem:[%s169] sm:$0xff]
        %v174 = vld [vmem:[%s169 + $0x8] sm:$0xff]
        %v175 = vld [vmem:[%s169 + $0x10] sm:$0xff]
        %v176 = vld [vmem:[%s169 + $0x18] sm:$0xff]
        %v177 = vld [vmem:[%s169 + $0x20] sm:$0xff]
        %v178 = vld [vmem:[%s169 + $0x28] sm:$0xff]
        %v179 = vld [vmem:[%s169 + $0x30] sm:$0xff]
        %v180 = vld [vmem:[%s169 + $0x38] sm:$0xff]
        %v181 = vld [vmem:[%s169 + $0x40] sm:$0xff]
        %v182 = vld [vmem:[%s169 + $0x48] sm:$0xff]
        %v183 = vld [vmem:[%s169 + $0x50] sm:$0xff]
        %v184 = vld [vmem:[%s169 + $0x58] sm:$0xff]
        %v185 = vld [vmem:[%s169 + $0x60] sm:$0xff]
        %v186 = vld [vmem:[%s169 + $0x68] sm:$0xff]
        %v187 = vld [vmem:[%s169 + $0x70] sm:$0xff]
        %v188 = vld [vmem:[%s169 + $0x78] sm:$0xff]
        %v189 = vlaneseq
        %v190 = vshrl.u32 %v189, 7
        %v191 = vadd.s32 %v190, 8
        %v192 = vadd.s32 %v190, 16
        %v193 = vadd.s32 %v190, 24
        %v194 = vrot.slane %v173, 1
        %v195 = vrot.slane %v173, 2
        %v196 = vrot.slane %v173, 3
        %v197 = vrot.slane %v173, 4
        %v198 = vrot.slane %v173, 5
        %v199 = vrot.slane %v173, 6
        %v200 = vrot.slane %v173, 7
        %v201 = vrot.slane %v174, 1
        %v202 = vrot.slane %v174, 2
        %v203 = vrot.slane %v174, 3
        %v204 = vrot.slane %v174, 4
        %v205 = vrot.slane %v174, 5
        %v206 = vrot.slane %v174, 6
        %v207 = vrot.slane %v174, 7
        %v208 = vrot.slane %v175, 1
        %v209 = vrot.slane %v175, 2
        %v210 = vrot.slane %v175, 3
        %v211 = vrot.slane %v175, 4
        %v212 = vrot.slane %v175, 5
        %v213 = vrot.slane %v175, 6
        %v214 = vrot.slane %v175, 7
        %v215 = vrot.slane %v176, 1
        %v216 = vrot.slane %v176, 2
        %v217 = vrot.slane %v176, 3
        %v218 = vrot.slane %v176, 4
        %v219 = vrot.slane %v176, 5
        %v220 = vrot.slane %v176, 6
        %v221 = vrot.slane %v176, 7
        %v222 = vrot.slane %v177, 1
        %v223 = vrot.slane %v177, 2
        %v224 = vrot.slane %v177, 3
        %v225 = vrot.slane %v177, 4
        %v226 = vrot.slane %v177, 5
        %v227 = vrot.slane %v177, 6
        %v228 = vrot.slane %v177, 7
        %v229 = vrot.slane %v178, 1
        %v230 = vrot.slane %v178, 2
        %v231 = vrot.slane %v178, 3
        %v232 = vrot.slane %v178, 4
        %v233 = vrot.slane %v178, 5
        %v234 = vrot.slane %v178, 6
        %v235 = vrot.slane %v178, 7
        %v236 = vrot.slane %v179, 1
        %v237 = vrot.slane %v179, 2
        %v238 = vrot.slane %v179, 3
        %v239 = vrot.slane %v179, 4
        %v240 = vrot.slane %v179, 5
        %v241 = vrot.slane %v179, 6
        %v242 = vrot.slane %v179, 7
        %v243 = vrot.slane %v180, 1
        %v244 = vrot.slane %v180, 2
        %v245 = vrot.slane %v180, 3
        %v246 = vrot.slane %v180, 4
        %v247 = vrot.slane %v180, 5
        %v248 = vrot.slane %v180, 6
        %v249 = vrot.slane %v180, 7
        %v250 = vrot.slane %v181, 1
        %v251 = vrot.slane %v181, 2
        %v252 = vrot.slane %v181, 3
        %v253 = vrot.slane %v181, 4
        %v254 = vrot.slane %v181, 5
        %v255 = vrot.slane %v181, 6
        %v256 = vrot.slane %v181, 7
        %v257 = vrot.slane %v182, 1
        %v258 = vrot.slane %v182, 2
        %v259 = vrot.slane %v182, 3
        %v260 = vrot.slane %v182, 4
        %v261 = vrot.slane %v182, 5
        %v262 = vrot.slane %v182, 6
        %v263 = vrot.slane %v182, 7
        %v264 = vrot.slane %v183, 1
        %v265 = vrot.slane %v183, 2
        %v266 = vrot.slane %v183, 3
        %v267 = vrot.slane %v183, 4
        %v268 = vrot.slane %v183, 5
        %v269 = vrot.slane %v183, 6
        %v270 = vrot.slane %v183, 7
        %v271 = vrot.slane %v184, 1
        %v272 = vrot.slane %v184, 2
        %v273 = vrot.slane %v184, 3
        %v274 = vrot.slane %v184, 4
        %v275 = vrot.slane %v184, 5
        %v276 = vrot.slane %v184, 6
        %v277 = vrot.slane %v184, 7
        %v278 = vrot.slane %v185, 1
        %v279 = vrot.slane %v185, 2
        %v280 = vrot.slane %v185, 3
        %v281 = vrot.slane %v185, 4
        %v282 = vrot.slane %v185, 5
        %v283 = vrot.slane %v185, 6
        %v284 = vrot.slane %v185, 7
        %v285 = vrot.slane %v186, 1
        %v286 = vrot.slane %v186, 2
        %v287 = vrot.slane %v186, 3
        %v288 = vrot.slane %v186, 4
        %v289 = vrot.slane %v186, 5
        %v290 = vrot.slane %v186, 6
        %v291 = vrot.slane %v186, 7
        %v292 = vrot.slane %v187, 1
        %v293 = vrot.slane %v187, 2
        %v294 = vrot.slane %v187, 3
        %v295 = vrot.slane %v187, 4
        %v296 = vrot.slane %v187, 5
        %v297 = vrot.slane %v187, 6
        %v298 = vrot.slane %v187, 7
        %v299 = vrot.slane %v188, 1
        %v300 = vrot.slane %v188, 2
        %v301 = vrot.slane %v188, 3
        %v302 = vrot.slane %v188, 4
        %v303 = vrot.slane %v188, 5
        %v304 = vrot.slane %v188, 6
        %v305 = vrot.slane %v188, 7
        %v306 = vperm.slane %v173, 0
        %v307 = vperm.slane %v194, 0
        %v308 = vperm.slane %v195, 0
        %v309 = vperm.slane %v196, 0
        %v310 = vperm.slane %v197, 0
        %v311 = vperm.slane %v198, 0
        %v312 = vperm.slane %v199, 0
        %v313 = vperm.slane %v200, 0
        %v314 = vperm.slane %v174, 0
        %v315 = vperm.slane %v201, 0
        %v316 = vperm.slane %v202, 0
        %v317 = vperm.slane %v203, 0
        %v318 = vperm.slane %v204, 0
        %v319 = vperm.slane %v205, 0
        %v320 = vperm.slane %v206, 0
        %v321 = vperm.slane %v207, 0
        %v322 = vperm.slane %v175, 0
        %v323 = vperm.slane %v208, 0
        %v324 = vperm.slane %v209, 0
        %v325 = vperm.slane %v210, 0
        %v326 = vperm.slane %v211, 0
        %v327 = vperm.slane %v212, 0
        %v328 = vperm.slane %v213, 0
        %v329 = vperm.slane %v214, 0
        %v330 = vperm.slane %v176, 0
        %v331 = vperm.slane %v215, 0
        %v332 = vperm.slane %v216, 0
        %v333 = vperm.slane %v217, 0
        %v334 = vperm.slane %v218, 0
        %v335 = vperm.slane %v219, 0
        %v336 = vperm.slane %v220, 0
        %v337 = vperm.slane %v221, 0
        %v338 = vperm.slane %v177, 0
        %v339 = vperm.slane %v222, 0
        %v340 = vperm.slane %v223, 0
        %v341 = vperm.slane %v224, 0
        %v342 = vperm.slane %v225, 0
        %v343 = vperm.slane %v226, 0
        %v344 = vperm.slane %v227, 0
        %v345 = vperm.slane %v228, 0
        %v346 = vperm.slane %v178, 0
        %v347 = vperm.slane %v229, 0
        %v348 = vperm.slane %v230, 0
        %v349 = vperm.slane %v231, 0
        %v350 = vperm.slane %v232, 0
        %v351 = vperm.slane %v233, 0
        %v352 = vperm.slane %v234, 0
        %v353 = vperm.slane %v235, 0
        %v354 = vperm.slane %v179, 0
        %v355 = vperm.slane %v236, 0
        %v356 = vperm.slane %v237, 0
        %v357 = vperm.slane %v238, 0
        %v358 = vperm.slane %v239, 0
        %v359 = vperm.slane %v240, 0
        %v360 = vperm.slane %v241, 0
        %v361 = vperm.slane %v242, 0
        %v362 = vperm.slane %v180, 0
        %v363 = vperm.slane %v243, 0
        %v364 = vperm.slane %v244, 0
        %v365 = vperm.slane %v245, 0
        %v366 = vperm.slane %v246, 0
        %v367 = vperm.slane %v247, 0
        %v368 = vperm.slane %v248, 0
        %v369 = vperm.slane %v249, 0
        %v370 = vperm.slane %v181, 0
        %v371 = vperm.slane %v250, 0
        %v372 = vperm.slane %v251, 0
        %v373 = vperm.slane %v252, 0
        %v374 = vperm.slane %v253, 0
        %v375 = vperm.slane %v254, 0
        %v376 = vperm.slane %v255, 0
        %v377 = vperm.slane %v256, 0
        %v378 = vperm.slane %v182, 0
        %v379 = vperm.slane %v257, 0
        %v380 = vperm.slane %v258, 0
        %v381 = vperm.slane %v259, 0
        %v382 = vperm.slane %v260, 0
        %v383 = vperm.slane %v261, 0
        %v384 = vperm.slane %v262, 0
        %v385 = vperm.slane %v263, 0
        %v386 = vperm.slane %v183, 0
        %v387 = vperm.slane %v264, 0
        %v388 = vperm.slane %v265, 0
        %v389 = vperm.slane %v266, 0
        %v390 = vperm.slane %v267, 0
        %v391 = vperm.slane %v268, 0
        %v392 = vperm.slane %v269, 0
        %v393 = vperm.slane %v270, 0
        %v394 = vperm.slane %v184, 0
        %v395 = vperm.slane %v271, 0
        %v396 = vperm.slane %v272, 0
        %v397 = vperm.slane %v273, 0
        %v398 = vperm.slane %v274, 0
        %v399 = vperm.slane %v275, 0
        %v400 = vperm.slane %v276, 0
        %v401 = vperm.slane %v277, 0
        %v402 = vperm.slane %v185, 0
        %v403 = vperm.slane %v278, 0
        %v404 = vperm.slane %v279, 0
        %v405 = vperm.slane %v280, 0
        %v406 = vperm.slane %v281, 0
        %v407 = vperm.slane %v282, 0
        %v408 = vperm.slane %v283, 0
        %v409 = vperm.slane %v284, 0
        %v410 = vperm.slane %v186, 0
        %v411 = vperm.slane %v285, 0
        %v412 = vperm.slane %v286, 0
        %v413 = vperm.slane %v287, 0
        %v414 = vperm.slane %v288, 0
        %v415 = vperm.slane %v289, 0
        %v416 = vperm.slane %v290, 0
        %v417 = vperm.slane %v291, 0
        %v418 = vperm.slane %v187, 0
        %v419 = vperm.slane %v292, 0
        %v420 = vperm.slane %v293, 0
        %v421 = vperm.slane %v294, 0
        %v422 = vperm.slane %v295, 0
        %v423 = vperm.slane %v296, 0
        %v424 = vperm.slane %v297, 0
        %v425 = vperm.slane %v298, 0
        %v426 = vperm.slane %v188, 0
        %v427 = vperm.slane %v299, 0
        %v428 = vperm.slane %v300, 0
        %v429 = vperm.slane %v301, 0
        %v430 = vperm.slane %v302, 0
        %v431 = vperm.slane %v303, 0
        %v432 = vperm.slane %v304, 0
        %v433 = vperm.slane %v305, 0
        %vm434 = vcmp.eq.s32.totalorder %v306, %v190
        %vm435 = vcmp.eq.s32.totalorder %v306, %v191
        %vm436 = vcmp.eq.s32.totalorder %v306, %v192
        %vm437 = vcmp.eq.s32.totalorder %v306, %v193
        %vm438 = vcmp.eq.s32.totalorder %v307, %v190
        %vm439 = vcmp.eq.s32.totalorder %v307, %v191
        %vm440 = vcmp.eq.s32.totalorder %v307, %v192
        %vm441 = vcmp.eq.s32.totalorder %v307, %v193
        %vm442 = vcmp.eq.s32.totalorder %v308, %v190
        %vm443 = vcmp.eq.s32.totalorder %v308, %v191
        %vm444 = vcmp.eq.s32.totalorder %v308, %v192
        %vm445 = vcmp.eq.s32.totalorder %v308, %v193
        %vm446 = vcmp.eq.s32.totalorder %v309, %v190
        %vm447 = vcmp.eq.s32.totalorder %v309, %v191
        %vm448 = vcmp.eq.s32.totalorder %v309, %v192
        %vm449 = vcmp.eq.s32.totalorder %v309, %v193
        %vm450 = vcmp.eq.s32.totalorder %v310, %v190
        %vm451 = vcmp.eq.s32.totalorder %v310, %v191
        %vm452 = vcmp.eq.s32.totalorder %v310, %v192
        %vm453 = vcmp.eq.s32.totalorder %v310, %v193
        %vm454 = vcmp.eq.s32.totalorder %v311, %v190
        %vm455 = vcmp.eq.s32.totalorder %v311, %v191
        %vm456 = vcmp.eq.s32.totalorder %v311, %v192
        %vm457 = vcmp.eq.s32.totalorder %v311, %v193
        %vm458 = vcmp.eq.s32.totalorder %v312, %v190
        %vm459 = vcmp.eq.s32.totalorder %v312, %v191
        %vm460 = vcmp.eq.s32.totalorder %v312, %v192
        %vm461 = vcmp.eq.s32.totalorder %v312, %v193
        %vm462 = vcmp.eq.s32.totalorder %v313, %v190
        %vm463 = vcmp.eq.s32.totalorder %v313, %v191
        %vm464 = vcmp.eq.s32.totalorder %v313, %v192
        %vm465 = vcmp.eq.s32.totalorder %v313, %v193
        %vm466 = vcmp.eq.s32.totalorder %v314, %v190
        %vm467 = vcmp.eq.s32.totalorder %v314, %v191
        %vm468 = vcmp.eq.s32.totalorder %v314, %v192
        %vm469 = vcmp.eq.s32.totalorder %v314, %v193
        %vm470 = vcmp.eq.s32.totalorder %v315, %v190
        %vm471 = vcmp.eq.s32.totalorder %v315, %v191
        %vm472 = vcmp.eq.s32.totalorder %v315, %v192
        %vm473 = vcmp.eq.s32.totalorder %v315, %v193
        %vm474 = vcmp.eq.s32.totalorder %v316, %v190
        %vm475 = vcmp.eq.s32.totalorder %v316, %v191
        %vm476 = vcmp.eq.s32.totalorder %v316, %v192
        %vm477 = vcmp.eq.s32.totalorder %v316, %v193
        %vm478 = vcmp.eq.s32.totalorder %v317, %v190
        %vm479 = vcmp.eq.s32.totalorder %v317, %v191
        %vm480 = vcmp.eq.s32.totalorder %v317, %v192
        %vm481 = vcmp.eq.s32.totalorder %v317, %v193
        %vm482 = vcmp.eq.s32.totalorder %v318, %v190
        %vm483 = vcmp.eq.s32.totalorder %v318, %v191
        %vm484 = vcmp.eq.s32.totalorder %v318, %v192
        %vm485 = vcmp.eq.s32.totalorder %v318, %v193
        %vm486 = vcmp.eq.s32.totalorder %v319, %v190
        %vm487 = vcmp.eq.s32.totalorder %v319, %v191
        %vm488 = vcmp.eq.s32.totalorder %v319, %v192
        %vm489 = vcmp.eq.s32.totalorder %v319, %v193
        %vm490 = vcmp.eq.s32.totalorder %v320, %v190
        %vm491 = vcmp.eq.s32.totalorder %v320, %v191
        %vm492 = vcmp.eq.s32.totalorder %v320, %v192
        %vm493 = vcmp.eq.s32.totalorder %v320, %v193
        %vm494 = vcmp.eq.s32.totalorder %v321, %v190
        %vm495 = vcmp.eq.s32.totalorder %v321, %v191
        %vm496 = vcmp.eq.s32.totalorder %v321, %v192
        %vm497 = vcmp.eq.s32.totalorder %v321, %v193
        %vm498 = vcmp.eq.s32.totalorder %v322, %v190
        %vm499 = vcmp.eq.s32.totalorder %v322, %v191
        %vm500 = vcmp.eq.s32.totalorder %v322, %v192
        %vm501 = vcmp.eq.s32.totalorder %v322, %v193
        %vm502 = vcmp.eq.s32.totalorder %v323, %v190
        %vm503 = vcmp.eq.s32.totalorder %v323, %v191
        %vm504 = vcmp.eq.s32.totalorder %v323, %v192
        %vm505 = vcmp.eq.s32.totalorder %v323, %v193
        %vm506 = vcmp.eq.s32.totalorder %v324, %v190
        %vm507 = vcmp.eq.s32.totalorder %v324, %v191
        %vm508 = vcmp.eq.s32.totalorder %v324, %v192
        %vm509 = vcmp.eq.s32.totalorder %v324, %v193
        %vm510 = vcmp.eq.s32.totalorder %v325, %v190
        %vm511 = vcmp.eq.s32.totalorder %v325, %v191
        %vm512 = vcmp.eq.s32.totalorder %v325, %v192
        %vm513 = vcmp.eq.s32.totalorder %v325, %v193
        %vm514 = vcmp.eq.s32.totalorder %v326, %v190
        %vm515 = vcmp.eq.s32.totalorder %v326, %v191
        %vm516 = vcmp.eq.s32.totalorder %v326, %v192
        %vm517 = vcmp.eq.s32.totalorder %v326, %v193
        %vm518 = vcmp.eq.s32.totalorder %v327, %v190
        %vm519 = vcmp.eq.s32.totalorder %v327, %v191
        %vm520 = vcmp.eq.s32.totalorder %v327, %v192
        %vm521 = vcmp.eq.s32.totalorder %v327, %v193
        %vm522 = vcmp.eq.s32.totalorder %v328, %v190
        %vm523 = vcmp.eq.s32.totalorder %v328, %v191
        %vm524 = vcmp.eq.s32.totalorder %v328, %v192
        %vm525 = vcmp.eq.s32.totalorder %v328, %v193
        %vm526 = vcmp.eq.s32.totalorder %v329, %v190
        %vm527 = vcmp.eq.s32.totalorder %v329, %v191
        %vm528 = vcmp.eq.s32.totalorder %v329, %v192
        %vm529 = vcmp.eq.s32.totalorder %v329, %v193
        %vm530 = vcmp.eq.s32.totalorder %v330, %v190
        %vm531 = vcmp.eq.s32.totalorder %v330, %v191
        %vm532 = vcmp.eq.s32.totalorder %v330, %v192
        %vm533 = vcmp.eq.s32.totalorder %v330, %v193
        %vm534 = vcmp.eq.s32.totalorder %v331, %v190
        %vm535 = vcmp.eq.s32.totalorder %v331, %v191
        %vm536 = vcmp.eq.s32.totalorder %v331, %v192
        %vm537 = vcmp.eq.s32.totalorder %v331, %v193
        %vm538 = vcmp.eq.s32.totalorder %v332, %v190
        %vm539 = vcmp.eq.s32.totalorder %v332, %v191
        %vm540 = vcmp.eq.s32.totalorder %v332, %v192
        %vm541 = vcmp.eq.s32.totalorder %v332, %v193
        %vm542 = vcmp.eq.s32.totalorder %v333, %v190
        %vm543 = vcmp.eq.s32.totalorder %v333, %v191
        %vm544 = vcmp.eq.s32.totalorder %v333, %v192
        %vm545 = vcmp.eq.s32.totalorder %v333, %v193
        %vm546 = vcmp.eq.s32.totalorder %v334, %v190
        %vm547 = vcmp.eq.s32.totalorder %v334, %v191
        %vm548 = vcmp.eq.s32.totalorder %v334, %v192
        %vm549 = vcmp.eq.s32.totalorder %v334, %v193
        %vm550 = vcmp.eq.s32.totalorder %v335, %v190
        %vm551 = vcmp.eq.s32.totalorder %v335, %v191
        %vm552 = vcmp.eq.s32.totalorder %v335, %v192
        %vm553 = vcmp.eq.s32.totalorder %v335, %v193
        %vm554 = vcmp.eq.s32.totalorder %v336, %v190
        %vm555 = vcmp.eq.s32.totalorder %v336, %v191
        %vm556 = vcmp.eq.s32.totalorder %v336, %v192
        %vm557 = vcmp.eq.s32.totalorder %v336, %v193
        %vm558 = vcmp.eq.s32.totalorder %v337, %v190
        %vm559 = vcmp.eq.s32.totalorder %v337, %v191
        %vm560 = vcmp.eq.s32.totalorder %v337, %v192
        %vm561 = vcmp.eq.s32.totalorder %v337, %v193
        %vm562 = vcmp.eq.s32.totalorder %v338, %v190
        %vm563 = vcmp.eq.s32.totalorder %v338, %v191
        %vm564 = vcmp.eq.s32.totalorder %v338, %v192
        %vm565 = vcmp.eq.s32.totalorder %v338, %v193
        %vm566 = vcmp.eq.s32.totalorder %v339, %v190
        %vm567 = vcmp.eq.s32.totalorder %v339, %v191
        %vm568 = vcmp.eq.s32.totalorder %v339, %v192
        %vm569 = vcmp.eq.s32.totalorder %v339, %v193
        %vm570 = vcmp.eq.s32.totalorder %v340, %v190
        %vm571 = vcmp.eq.s32.totalorder %v340, %v191
        %vm572 = vcmp.eq.s32.totalorder %v340, %v192
        %vm573 = vcmp.eq.s32.totalorder %v340, %v193
        %vm574 = vcmp.eq.s32.totalorder %v341, %v190
        %vm575 = vcmp.eq.s32.totalorder %v341, %v191
        %vm576 = vcmp.eq.s32.totalorder %v341, %v192
        %vm577 = vcmp.eq.s32.totalorder %v341, %v193
        %vm578 = vcmp.eq.s32.totalorder %v342, %v190
        %vm579 = vcmp.eq.s32.totalorder %v342, %v191
        %vm580 = vcmp.eq.s32.totalorder %v342, %v192
        %vm581 = vcmp.eq.s32.totalorder %v342, %v193
        %vm582 = vcmp.eq.s32.totalorder %v343, %v190
        %vm583 = vcmp.eq.s32.totalorder %v343, %v191
        %vm584 = vcmp.eq.s32.totalorder %v343, %v192
        %vm585 = vcmp.eq.s32.totalorder %v343, %v193
        %vm586 = vcmp.eq.s32.totalorder %v344, %v190
        %vm587 = vcmp.eq.s32.totalorder %v344, %v191
        %vm588 = vcmp.eq.s32.totalorder %v344, %v192
        %vm589 = vcmp.eq.s32.totalorder %v344, %v193
        %vm590 = vcmp.eq.s32.totalorder %v345, %v190
        %vm591 = vcmp.eq.s32.totalorder %v345, %v191
        %vm592 = vcmp.eq.s32.totalorder %v345, %v192
        %vm593 = vcmp.eq.s32.totalorder %v345, %v193
        %vm594 = vcmp.eq.s32.totalorder %v346, %v190
        %vm595 = vcmp.eq.s32.totalorder %v346, %v191
        %vm596 = vcmp.eq.s32.totalorder %v346, %v192
        %vm597 = vcmp.eq.s32.totalorder %v346, %v193
        %vm598 = vcmp.eq.s32.totalorder %v347, %v190
        %vm599 = vcmp.eq.s32.totalorder %v347, %v191
        %vm600 = vcmp.eq.s32.totalorder %v347, %v192
        %vm601 = vcmp.eq.s32.totalorder %v347, %v193
        %vm602 = vcmp.eq.s32.totalorder %v348, %v190
        %vm603 = vcmp.eq.s32.totalorder %v348, %v191
        %vm604 = vcmp.eq.s32.totalorder %v348, %v192
        %vm605 = vcmp.eq.s32.totalorder %v348, %v193
        %vm606 = vcmp.eq.s32.totalorder %v349, %v190
        %vm607 = vcmp.eq.s32.totalorder %v349, %v191
        %vm608 = vcmp.eq.s32.totalorder %v349, %v192
        %vm609 = vcmp.eq.s32.totalorder %v349, %v193
        %vm610 = vcmp.eq.s32.totalorder %v350, %v190
        %vm611 = vcmp.eq.s32.totalorder %v350, %v191
        %vm612 = vcmp.eq.s32.totalorder %v350, %v192
        %vm613 = vcmp.eq.s32.totalorder %v350, %v193
        %vm614 = vcmp.eq.s32.totalorder %v351, %v190
        %vm615 = vcmp.eq.s32.totalorder %v351, %v191
        %vm616 = vcmp.eq.s32.totalorder %v351, %v192
        %vm617 = vcmp.eq.s32.totalorder %v351, %v193
        %vm618 = vcmp.eq.s32.totalorder %v352, %v190
        %vm619 = vcmp.eq.s32.totalorder %v352, %v191
        %vm620 = vcmp.eq.s32.totalorder %v352, %v192
        %vm621 = vcmp.eq.s32.totalorder %v352, %v193
        %vm622 = vcmp.eq.s32.totalorder %v353, %v190
        %vm623 = vcmp.eq.s32.totalorder %v353, %v191
        %vm624 = vcmp.eq.s32.totalorder %v353, %v192
        %vm625 = vcmp.eq.s32.totalorder %v353, %v193
        %vm626 = vcmp.eq.s32.totalorder %v354, %v190
        %vm627 = vcmp.eq.s32.totalorder %v354, %v191
        %vm628 = vcmp.eq.s32.totalorder %v354, %v192
        %vm629 = vcmp.eq.s32.totalorder %v354, %v193
        %vm630 = vcmp.eq.s32.totalorder %v355, %v190
        %vm631 = vcmp.eq.s32.totalorder %v355, %v191
        %vm632 = vcmp.eq.s32.totalorder %v355, %v192
        %vm633 = vcmp.eq.s32.totalorder %v355, %v193
        %vm634 = vcmp.eq.s32.totalorder %v356, %v190
        %vm635 = vcmp.eq.s32.totalorder %v356, %v191
        %vm636 = vcmp.eq.s32.totalorder %v356, %v192
        %vm637 = vcmp.eq.s32.totalorder %v356, %v193
        %vm638 = vcmp.eq.s32.totalorder %v357, %v190
        %vm639 = vcmp.eq.s32.totalorder %v357, %v191
        %vm640 = vcmp.eq.s32.totalorder %v357, %v192
        %vm641 = vcmp.eq.s32.totalorder %v357, %v193
        %vm642 = vcmp.eq.s32.totalorder %v358, %v190
        %vm643 = vcmp.eq.s32.totalorder %v358, %v191
        %vm644 = vcmp.eq.s32.totalorder %v358, %v192
        %vm645 = vcmp.eq.s32.totalorder %v358, %v193
        %vm646 = vcmp.eq.s32.totalorder %v359, %v190
        %vm647 = vcmp.eq.s32.totalorder %v359, %v191
        %vm648 = vcmp.eq.s32.totalorder %v359, %v192
        %vm649 = vcmp.eq.s32.totalorder %v359, %v193
        %vm650 = vcmp.eq.s32.totalorder %v360, %v190
        %vm651 = vcmp.eq.s32.totalorder %v360, %v191
        %vm652 = vcmp.eq.s32.totalorder %v360, %v192
        %vm653 = vcmp.eq.s32.totalorder %v360, %v193
        %vm654 = vcmp.eq.s32.totalorder %v361, %v190
        %vm655 = vcmp.eq.s32.totalorder %v361, %v191
        %vm656 = vcmp.eq.s32.totalorder %v361, %v192
        %vm657 = vcmp.eq.s32.totalorder %v361, %v193
        %vm658 = vcmp.eq.s32.totalorder %v362, %v190
        %vm659 = vcmp.eq.s32.totalorder %v362, %v191
        %vm660 = vcmp.eq.s32.totalorder %v362, %v192
        %vm661 = vcmp.eq.s32.totalorder %v362, %v193
        %vm662 = vcmp.eq.s32.totalorder %v363, %v190
        %vm663 = vcmp.eq.s32.totalorder %v363, %v191
        %vm664 = vcmp.eq.s32.totalorder %v363, %v192
        %vm665 = vcmp.eq.s32.totalorder %v363, %v193
        %vm666 = vcmp.eq.s32.totalorder %v364, %v190
        %vm667 = vcmp.eq.s32.totalorder %v364, %v191
        %vm668 = vcmp.eq.s32.totalorder %v364, %v192
        %vm669 = vcmp.eq.s32.totalorder %v364, %v193
        %vm670 = vcmp.eq.s32.totalorder %v365, %v190
        %vm671 = vcmp.eq.s32.totalorder %v365, %v191
        %vm672 = vcmp.eq.s32.totalorder %v365, %v192
        %vm673 = vcmp.eq.s32.totalorder %v365, %v193
        %vm674 = vcmp.eq.s32.totalorder %v366, %v190
        %vm675 = vcmp.eq.s32.totalorder %v366, %v191
        %vm676 = vcmp.eq.s32.totalorder %v366, %v192
        %vm677 = vcmp.eq.s32.totalorder %v366, %v193
        %vm678 = vcmp.eq.s32.totalorder %v367, %v190
        %vm679 = vcmp.eq.s32.totalorder %v367, %v191
        %vm680 = vcmp.eq.s32.totalorder %v367, %v192
        %vm681 = vcmp.eq.s32.totalorder %v367, %v193
        %vm682 = vcmp.eq.s32.totalorder %v368, %v190
        %vm683 = vcmp.eq.s32.totalorder %v368, %v191
        %vm684 = vcmp.eq.s32.totalorder %v368, %v192
        %vm685 = vcmp.eq.s32.totalorder %v368, %v193
        %vm686 = vcmp.eq.s32.totalorder %v369, %v190
        %vm687 = vcmp.eq.s32.totalorder %v369, %v191
        %vm688 = vcmp.eq.s32.totalorder %v369, %v192
        %vm689 = vcmp.eq.s32.totalorder %v369, %v193
        %vm690 = vcmp.eq.s32.totalorder %v370, %v190
        %vm691 = vcmp.eq.s32.totalorder %v370, %v191
        %vm692 = vcmp.eq.s32.totalorder %v370, %v192
        %vm693 = vcmp.eq.s32.totalorder %v370, %v193
        %vm694 = vcmp.eq.s32.totalorder %v371, %v190
        %vm695 = vcmp.eq.s32.totalorder %v371, %v191
        %vm696 = vcmp.eq.s32.totalorder %v371, %v192
        %vm697 = vcmp.eq.s32.totalorder %v371, %v193
        %vm698 = vcmp.eq.s32.totalorder %v372, %v190
        %vm699 = vcmp.eq.s32.totalorder %v372, %v191
        %vm700 = vcmp.eq.s32.totalorder %v372, %v192
        %vm701 = vcmp.eq.s32.totalorder %v372, %v193
        %vm702 = vcmp.eq.s32.totalorder %v373, %v190
        %vm703 = vcmp.eq.s32.totalorder %v373, %v191
        %vm704 = vcmp.eq.s32.totalorder %v373, %v192
        %vm705 = vcmp.eq.s32.totalorder %v373, %v193
        %vm706 = vcmp.eq.s32.totalorder %v374, %v190
        %vm707 = vcmp.eq.s32.totalorder %v374, %v191
        %vm708 = vcmp.eq.s32.totalorder %v374, %v192
        %vm709 = vcmp.eq.s32.totalorder %v374, %v193
        %vm710 = vcmp.eq.s32.totalorder %v375, %v190
        %vm711 = vcmp.eq.s32.totalorder %v375, %v191
        %vm712 = vcmp.eq.s32.totalorder %v375, %v192
        %vm713 = vcmp.eq.s32.totalorder %v375, %v193
        %vm714 = vcmp.eq.s32.totalorder %v376, %v190
        %vm715 = vcmp.eq.s32.totalorder %v376, %v191
        %vm716 = vcmp.eq.s32.totalorder %v376, %v192
        %vm717 = vcmp.eq.s32.totalorder %v376, %v193
        %vm718 = vcmp.eq.s32.totalorder %v377, %v190
        %vm719 = vcmp.eq.s32.totalorder %v377, %v191
        %vm720 = vcmp.eq.s32.totalorder %v377, %v192
        %vm721 = vcmp.eq.s32.totalorder %v377, %v193
        %vm722 = vcmp.eq.s32.totalorder %v378, %v190
        %vm723 = vcmp.eq.s32.totalorder %v378, %v191
        %vm724 = vcmp.eq.s32.totalorder %v378, %v192
        %vm725 = vcmp.eq.s32.totalorder %v378, %v193
        %vm726 = vcmp.eq.s32.totalorder %v379, %v190
        %vm727 = vcmp.eq.s32.totalorder %v379, %v191
        %vm728 = vcmp.eq.s32.totalorder %v379, %v192
        %vm729 = vcmp.eq.s32.totalorder %v379, %v193
        %vm730 = vcmp.eq.s32.totalorder %v380, %v190
        %vm731 = vcmp.eq.s32.totalorder %v380, %v191
        %vm732 = vcmp.eq.s32.totalorder %v380, %v192
        %vm733 = vcmp.eq.s32.totalorder %v380, %v193
        %vm734 = vcmp.eq.s32.totalorder %v381, %v190
        %vm735 = vcmp.eq.s32.totalorder %v381, %v191
        %vm736 = vcmp.eq.s32.totalorder %v381, %v192
        %vm737 = vcmp.eq.s32.totalorder %v381, %v193
        %vm738 = vcmp.eq.s32.totalorder %v382, %v190
        %vm739 = vcmp.eq.s32.totalorder %v382, %v191
        %vm740 = vcmp.eq.s32.totalorder %v382, %v192
        %vm741 = vcmp.eq.s32.totalorder %v382, %v193
        %vm742 = vcmp.eq.s32.totalorder %v383, %v190
        %vm743 = vcmp.eq.s32.totalorder %v383, %v191
        %vm744 = vcmp.eq.s32.totalorder %v383, %v192
        %vm745 = vcmp.eq.s32.totalorder %v383, %v193
        %vm746 = vcmp.eq.s32.totalorder %v384, %v190
        %vm747 = vcmp.eq.s32.totalorder %v384, %v191
        %vm748 = vcmp.eq.s32.totalorder %v384, %v192
        %vm749 = vcmp.eq.s32.totalorder %v384, %v193
        %vm750 = vcmp.eq.s32.totalorder %v385, %v190
        %vm751 = vcmp.eq.s32.totalorder %v385, %v191
        %vm752 = vcmp.eq.s32.totalorder %v385, %v192
        %vm753 = vcmp.eq.s32.totalorder %v385, %v193
        %vm754 = vcmp.eq.s32.totalorder %v386, %v190
        %vm755 = vcmp.eq.s32.totalorder %v386, %v191
        %vm756 = vcmp.eq.s32.totalorder %v386, %v192
        %vm757 = vcmp.eq.s32.totalorder %v386, %v193
        %vm758 = vcmp.eq.s32.totalorder %v387, %v190
        %vm759 = vcmp.eq.s32.totalorder %v387, %v191
        %vm760 = vcmp.eq.s32.totalorder %v387, %v192
        %vm761 = vcmp.eq.s32.totalorder %v387, %v193
        %vm762 = vcmp.eq.s32.totalorder %v388, %v190
        %vm763 = vcmp.eq.s32.totalorder %v388, %v191
        %vm764 = vcmp.eq.s32.totalorder %v388, %v192
        %vm765 = vcmp.eq.s32.totalorder %v388, %v193
        %vm766 = vcmp.eq.s32.totalorder %v389, %v190
        %vm767 = vcmp.eq.s32.totalorder %v389, %v191
        %vm768 = vcmp.eq.s32.totalorder %v389, %v192
        %vm769 = vcmp.eq.s32.totalorder %v389, %v193
        %vm770 = vcmp.eq.s32.totalorder %v390, %v190
        %vm771 = vcmp.eq.s32.totalorder %v390, %v191
        %vm772 = vcmp.eq.s32.totalorder %v390, %v192
        %vm773 = vcmp.eq.s32.totalorder %v390, %v193
        %vm774 = vcmp.eq.s32.totalorder %v391, %v190
        %vm775 = vcmp.eq.s32.totalorder %v391, %v191
        %vm776 = vcmp.eq.s32.totalorder %v391, %v192
        %vm777 = vcmp.eq.s32.totalorder %v391, %v193
        %vm778 = vcmp.eq.s32.totalorder %v392, %v190
        %vm779 = vcmp.eq.s32.totalorder %v392, %v191
        %vm780 = vcmp.eq.s32.totalorder %v392, %v192
        %vm781 = vcmp.eq.s32.totalorder %v392, %v193
        %vm782 = vcmp.eq.s32.totalorder %v393, %v190
        %vm783 = vcmp.eq.s32.totalorder %v393, %v191
        %vm784 = vcmp.eq.s32.totalorder %v393, %v192
        %vm785 = vcmp.eq.s32.totalorder %v393, %v193
        %vm786 = vcmp.eq.s32.totalorder %v394, %v190
        %vm787 = vcmp.eq.s32.totalorder %v394, %v191
        %vm788 = vcmp.eq.s32.totalorder %v394, %v192
        %vm789 = vcmp.eq.s32.totalorder %v394, %v193
        %vm790 = vcmp.eq.s32.totalorder %v395, %v190
        %vm791 = vcmp.eq.s32.totalorder %v395, %v191
        %vm792 = vcmp.eq.s32.totalorder %v395, %v192
        %vm793 = vcmp.eq.s32.totalorder %v395, %v193
        %vm794 = vcmp.eq.s32.totalorder %v396, %v190
        %vm795 = vcmp.eq.s32.totalorder %v396, %v191
        %vm796 = vcmp.eq.s32.totalorder %v396, %v192
        %vm797 = vcmp.eq.s32.totalorder %v396, %v193
        %vm798 = vcmp.eq.s32.totalorder %v397, %v190
        %vm799 = vcmp.eq.s32.totalorder %v397, %v191
        %vm800 = vcmp.eq.s32.totalorder %v397, %v192
        %vm801 = vcmp.eq.s32.totalorder %v397, %v193
        %vm802 = vcmp.eq.s32.totalorder %v398, %v190
        %vm803 = vcmp.eq.s32.totalorder %v398, %v191
        %vm804 = vcmp.eq.s32.totalorder %v398, %v192
        %vm805 = vcmp.eq.s32.totalorder %v398, %v193
        %vm806 = vcmp.eq.s32.totalorder %v399, %v190
        %vm807 = vcmp.eq.s32.totalorder %v399, %v191
        %vm808 = vcmp.eq.s32.totalorder %v399, %v192
        %vm809 = vcmp.eq.s32.totalorder %v399, %v193
        %vm810 = vcmp.eq.s32.totalorder %v400, %v190
        %vm811 = vcmp.eq.s32.totalorder %v400, %v191
        %vm812 = vcmp.eq.s32.totalorder %v400, %v192
        %vm813 = vcmp.eq.s32.totalorder %v400, %v193
        %vm814 = vcmp.eq.s32.totalorder %v401, %v190
        %vm815 = vcmp.eq.s32.totalorder %v401, %v191
        %vm816 = vcmp.eq.s32.totalorder %v401, %v192
        %vm817 = vcmp.eq.s32.totalorder %v401, %v193
        %vm818 = vcmp.eq.s32.totalorder %v402, %v190
        %vm819 = vcmp.eq.s32.totalorder %v402, %v191
        %vm820 = vcmp.eq.s32.totalorder %v402, %v192
        %vm821 = vcmp.eq.s32.totalorder %v402, %v193
        %vm822 = vcmp.eq.s32.totalorder %v403, %v190
        %vm823 = vcmp.eq.s32.totalorder %v403, %v191
        %vm824 = vcmp.eq.s32.totalorder %v403, %v192
        %vm825 = vcmp.eq.s32.totalorder %v403, %v193
        %vm826 = vcmp.eq.s32.totalorder %v404, %v190
        %vm827 = vcmp.eq.s32.totalorder %v404, %v191
        %vm828 = vcmp.eq.s32.totalorder %v404, %v192
        %vm829 = vcmp.eq.s32.totalorder %v404, %v193
        %vm830 = vcmp.eq.s32.totalorder %v405, %v190
        %vm831 = vcmp.eq.s32.totalorder %v405, %v191
        %vm832 = vcmp.eq.s32.totalorder %v405, %v192
        %vm833 = vcmp.eq.s32.totalorder %v405, %v193
        %vm834 = vcmp.eq.s32.totalorder %v406, %v190
        %vm835 = vcmp.eq.s32.totalorder %v406, %v191
        %vm836 = vcmp.eq.s32.totalorder %v406, %v192
        %vm837 = vcmp.eq.s32.totalorder %v406, %v193
        %vm838 = vcmp.eq.s32.totalorder %v407, %v190
        %vm839 = vcmp.eq.s32.totalorder %v407, %v191
        %vm840 = vcmp.eq.s32.totalorder %v407, %v192
        %vm841 = vcmp.eq.s32.totalorder %v407, %v193
        %vm842 = vcmp.eq.s32.totalorder %v408, %v190
        %vm843 = vcmp.eq.s32.totalorder %v408, %v191
        %vm844 = vcmp.eq.s32.totalorder %v408, %v192
        %vm845 = vcmp.eq.s32.totalorder %v408, %v193
        %vm846 = vcmp.eq.s32.totalorder %v409, %v190
        %vm847 = vcmp.eq.s32.totalorder %v409, %v191
        %vm848 = vcmp.eq.s32.totalorder %v409, %v192
        %vm849 = vcmp.eq.s32.totalorder %v409, %v193
        %vm850 = vcmp.eq.s32.totalorder %v410, %v190
        %vm851 = vcmp.eq.s32.totalorder %v410, %v191
        %vm852 = vcmp.eq.s32.totalorder %v410, %v192
        %vm853 = vcmp.eq.s32.totalorder %v410, %v193
        %vm854 = vcmp.eq.s32.totalorder %v411, %v190
        %vm855 = vcmp.eq.s32.totalorder %v411, %v191
        %vm856 = vcmp.eq.s32.totalorder %v411, %v192
        %vm857 = vcmp.eq.s32.totalorder %v411, %v193
        %vm858 = vcmp.eq.s32.totalorder %v412, %v190
        %vm859 = vcmp.eq.s32.totalorder %v412, %v191
        %vm860 = vcmp.eq.s32.totalorder %v412, %v192
        %vm861 = vcmp.eq.s32.totalorder %v412, %v193
        %vm862 = vcmp.eq.s32.totalorder %v413, %v190
        %vm863 = vcmp.eq.s32.totalorder %v413, %v191
        %vm864 = vcmp.eq.s32.totalorder %v413, %v192
        %vm865 = vcmp.eq.s32.totalorder %v413, %v193
        %vm866 = vcmp.eq.s32.totalorder %v414, %v190
        %vm867 = vcmp.eq.s32.totalorder %v414, %v191
        %vm868 = vcmp.eq.s32.totalorder %v414, %v192
        %vm869 = vcmp.eq.s32.totalorder %v414, %v193
        %vm870 = vcmp.eq.s32.totalorder %v415, %v190
        %vm871 = vcmp.eq.s32.totalorder %v415, %v191
        %vm872 = vcmp.eq.s32.totalorder %v415, %v192
        %vm873 = vcmp.eq.s32.totalorder %v415, %v193
        %vm874 = vcmp.eq.s32.totalorder %v416, %v190
        %vm875 = vcmp.eq.s32.totalorder %v416, %v191
        %vm876 = vcmp.eq.s32.totalorder %v416, %v192
        %vm877 = vcmp.eq.s32.totalorder %v416, %v193
        %vm878 = vcmp.eq.s32.totalorder %v417, %v190
        %vm879 = vcmp.eq.s32.totalorder %v417, %v191
        %vm880 = vcmp.eq.s32.totalorder %v417, %v192
        %vm881 = vcmp.eq.s32.totalorder %v417, %v193
        %vm882 = vcmp.eq.s32.totalorder %v418, %v190
        %vm883 = vcmp.eq.s32.totalorder %v418, %v191
        %vm884 = vcmp.eq.s32.totalorder %v418, %v192
        %vm885 = vcmp.eq.s32.totalorder %v418, %v193
        %vm886 = vcmp.eq.s32.totalorder %v419, %v190
        %vm887 = vcmp.eq.s32.totalorder %v419, %v191
        %vm888 = vcmp.eq.s32.totalorder %v419, %v192
        %vm889 = vcmp.eq.s32.totalorder %v419, %v193
        %vm890 = vcmp.eq.s32.totalorder %v420, %v190
        %vm891 = vcmp.eq.s32.totalorder %v420, %v191
        %vm892 = vcmp.eq.s32.totalorder %v420, %v192
        %vm893 = vcmp.eq.s32.totalorder %v420, %v193
        %vm894 = vcmp.eq.s32.totalorder %v421, %v190
        %vm895 = vcmp.eq.s32.totalorder %v421, %v191
        %vm896 = vcmp.eq.s32.totalorder %v421, %v192
        %vm897 = vcmp.eq.s32.totalorder %v421, %v193
        %vm898 = vcmp.eq.s32.totalorder %v422, %v190
        %vm899 = vcmp.eq.s32.totalorder %v422, %v191
        %vm900 = vcmp.eq.s32.totalorder %v422, %v192
        %vm901 = vcmp.eq.s32.totalorder %v422, %v193
        %vm902 = vcmp.eq.s32.totalorder %v423, %v190
        %vm903 = vcmp.eq.s32.totalorder %v423, %v191
        %vm904 = vcmp.eq.s32.totalorder %v423, %v192
        %vm905 = vcmp.eq.s32.totalorder %v423, %v193
        %vm906 = vcmp.eq.s32.totalorder %v424, %v190
        %vm907 = vcmp.eq.s32.totalorder %v424, %v191
        %vm908 = vcmp.eq.s32.totalorder %v424, %v192
        %vm909 = vcmp.eq.s32.totalorder %v424, %v193
        %vm910 = vcmp.eq.s32.totalorder %v425, %v190
        %vm911 = vcmp.eq.s32.totalorder %v425, %v191
        %vm912 = vcmp.eq.s32.totalorder %v425, %v192
        %vm913 = vcmp.eq.s32.totalorder %v425, %v193
        %vm914 = vcmp.eq.s32.totalorder %v426, %v190
        %vm915 = vcmp.eq.s32.totalorder %v426, %v191
        %vm916 = vcmp.eq.s32.totalorder %v426, %v192
        %vm917 = vcmp.eq.s32.totalorder %v426, %v193
        %vm918 = vcmp.eq.s32.totalorder %v427, %v190
        %vm919 = vcmp.eq.s32.totalorder %v427, %v191
        %vm920 = vcmp.eq.s32.totalorder %v427, %v192
        %vm921 = vcmp.eq.s32.totalorder %v427, %v193
        %vm922 = vcmp.eq.s32.totalorder %v428, %v190
        %vm923 = vcmp.eq.s32.totalorder %v428, %v191
        %vm924 = vcmp.eq.s32.totalorder %v428, %v192
        %vm925 = vcmp.eq.s32.totalorder %v428, %v193
        %vm926 = vcmp.eq.s32.totalorder %v429, %v190
        %vm927 = vcmp.eq.s32.totalorder %v429, %v191
        %vm928 = vcmp.eq.s32.totalorder %v429, %v192
        %vm929 = vcmp.eq.s32.totalorder %v429, %v193
        %vm930 = vcmp.eq.s32.totalorder %v430, %v190
        %vm931 = vcmp.eq.s32.totalorder %v430, %v191
        %vm932 = vcmp.eq.s32.totalorder %v430, %v192
        %vm933 = vcmp.eq.s32.totalorder %v430, %v193
        %vm934 = vcmp.eq.s32.totalorder %v431, %v190
        %vm935 = vcmp.eq.s32.totalorder %v431, %v191
        %vm936 = vcmp.eq.s32.totalorder %v431, %v192
        %vm937 = vcmp.eq.s32.totalorder %v431, %v193
        %vm938 = vcmp.eq.s32.totalorder %v432, %v190
        %vm939 = vcmp.eq.s32.totalorder %v432, %v191
        %vm940 = vcmp.eq.s32.totalorder %v432, %v192
        %vm941 = vcmp.eq.s32.totalorder %v432, %v193
        %vm942 = vcmp.eq.s32.totalorder %v433, %v190
        %vm943 = vcmp.eq.s32.totalorder %v433, %v191
        %vm944 = vcmp.eq.s32.totalorder %v433, %v192
        %vm945 = vcmp.eq.s32.totalorder %v433, %v193
        %v946 = vsel %vm434, 1, 0
        %v947 = vsel %vm435, 1, 0
        %v948 = vsel %vm436, 1, 0
        %v949 = vsel %vm437, 1, 0
        %v950 = vsel %vm438, 1, 0
        %v951 = vsel %vm439, 1, 0
        %v952 = vsel %vm440, 1, 0
        %v953 = vsel %vm441, 1, 0
        %v954 = vsel %vm442, 1, 0
        %v955 = vsel %vm443, 1, 0
        %v956 = vsel %vm444, 1, 0
        %v957 = vsel %vm445, 1, 0
        %v958 = vsel %vm446, 1, 0
        %v959 = vsel %vm447, 1, 0
        %v960 = vsel %vm448, 1, 0
        %v961 = vsel %vm449, 1, 0
        %v962 = vsel %vm450, 1, 0
        %v963 = vsel %vm451, 1, 0
        %v964 = vsel %vm452, 1, 0
        %v965 = vsel %vm453, 1, 0
        %v966 = vsel %vm454, 1, 0
        %v967 = vsel %vm455, 1, 0
        %v968 = vsel %vm456, 1, 0
        %v969 = vsel %vm457, 1, 0
        %v970 = vsel %vm458, 1, 0
        %v971 = vsel %vm459, 1, 0
        %v972 = vsel %vm460, 1, 0
        %v973 = vsel %vm461, 1, 0
        %v974 = vsel %vm462, 1, 0
        %v975 = vsel %vm463, 1, 0
        %v976 = vsel %vm464, 1, 0
        %v977 = vsel %vm465, 1, 0
        %v978 = vsel %vm466, 1, 0
        %v979 = vsel %vm467, 1, 0
        %v980 = vsel %vm468, 1, 0
        %v981 = vsel %vm469, 1, 0
        %v982 = vsel %vm470, 1, 0
        %v983 = vsel %vm471, 1, 0
        %v984 = vsel %vm472, 1, 0
        %v985 = vsel %vm473, 1, 0
        %v986 = vsel %vm474, 1, 0
        %v987 = vsel %vm475, 1, 0
        %v988 = vsel %vm476, 1, 0
        %v989 = vsel %vm477, 1, 0
        %v990 = vsel %vm478, 1, 0
        %v991 = vsel %vm479, 1, 0
        %v992 = vsel %vm480, 1, 0
        %v993 = vsel %vm481, 1, 0
        %v994 = vsel %vm482, 1, 0
        %v995 = vsel %vm483, 1, 0
        %v996 = vsel %vm484, 1, 0
        %v997 = vsel %vm485, 1, 0
        %v998 = vsel %vm486, 1, 0
        %v999 = vsel %vm487, 1, 0
        %v1000 = vsel %vm488, 1, 0
        %v1001 = vsel %vm489, 1, 0
        %v1002 = vsel %vm490, 1, 0
        %v1003 = vsel %vm491, 1, 0
        %v1004 = vsel %vm492, 1, 0
        %v1005 = vsel %vm493, 1, 0
        %v1006 = vsel %vm494, 1, 0
        %v1007 = vsel %vm495, 1, 0
        %v1008 = vsel %vm496, 1, 0
        %v1009 = vsel %vm497, 1, 0
        %v1010 = vsel %vm498, 1, 0
        %v1011 = vsel %vm499, 1, 0
        %v1012 = vsel %vm500, 1, 0
        %v1013 = vsel %vm501, 1, 0
        %v1014 = vsel %vm502, 1, 0
        %v1015 = vsel %vm503, 1, 0
        %v1016 = vsel %vm504, 1, 0
        %v1017 = vsel %vm505, 1, 0
        %v1018 = vsel %vm506, 1, 0
        %v1019 = vsel %vm507, 1, 0
        %v1020 = vsel %vm508, 1, 0
        %v1021 = vsel %vm509, 1, 0
        %v1022 = vsel %vm510, 1, 0
        %v1023 = vsel %vm511, 1, 0
        %v1024 = vsel %vm512, 1, 0
        %v1025 = vsel %vm513, 1, 0
        %v1026 = vsel %vm514, 1, 0
        %v1027 = vsel %vm515, 1, 0
        %v1028 = vsel %vm516, 1, 0
        %v1029 = vsel %vm517, 1, 0
        %v1030 = vsel %vm518, 1, 0
        %v1031 = vsel %vm519, 1, 0
        %v1032 = vsel %vm520, 1, 0
        %v1033 = vsel %vm521, 1, 0
        %v1034 = vsel %vm522, 1, 0
        %v1035 = vsel %vm523, 1, 0
        %v1036 = vsel %vm524, 1, 0
        %v1037 = vsel %vm525, 1, 0
        %v1038 = vsel %vm526, 1, 0
        %v1039 = vsel %vm527, 1, 0
        %v1040 = vsel %vm528, 1, 0
        %v1041 = vsel %vm529, 1, 0
        %v1042 = vsel %vm530, 1, 0
        %v1043 = vsel %vm531, 1, 0
        %v1044 = vsel %vm532, 1, 0
        %v1045 = vsel %vm533, 1, 0
        %v1046 = vsel %vm534, 1, 0
        %v1047 = vsel %vm535, 1, 0
        %v1048 = vsel %vm536, 1, 0
        %v1049 = vsel %vm537, 1, 0
        %v1050 = vsel %vm538, 1, 0
        %v1051 = vsel %vm539, 1, 0
        %v1052 = vsel %vm540, 1, 0
        %v1053 = vsel %vm541, 1, 0
        %v1054 = vsel %vm542, 1, 0
        %v1055 = vsel %vm543, 1, 0
        %v1056 = vsel %vm544, 1, 0
        %v1057 = vsel %vm545, 1, 0
        %v1058 = vsel %vm546, 1, 0
        %v1059 = vsel %vm547, 1, 0
        %v1060 = vsel %vm548, 1, 0
        %v1061 = vsel %vm549, 1, 0
        %v1062 = vsel %vm550, 1, 0
        %v1063 = vsel %vm551, 1, 0
        %v1064 = vsel %vm552, 1, 0
        %v1065 = vsel %vm553, 1, 0
        %v1066 = vsel %vm554, 1, 0
        %v1067 = vsel %vm555, 1, 0
        %v1068 = vsel %vm556, 1, 0
        %v1069 = vsel %vm557, 1, 0
        %v1070 = vsel %vm558, 1, 0
        %v1071 = vsel %vm559, 1, 0
        %v1072 = vsel %vm560, 1, 0
        %v1073 = vsel %vm561, 1, 0
        %v1074 = vsel %vm562, 1, 0
        %v1075 = vsel %vm563, 1, 0
        %v1076 = vsel %vm564, 1, 0
        %v1077 = vsel %vm565, 1, 0
        %v1078 = vsel %vm566, 1, 0
        %v1079 = vsel %vm567, 1, 0
        %v1080 = vsel %vm568, 1, 0
        %v1081 = vsel %vm569, 1, 0
        %v1082 = vsel %vm570, 1, 0
        %v1083 = vsel %vm571, 1, 0
        %v1084 = vsel %vm572, 1, 0
        %v1085 = vsel %vm573, 1, 0
        %v1086 = vsel %vm574, 1, 0
        %v1087 = vsel %vm575, 1, 0
        %v1088 = vsel %vm576, 1, 0
        %v1089 = vsel %vm577, 1, 0
        %v1090 = vsel %vm578, 1, 0
        %v1091 = vsel %vm579, 1, 0
        %v1092 = vsel %vm580, 1, 0
        %v1093 = vsel %vm581, 1, 0
        %v1094 = vsel %vm582, 1, 0
        %v1095 = vsel %vm583, 1, 0
        %v1096 = vsel %vm584, 1, 0
        %v1097 = vsel %vm585, 1, 0
        %v1098 = vsel %vm586, 1, 0
        %v1099 = vsel %vm587, 1, 0
        %v1100 = vsel %vm588, 1, 0
        %v1101 = vsel %vm589, 1, 0
        %v1102 = vsel %vm590, 1, 0
        %v1103 = vsel %vm591, 1, 0
        %v1104 = vsel %vm592, 1, 0
        %v1105 = vsel %vm593, 1, 0
        %v1106 = vsel %vm594, 1, 0
        %v1107 = vsel %vm595, 1, 0
        %v1108 = vsel %vm596, 1, 0
        %v1109 = vsel %vm597, 1, 0
        %v1110 = vsel %vm598, 1, 0
        %v1111 = vsel %vm599, 1, 0
        %v1112 = vsel %vm600, 1, 0
        %v1113 = vsel %vm601, 1, 0
        %v1114 = vsel %vm602, 1, 0
        %v1115 = vsel %vm603, 1, 0
        %v1116 = vsel %vm604, 1, 0
        %v1117 = vsel %vm605, 1, 0
        %v1118 = vsel %vm606, 1, 0
        %v1119 = vsel %vm607, 1, 0
        %v1120 = vsel %vm608, 1, 0
        %v1121 = vsel %vm609, 1, 0
        %v1122 = vsel %vm610, 1, 0
        %v1123 = vsel %vm611, 1, 0
        %v1124 = vsel %vm612, 1, 0
        %v1125 = vsel %vm613, 1, 0
        %v1126 = vsel %vm614, 1, 0
        %v1127 = vsel %vm615, 1, 0
        %v1128 = vsel %vm616, 1, 0
        %v1129 = vsel %vm617, 1, 0
        %v1130 = vsel %vm618, 1, 0
        %v1131 = vsel %vm619, 1, 0
        %v1132 = vsel %vm620, 1, 0
        %v1133 = vsel %vm621, 1, 0
        %v1134 = vsel %vm622, 1, 0
        %v1135 = vsel %vm623, 1, 0
        %v1136 = vsel %vm624, 1, 0
        %v1137 = vsel %vm625, 1, 0
        %v1138 = vsel %vm626, 1, 0
        %v1139 = vsel %vm627, 1, 0
        %v1140 = vsel %vm628, 1, 0
        %v1141 = vsel %vm629, 1, 0
        %v1142 = vsel %vm630, 1, 0
        %v1143 = vsel %vm631, 1, 0
        %v1144 = vsel %vm632, 1, 0
        %v1145 = vsel %vm633, 1, 0
        %v1146 = vsel %vm634, 1, 0
        %v1147 = vsel %vm635, 1, 0
        %v1148 = vsel %vm636, 1, 0
        %v1149 = vsel %vm637, 1, 0
        %v1150 = vsel %vm638, 1, 0
        %v1151 = vsel %vm639, 1, 0
        %v1152 = vsel %vm640, 1, 0
        %v1153 = vsel %vm641, 1, 0
        %v1154 = vsel %vm642, 1, 0
        %v1155 = vsel %vm643, 1, 0
        %v1156 = vsel %vm644, 1, 0
        %v1157 = vsel %vm645, 1, 0
        %v1158 = vsel %vm646, 1, 0
        %v1159 = vsel %vm647, 1, 0
        %v1160 = vsel %vm648, 1, 0
        %v1161 = vsel %vm649, 1, 0
        %v1162 = vsel %vm650, 1, 0
        %v1163 = vsel %vm651, 1, 0
        %v1164 = vsel %vm652, 1, 0
        %v1165 = vsel %vm653, 1, 0
        %v1166 = vsel %vm654, 1, 0
        %v1167 = vsel %vm655, 1, 0
        %v1168 = vsel %vm656, 1, 0
        %v1169 = vsel %vm657, 1, 0
        %v1170 = vsel %vm658, 1, 0
        %v1171 = vsel %vm659, 1, 0
        %v1172 = vsel %vm660, 1, 0
        %v1173 = vsel %vm661, 1, 0
        %v1174 = vsel %vm662, 1, 0
        %v1175 = vsel %vm663, 1, 0
        %v1176 = vsel %vm664, 1, 0
        %v1177 = vsel %vm665, 1, 0
        %v1178 = vsel %vm666, 1, 0
        %v1179 = vsel %vm667, 1, 0
        %v1180 = vsel %vm668, 1, 0
        %v1181 = vsel %vm669, 1, 0
        %v1182 = vsel %vm670, 1, 0
        %v1183 = vsel %vm671, 1, 0
        %v1184 = vsel %vm672, 1, 0
        %v1185 = vsel %vm673, 1, 0
        %v1186 = vsel %vm674, 1, 0
        %v1187 = vsel %vm675, 1, 0
        %v1188 = vsel %vm676, 1, 0
        %v1189 = vsel %vm677, 1, 0
        %v1190 = vsel %vm678, 1, 0
        %v1191 = vsel %vm679, 1, 0
        %v1192 = vsel %vm680, 1, 0
        %v1193 = vsel %vm681, 1, 0
        %v1194 = vsel %vm682, 1, 0
        %v1195 = vsel %vm683, 1, 0
        %v1196 = vsel %vm684, 1, 0
        %v1197 = vsel %vm685, 1, 0
        %v1198 = vsel %vm686, 1, 0
        %v1199 = vsel %vm687, 1, 0
        %v1200 = vsel %vm688, 1, 0
        %v1201 = vsel %vm689, 1, 0
        %v1202 = vsel %vm690, 1, 0
        %v1203 = vsel %vm691, 1, 0
        %v1204 = vsel %vm692, 1, 0
        %v1205 = vsel %vm693, 1, 0
        %v1206 = vsel %vm694, 1, 0
        %v1207 = vsel %vm695, 1, 0
        %v1208 = vsel %vm696, 1, 0
        %v1209 = vsel %vm697, 1, 0
        %v1210 = vsel %vm698, 1, 0
        %v1211 = vsel %vm699, 1, 0
        %v1212 = vsel %vm700, 1, 0
        %v1213 = vsel %vm701, 1, 0
        %v1214 = vsel %vm702, 1, 0
        %v1215 = vsel %vm703, 1, 0
        %v1216 = vsel %vm704, 1, 0
        %v1217 = vsel %vm705, 1, 0
        %v1218 = vsel %vm706, 1, 0
        %v1219 = vsel %vm707, 1, 0
        %v1220 = vsel %vm708, 1, 0
        %v1221 = vsel %vm709, 1, 0
        %v1222 = vsel %vm710, 1, 0
        %v1223 = vsel %vm711, 1, 0
        %v1224 = vsel %vm712, 1, 0
        %v1225 = vsel %vm713, 1, 0
        %v1226 = vsel %vm714, 1, 0
        %v1227 = vsel %vm715, 1, 0
        %v1228 = vsel %vm716, 1, 0
        %v1229 = vsel %vm717, 1, 0
        %v1230 = vsel %vm718, 1, 0
        %v1231 = vsel %vm719, 1, 0
        %v1232 = vsel %vm720, 1, 0
        %v1233 = vsel %vm721, 1, 0
        %v1234 = vsel %vm722, 1, 0
        %v1235 = vsel %vm723, 1, 0
        %v1236 = vsel %vm724, 1, 0
        %v1237 = vsel %vm725, 1, 0
        %v1238 = vsel %vm726, 1, 0
        %v1239 = vsel %vm727, 1, 0
        %v1240 = vsel %vm728, 1, 0
        %v1241 = vsel %vm729, 1, 0
        %v1242 = vsel %vm730, 1, 0
        %v1243 = vsel %vm731, 1, 0
        %v1244 = vsel %vm732, 1, 0
        %v1245 = vsel %vm733, 1, 0
        %v1246 = vsel %vm734, 1, 0
        %v1247 = vsel %vm735, 1, 0
        %v1248 = vsel %vm736, 1, 0
        %v1249 = vsel %vm737, 1, 0
        %v1250 = vsel %vm738, 1, 0
        %v1251 = vsel %vm739, 1, 0
        %v1252 = vsel %vm740, 1, 0
        %v1253 = vsel %vm741, 1, 0
        %v1254 = vsel %vm742, 1, 0
        %v1255 = vsel %vm743, 1, 0
        %v1256 = vsel %vm744, 1, 0
        %v1257 = vsel %vm745, 1, 0
        %v1258 = vsel %vm746, 1, 0
        %v1259 = vsel %vm747, 1, 0
        %v1260 = vsel %vm748, 1, 0
        %v1261 = vsel %vm749, 1, 0
        %v1262 = vsel %vm750, 1, 0
        %v1263 = vsel %vm751, 1, 0
        %v1264 = vsel %vm752, 1, 0
        %v1265 = vsel %vm753, 1, 0
        %v1266 = vsel %vm754, 1, 0
        %v1267 = vsel %vm755, 1, 0
        %v1268 = vsel %vm756, 1, 0
        %v1269 = vsel %vm757, 1, 0
        %v1270 = vsel %vm758, 1, 0
        %v1271 = vsel %vm759, 1, 0
        %v1272 = vsel %vm760, 1, 0
        %v1273 = vsel %vm761, 1, 0
        %v1274 = vsel %vm762, 1, 0
        %v1275 = vsel %vm763, 1, 0
        %v1276 = vsel %vm764, 1, 0
        %v1277 = vsel %vm765, 1, 0
        %v1278 = vsel %vm766, 1, 0
        %v1279 = vsel %vm767, 1, 0
        %v1280 = vsel %vm768, 1, 0
        %v1281 = vsel %vm769, 1, 0
        %v1282 = vsel %vm770, 1, 0
        %v1283 = vsel %vm771, 1, 0
        %v1284 = vsel %vm772, 1, 0
        %v1285 = vsel %vm773, 1, 0
        %v1286 = vsel %vm774, 1, 0
        %v1287 = vsel %vm775, 1, 0
        %v1288 = vsel %vm776, 1, 0
        %v1289 = vsel %vm777, 1, 0
        %v1290 = vsel %vm778, 1, 0
        %v1291 = vsel %vm779, 1, 0
        %v1292 = vsel %vm780, 1, 0
        %v1293 = vsel %vm781, 1, 0
        %v1294 = vsel %vm782, 1, 0
        %v1295 = vsel %vm783, 1, 0
        %v1296 = vsel %vm784, 1, 0
        %v1297 = vsel %vm785, 1, 0
        %v1298 = vsel %vm786, 1, 0
        %v1299 = vsel %vm787, 1, 0
        %v1300 = vsel %vm788, 1, 0
        %v1301 = vsel %vm789, 1, 0
        %v1302 = vsel %vm790, 1, 0
        %v1303 = vsel %vm791, 1, 0
        %v1304 = vsel %vm792, 1, 0
        %v1305 = vsel %vm793, 1, 0
        %v1306 = vsel %vm794, 1, 0
        %v1307 = vsel %vm795, 1, 0
        %v1308 = vsel %vm796, 1, 0
        %v1309 = vsel %vm797, 1, 0
        %v1310 = vsel %vm798, 1, 0
        %v1311 = vsel %vm799, 1, 0
        %v1312 = vsel %vm800, 1, 0
        %v1313 = vsel %vm801, 1, 0
        %v1314 = vsel %vm802, 1, 0
        %v1315 = vsel %vm803, 1, 0
        %v1316 = vsel %vm804, 1, 0
        %v1317 = vsel %vm805, 1, 0
        %v1318 = vsel %vm806, 1, 0
        %v1319 = vsel %vm807, 1, 0
        %v1320 = vsel %vm808, 1, 0
        %v1321 = vsel %vm809, 1, 0
        %v1322 = vsel %vm810, 1, 0
        %v1323 = vsel %vm811, 1, 0
        %v1324 = vsel %vm812, 1, 0
        %v1325 = vsel %vm813, 1, 0
        %v1326 = vsel %vm814, 1, 0
        %v1327 = vsel %vm815, 1, 0
        %v1328 = vsel %vm816, 1, 0
        %v1329 = vsel %vm817, 1, 0
        %v1330 = vsel %vm818, 1, 0
        %v1331 = vsel %vm819, 1, 0
        %v1332 = vsel %vm820, 1, 0
        %v1333 = vsel %vm821, 1, 0
        %v1334 = vsel %vm822, 1, 0
        %v1335 = vsel %vm823, 1, 0
        %v1336 = vsel %vm824, 1, 0
        %v1337 = vsel %vm825, 1, 0
        %v1338 = vsel %vm826, 1, 0
        %v1339 = vsel %vm827, 1, 0
        %v1340 = vsel %vm828, 1, 0
        %v1341 = vsel %vm829, 1, 0
        %v1342 = vsel %vm830, 1, 0
        %v1343 = vsel %vm831, 1, 0
        %v1344 = vsel %vm832, 1, 0
        %v1345 = vsel %vm833, 1, 0
        %v1346 = vsel %vm834, 1, 0
        %v1347 = vsel %vm835, 1, 0
        %v1348 = vsel %vm836, 1, 0
        %v1349 = vsel %vm837, 1, 0
        %v1350 = vsel %vm838, 1, 0
        %v1351 = vsel %vm839, 1, 0
        %v1352 = vsel %vm840, 1, 0
        %v1353 = vsel %vm841, 1, 0
        %v1354 = vsel %vm842, 1, 0
        %v1355 = vsel %vm843, 1, 0
        %v1356 = vsel %vm844, 1, 0
        %v1357 = vsel %vm845, 1, 0
        %v1358 = vsel %vm846, 1, 0
        %v1359 = vsel %vm847, 1, 0
        %v1360 = vsel %vm848, 1, 0
        %v1361 = vsel %vm849, 1, 0
        %v1362 = vsel %vm850, 1, 0
        %v1363 = vsel %vm851, 1, 0
        %v1364 = vsel %vm852, 1, 0
        %v1365 = vsel %vm853, 1, 0
        %v1366 = vsel %vm854, 1, 0
        %v1367 = vsel %vm855, 1, 0
        %v1368 = vsel %vm856, 1, 0
        %v1369 = vsel %vm857, 1, 0
        %v1370 = vsel %vm858, 1, 0
        %v1371 = vsel %vm859, 1, 0
        %v1372 = vsel %vm860, 1, 0
        %v1373 = vsel %vm861, 1, 0
        %v1374 = vsel %vm862, 1, 0
        %v1375 = vsel %vm863, 1, 0
        %v1376 = vsel %vm864, 1, 0
        %v1377 = vsel %vm865, 1, 0
        %v1378 = vsel %vm866, 1, 0
        %v1379 = vsel %vm867, 1, 0
        %v1380 = vsel %vm868, 1, 0
        %v1381 = vsel %vm869, 1, 0
        %v1382 = vsel %vm870, 1, 0
        %v1383 = vsel %vm871, 1, 0
        %v1384 = vsel %vm872, 1, 0
        %v1385 = vsel %vm873, 1, 0
        %v1386 = vsel %vm874, 1, 0
        %v1387 = vsel %vm875, 1, 0
        %v1388 = vsel %vm876, 1, 0
        %v1389 = vsel %vm877, 1, 0
        %v1390 = vsel %vm878, 1, 0
        %v1391 = vsel %vm879, 1, 0
        %v1392 = vsel %vm880, 1, 0
        %v1393 = vsel %vm881, 1, 0
        %v1394 = vsel %vm882, 1, 0
        %v1395 = vsel %vm883, 1, 0
        %v1396 = vsel %vm884, 1, 0
        %v1397 = vsel %vm885, 1, 0
        %v1398 = vsel %vm886, 1, 0
        %v1399 = vsel %vm887, 1, 0
        %v1400 = vsel %vm888, 1, 0
        %v1401 = vsel %vm889, 1, 0
        %v1402 = vsel %vm890, 1, 0
        %v1403 = vsel %vm891, 1, 0
        %v1404 = vsel %vm892, 1, 0
        %v1405 = vsel %vm893, 1, 0
        %v1406 = vsel %vm894, 1, 0
        %v1407 = vsel %vm895, 1, 0
        %v1408 = vsel %vm896, 1, 0
        %v1409 = vsel %vm897, 1, 0
        %v1410 = vsel %vm898, 1, 0
        %v1411 = vsel %vm899, 1, 0
        %v1412 = vsel %vm900, 1, 0
        %v1413 = vsel %vm901, 1, 0
        %v1414 = vsel %vm902, 1, 0
        %v1415 = vsel %vm903, 1, 0
        %v1416 = vsel %vm904, 1, 0
        %v1417 = vsel %vm905, 1, 0
        %v1418 = vsel %vm906, 1, 0
        %v1419 = vsel %vm907, 1, 0
        %v1420 = vsel %vm908, 1, 0
        %v1421 = vsel %vm909, 1, 0
        %v1422 = vsel %vm910, 1, 0
        %v1423 = vsel %vm911, 1, 0
        %v1424 = vsel %vm912, 1, 0
        %v1425 = vsel %vm913, 1, 0
        %v1426 = vsel %vm914, 1, 0
        %v1427 = vsel %vm915, 1, 0
        %v1428 = vsel %vm916, 1, 0
        %v1429 = vsel %vm917, 1, 0
        %v1430 = vsel %vm918, 1, 0
        %v1431 = vsel %vm919, 1, 0
        %v1432 = vsel %vm920, 1, 0
        %v1433 = vsel %vm921, 1, 0
        %v1434 = vsel %vm922, 1, 0
        %v1435 = vsel %vm923, 1, 0
        %v1436 = vsel %vm924, 1, 0
        %v1437 = vsel %vm925, 1, 0
        %v1438 = vsel %vm926, 1, 0
        %v1439 = vsel %vm927, 1, 0
        %v1440 = vsel %vm928, 1, 0
        %v1441 = vsel %vm929, 1, 0
        %v1442 = vsel %vm930, 1, 0
        %v1443 = vsel %vm931, 1, 0
        %v1444 = vsel %vm932, 1, 0
        %v1445 = vsel %vm933, 1, 0
        %v1446 = vsel %vm934, 1, 0
        %v1447 = vsel %vm935, 1, 0
        %v1448 = vsel %vm936, 1, 0
        %v1449 = vsel %vm937, 1, 0
        %v1450 = vsel %vm938, 1, 0
        %v1451 = vsel %vm939, 1, 0
        %v1452 = vsel %vm940, 1, 0
        %v1453 = vsel %vm941, 1, 0
        %v1454 = vsel %vm942, 1, 0
        %v1455 = vsel %vm943, 1, 0
        %v1456 = vsel %vm944, 1, 0
        %v1457 = vsel %vm945, 1, 0
        %v1458 = vcvt.s32.f32 %v946
        %v1459 = vcvt.s32.f32 %v947
        %v1460 = vcvt.s32.f32 %v948
        %v1461 = vcvt.s32.f32 %v949
        %v1462 = vcvt.s32.f32 %v950
        %v1463 = vcvt.s32.f32 %v951
        %v1464 = vcvt.s32.f32 %v952
        %v1465 = vcvt.s32.f32 %v953
        %v1466 = vcvt.s32.f32 %v954
        %v1467 = vcvt.s32.f32 %v955
        %v1468 = vcvt.s32.f32 %v956
        %v1469 = vcvt.s32.f32 %v957
        %v1470 = vcvt.s32.f32 %v958
        %v1471 = vcvt.s32.f32 %v959
        %v1472 = vcvt.s32.f32 %v960
        %v1473 = vcvt.s32.f32 %v961
        %v1474 = vcvt.s32.f32 %v962
        %v1475 = vcvt.s32.f32 %v963
        %v1476 = vcvt.s32.f32 %v964
        %v1477 = vcvt.s32.f32 %v965
        %v1478 = vcvt.s32.f32 %v966
        %v1479 = vcvt.s32.f32 %v967
        %v1480 = vcvt.s32.f32 %v968
        %v1481 = vcvt.s32.f32 %v969
        %v1482 = vcvt.s32.f32 %v970
        %v1483 = vcvt.s32.f32 %v971
        %v1484 = vcvt.s32.f32 %v972
        %v1485 = vcvt.s32.f32 %v973
        %v1486 = vcvt.s32.f32 %v974
        %v1487 = vcvt.s32.f32 %v975
        %v1488 = vcvt.s32.f32 %v976
        %v1489 = vcvt.s32.f32 %v977
        %v1490 = vcvt.s32.f32 %v978
        %v1491 = vcvt.s32.f32 %v979
        %v1492 = vcvt.s32.f32 %v980
        %v1493 = vcvt.s32.f32 %v981
        %v1494 = vcvt.s32.f32 %v982
        %v1495 = vcvt.s32.f32 %v983
        %v1496 = vcvt.s32.f32 %v984
        %v1497 = vcvt.s32.f32 %v985
        %v1498 = vcvt.s32.f32 %v986
        %v1499 = vcvt.s32.f32 %v987
        %v1500 = vcvt.s32.f32 %v988
        %v1501 = vcvt.s32.f32 %v989
        %v1502 = vcvt.s32.f32 %v990
        %v1503 = vcvt.s32.f32 %v991
        %v1504 = vcvt.s32.f32 %v992
        %v1505 = vcvt.s32.f32 %v993
        %v1506 = vcvt.s32.f32 %v994
        %v1507 = vcvt.s32.f32 %v995
        %v1508 = vcvt.s32.f32 %v996
        %v1509 = vcvt.s32.f32 %v997
        %v1510 = vcvt.s32.f32 %v998
        %v1511 = vcvt.s32.f32 %v999
        %v1512 = vcvt.s32.f32 %v1000
        %v1513 = vcvt.s32.f32 %v1001
        %v1514 = vcvt.s32.f32 %v1002
        %v1515 = vcvt.s32.f32 %v1003
        %v1516 = vcvt.s32.f32 %v1004
        %v1517 = vcvt.s32.f32 %v1005
        %v1518 = vcvt.s32.f32 %v1006
        %v1519 = vcvt.s32.f32 %v1007
        %v1520 = vcvt.s32.f32 %v1008
        %v1521 = vcvt.s32.f32 %v1009
        %v1522 = vcvt.s32.f32 %v1010
        %v1523 = vcvt.s32.f32 %v1011
        %v1524 = vcvt.s32.f32 %v1012
        %v1525 = vcvt.s32.f32 %v1013
        %v1526 = vcvt.s32.f32 %v1014
        %v1527 = vcvt.s32.f32 %v1015
        %v1528 = vcvt.s32.f32 %v1016
        %v1529 = vcvt.s32.f32 %v1017
        %v1530 = vcvt.s32.f32 %v1018
        %v1531 = vcvt.s32.f32 %v1019
        %v1532 = vcvt.s32.f32 %v1020
        %v1533 = vcvt.s32.f32 %v1021
        %v1534 = vcvt.s32.f32 %v1022
        %v1535 = vcvt.s32.f32 %v1023
        %v1536 = vcvt.s32.f32 %v1024
        %v1537 = vcvt.s32.f32 %v1025
        %v1538 = vcvt.s32.f32 %v1026
        %v1539 = vcvt.s32.f32 %v1027
        %v1540 = vcvt.s32.f32 %v1028
        %v1541 = vcvt.s32.f32 %v1029
        %v1542 = vcvt.s32.f32 %v1030
        %v1543 = vcvt.s32.f32 %v1031
        %v1544 = vcvt.s32.f32 %v1032
        %v1545 = vcvt.s32.f32 %v1033
        %v1546 = vcvt.s32.f32 %v1034
        %v1547 = vcvt.s32.f32 %v1035
        %v1548 = vcvt.s32.f32 %v1036
        %v1549 = vcvt.s32.f32 %v1037
        %v1550 = vcvt.s32.f32 %v1038
        %v1551 = vcvt.s32.f32 %v1039
        %v1552 = vcvt.s32.f32 %v1040
        %v1553 = vcvt.s32.f32 %v1041
        %v1554 = vcvt.s32.f32 %v1042
        %v1555 = vcvt.s32.f32 %v1043
        %v1556 = vcvt.s32.f32 %v1044
        %v1557 = vcvt.s32.f32 %v1045
        %v1558 = vcvt.s32.f32 %v1046
        %v1559 = vcvt.s32.f32 %v1047
        %v1560 = vcvt.s32.f32 %v1048
        %v1561 = vcvt.s32.f32 %v1049
        %v1562 = vcvt.s32.f32 %v1050
        %v1563 = vcvt.s32.f32 %v1051
        %v1564 = vcvt.s32.f32 %v1052
        %v1565 = vcvt.s32.f32 %v1053
        %v1566 = vcvt.s32.f32 %v1054
        %v1567 = vcvt.s32.f32 %v1055
        %v1568 = vcvt.s32.f32 %v1056
        %v1569 = vcvt.s32.f32 %v1057
        %v1570 = vcvt.s32.f32 %v1058
        %v1571 = vcvt.s32.f32 %v1059
        %v1572 = vcvt.s32.f32 %v1060
        %v1573 = vcvt.s32.f32 %v1061
        %v1574 = vcvt.s32.f32 %v1062
        %v1575 = vcvt.s32.f32 %v1063
        %v1576 = vcvt.s32.f32 %v1064
        %v1577 = vcvt.s32.f32 %v1065
        %v1578 = vcvt.s32.f32 %v1066
        %v1579 = vcvt.s32.f32 %v1067
        %v1580 = vcvt.s32.f32 %v1068
        %v1581 = vcvt.s32.f32 %v1069
        %v1582 = vcvt.s32.f32 %v1070
        %v1583 = vcvt.s32.f32 %v1071
        %v1584 = vcvt.s32.f32 %v1072
        %v1585 = vcvt.s32.f32 %v1073
        %v1586 = vcvt.s32.f32 %v1074
        %v1587 = vcvt.s32.f32 %v1075
        %v1588 = vcvt.s32.f32 %v1076
        %v1589 = vcvt.s32.f32 %v1077
        %v1590 = vcvt.s32.f32 %v1078
        %v1591 = vcvt.s32.f32 %v1079
        %v1592 = vcvt.s32.f32 %v1080
        %v1593 = vcvt.s32.f32 %v1081
        %v1594 = vcvt.s32.f32 %v1082
        %v1595 = vcvt.s32.f32 %v1083
        %v1596 = vcvt.s32.f32 %v1084
        %v1597 = vcvt.s32.f32 %v1085
        %v1598 = vcvt.s32.f32 %v1086
        %v1599 = vcvt.s32.f32 %v1087
        %v1600 = vcvt.s32.f32 %v1088
        %v1601 = vcvt.s32.f32 %v1089
        %v1602 = vcvt.s32.f32 %v1090
        %v1603 = vcvt.s32.f32 %v1091
        %v1604 = vcvt.s32.f32 %v1092
        %v1605 = vcvt.s32.f32 %v1093
        %v1606 = vcvt.s32.f32 %v1094
        %v1607 = vcvt.s32.f32 %v1095
        %v1608 = vcvt.s32.f32 %v1096
        %v1609 = vcvt.s32.f32 %v1097
        %v1610 = vcvt.s32.f32 %v1098
        %v1611 = vcvt.s32.f32 %v1099
        %v1612 = vcvt.s32.f32 %v1100
        %v1613 = vcvt.s32.f32 %v1101
        %v1614 = vcvt.s32.f32 %v1102
        %v1615 = vcvt.s32.f32 %v1103
        %v1616 = vcvt.s32.f32 %v1104
        %v1617 = vcvt.s32.f32 %v1105
        %v1618 = vcvt.s32.f32 %v1106
        %v1619 = vcvt.s32.f32 %v1107
        %v1620 = vcvt.s32.f32 %v1108
        %v1621 = vcvt.s32.f32 %v1109
        %v1622 = vcvt.s32.f32 %v1110
        %v1623 = vcvt.s32.f32 %v1111
        %v1624 = vcvt.s32.f32 %v1112
        %v1625 = vcvt.s32.f32 %v1113
        %v1626 = vcvt.s32.f32 %v1114
        %v1627 = vcvt.s32.f32 %v1115
        %v1628 = vcvt.s32.f32 %v1116
        %v1629 = vcvt.s32.f32 %v1117
        %v1630 = vcvt.s32.f32 %v1118
        %v1631 = vcvt.s32.f32 %v1119
        %v1632 = vcvt.s32.f32 %v1120
        %v1633 = vcvt.s32.f32 %v1121
        %v1634 = vcvt.s32.f32 %v1122
        %v1635 = vcvt.s32.f32 %v1123
        %v1636 = vcvt.s32.f32 %v1124
        %v1637 = vcvt.s32.f32 %v1125
        %v1638 = vcvt.s32.f32 %v1126
        %v1639 = vcvt.s32.f32 %v1127
        %v1640 = vcvt.s32.f32 %v1128
        %v1641 = vcvt.s32.f32 %v1129
        %v1642 = vcvt.s32.f32 %v1130
        %v1643 = vcvt.s32.f32 %v1131
        %v1644 = vcvt.s32.f32 %v1132
        %v1645 = vcvt.s32.f32 %v1133
        %v1646 = vcvt.s32.f32 %v1134
        %v1647 = vcvt.s32.f32 %v1135
        %v1648 = vcvt.s32.f32 %v1136
        %v1649 = vcvt.s32.f32 %v1137
        %v1650 = vcvt.s32.f32 %v1138
        %v1651 = vcvt.s32.f32 %v1139
        %v1652 = vcvt.s32.f32 %v1140
        %v1653 = vcvt.s32.f32 %v1141
        %v1654 = vcvt.s32.f32 %v1142
        %v1655 = vcvt.s32.f32 %v1143
        %v1656 = vcvt.s32.f32 %v1144
        %v1657 = vcvt.s32.f32 %v1145
        %v1658 = vcvt.s32.f32 %v1146
        %v1659 = vcvt.s32.f32 %v1147
        %v1660 = vcvt.s32.f32 %v1148
        %v1661 = vcvt.s32.f32 %v1149
        %v1662 = vcvt.s32.f32 %v1150
        %v1663 = vcvt.s32.f32 %v1151
        %v1664 = vcvt.s32.f32 %v1152
        %v1665 = vcvt.s32.f32 %v1153
        %v1666 = vcvt.s32.f32 %v1154
        %v1667 = vcvt.s32.f32 %v1155
        %v1668 = vcvt.s32.f32 %v1156
        %v1669 = vcvt.s32.f32 %v1157
        %v1670 = vcvt.s32.f32 %v1158
        %v1671 = vcvt.s32.f32 %v1159
        %v1672 = vcvt.s32.f32 %v1160
        %v1673 = vcvt.s32.f32 %v1161
        %v1674 = vcvt.s32.f32 %v1162
        %v1675 = vcvt.s32.f32 %v1163
        %v1676 = vcvt.s32.f32 %v1164
        %v1677 = vcvt.s32.f32 %v1165
        %v1678 = vcvt.s32.f32 %v1166
        %v1679 = vcvt.s32.f32 %v1167
        %v1680 = vcvt.s32.f32 %v1168
        %v1681 = vcvt.s32.f32 %v1169
        %v1682 = vcvt.s32.f32 %v1170
        %v1683 = vcvt.s32.f32 %v1171
        %v1684 = vcvt.s32.f32 %v1172
        %v1685 = vcvt.s32.f32 %v1173
        %v1686 = vcvt.s32.f32 %v1174
        %v1687 = vcvt.s32.f32 %v1175
        %v1688 = vcvt.s32.f32 %v1176
        %v1689 = vcvt.s32.f32 %v1177
        %v1690 = vcvt.s32.f32 %v1178
        %v1691 = vcvt.s32.f32 %v1179
        %v1692 = vcvt.s32.f32 %v1180
        %v1693 = vcvt.s32.f32 %v1181
        %v1694 = vcvt.s32.f32 %v1182
        %v1695 = vcvt.s32.f32 %v1183
        %v1696 = vcvt.s32.f32 %v1184
        %v1697 = vcvt.s32.f32 %v1185
        %v1698 = vcvt.s32.f32 %v1186
        %v1699 = vcvt.s32.f32 %v1187
        %v1700 = vcvt.s32.f32 %v1188
        %v1701 = vcvt.s32.f32 %v1189
        %v1702 = vcvt.s32.f32 %v1190
        %v1703 = vcvt.s32.f32 %v1191
        %v1704 = vcvt.s32.f32 %v1192
        %v1705 = vcvt.s32.f32 %v1193
        %v1706 = vcvt.s32.f32 %v1194
        %v1707 = vcvt.s32.f32 %v1195
        %v1708 = vcvt.s32.f32 %v1196
        %v1709 = vcvt.s32.f32 %v1197
        %v1710 = vcvt.s32.f32 %v1198
        %v1711 = vcvt.s32.f32 %v1199
        %v1712 = vcvt.s32.f32 %v1200
        %v1713 = vcvt.s32.f32 %v1201
        %v1714 = vcvt.s32.f32 %v1202
        %v1715 = vcvt.s32.f32 %v1203
        %v1716 = vcvt.s32.f32 %v1204
        %v1717 = vcvt.s32.f32 %v1205
        %v1718 = vcvt.s32.f32 %v1206
        %v1719 = vcvt.s32.f32 %v1207
        %v1720 = vcvt.s32.f32 %v1208
        %v1721 = vcvt.s32.f32 %v1209
        %v1722 = vcvt.s32.f32 %v1210
        %v1723 = vcvt.s32.f32 %v1211
        %v1724 = vcvt.s32.f32 %v1212
        %v1725 = vcvt.s32.f32 %v1213
        %v1726 = vcvt.s32.f32 %v1214
        %v1727 = vcvt.s32.f32 %v1215
        %v1728 = vcvt.s32.f32 %v1216
        %v1729 = vcvt.s32.f32 %v1217
        %v1730 = vcvt.s32.f32 %v1218
        %v1731 = vcvt.s32.f32 %v1219
        %v1732 = vcvt.s32.f32 %v1220
        %v1733 = vcvt.s32.f32 %v1221
        %v1734 = vcvt.s32.f32 %v1222
        %v1735 = vcvt.s32.f32 %v1223
        %v1736 = vcvt.s32.f32 %v1224
        %v1737 = vcvt.s32.f32 %v1225
        %v1738 = vcvt.s32.f32 %v1226
        %v1739 = vcvt.s32.f32 %v1227
        %v1740 = vcvt.s32.f32 %v1228
        %v1741 = vcvt.s32.f32 %v1229
        %v1742 = vcvt.s32.f32 %v1230
        %v1743 = vcvt.s32.f32 %v1231
        %v1744 = vcvt.s32.f32 %v1232
        %v1745 = vcvt.s32.f32 %v1233
        %v1746 = vcvt.s32.f32 %v1234
        %v1747 = vcvt.s32.f32 %v1235
        %v1748 = vcvt.s32.f32 %v1236
        %v1749 = vcvt.s32.f32 %v1237
        %v1750 = vcvt.s32.f32 %v1238
        %v1751 = vcvt.s32.f32 %v1239
        %v1752 = vcvt.s32.f32 %v1240
        %v1753 = vcvt.s32.f32 %v1241
        %v1754 = vcvt.s32.f32 %v1242
        %v1755 = vcvt.s32.f32 %v1243
        %v1756 = vcvt.s32.f32 %v1244
        %v1757 = vcvt.s32.f32 %v1245
        %v1758 = vcvt.s32.f32 %v1246
        %v1759 = vcvt.s32.f32 %v1247
        %v1760 = vcvt.s32.f32 %v1248
        %v1761 = vcvt.s32.f32 %v1249
        %v1762 = vcvt.s32.f32 %v1250
        %v1763 = vcvt.s32.f32 %v1251
        %v1764 = vcvt.s32.f32 %v1252
        %v1765 = vcvt.s32.f32 %v1253
        %v1766 = vcvt.s32.f32 %v1254
        %v1767 = vcvt.s32.f32 %v1255
        %v1768 = vcvt.s32.f32 %v1256
        %v1769 = vcvt.s32.f32 %v1257
        %v1770 = vcvt.s32.f32 %v1258
        %v1771 = vcvt.s32.f32 %v1259
        %v1772 = vcvt.s32.f32 %v1260
        %v1773 = vcvt.s32.f32 %v1261
        %v1774 = vcvt.s32.f32 %v1262
        %v1775 = vcvt.s32.f32 %v1263
        %v1776 = vcvt.s32.f32 %v1264
        %v1777 = vcvt.s32.f32 %v1265
        %v1778 = vcvt.s32.f32 %v1266
        %v1779 = vcvt.s32.f32 %v1267
        %v1780 = vcvt.s32.f32 %v1268
        %v1781 = vcvt.s32.f32 %v1269
        %v1782 = vcvt.s32.f32 %v1270
        %v1783 = vcvt.s32.f32 %v1271
        %v1784 = vcvt.s32.f32 %v1272
        %v1785 = vcvt.s32.f32 %v1273
        %v1786 = vcvt.s32.f32 %v1274
        %v1787 = vcvt.s32.f32 %v1275
        %v1788 = vcvt.s32.f32 %v1276
        %v1789 = vcvt.s32.f32 %v1277
        %v1790 = vcvt.s32.f32 %v1278
        %v1791 = vcvt.s32.f32 %v1279
        %v1792 = vcvt.s32.f32 %v1280
        %v1793 = vcvt.s32.f32 %v1281
        %v1794 = vcvt.s32.f32 %v1282
        %v1795 = vcvt.s32.f32 %v1283
        %v1796 = vcvt.s32.f32 %v1284
        %v1797 = vcvt.s32.f32 %v1285
        %v1798 = vcvt.s32.f32 %v1286
        %v1799 = vcvt.s32.f32 %v1287
        %v1800 = vcvt.s32.f32 %v1288
        %v1801 = vcvt.s32.f32 %v1289
        %v1802 = vcvt.s32.f32 %v1290
        %v1803 = vcvt.s32.f32 %v1291
        %v1804 = vcvt.s32.f32 %v1292
        %v1805 = vcvt.s32.f32 %v1293
        %v1806 = vcvt.s32.f32 %v1294
        %v1807 = vcvt.s32.f32 %v1295
        %v1808 = vcvt.s32.f32 %v1296
        %v1809 = vcvt.s32.f32 %v1297
        %v1810 = vcvt.s32.f32 %v1298
        %v1811 = vcvt.s32.f32 %v1299
        %v1812 = vcvt.s32.f32 %v1300
        %v1813 = vcvt.s32.f32 %v1301
        %v1814 = vcvt.s32.f32 %v1302
        %v1815 = vcvt.s32.f32 %v1303
        %v1816 = vcvt.s32.f32 %v1304
        %v1817 = vcvt.s32.f32 %v1305
        %v1818 = vcvt.s32.f32 %v1306
        %v1819 = vcvt.s32.f32 %v1307
        %v1820 = vcvt.s32.f32 %v1308
        %v1821 = vcvt.s32.f32 %v1309
        %v1822 = vcvt.s32.f32 %v1310
        %v1823 = vcvt.s32.f32 %v1311
        %v1824 = vcvt.s32.f32 %v1312
        %v1825 = vcvt.s32.f32 %v1313
        %v1826 = vcvt.s32.f32 %v1314
        %v1827 = vcvt.s32.f32 %v1315
        %v1828 = vcvt.s32.f32 %v1316
        %v1829 = vcvt.s32.f32 %v1317
        %v1830 = vcvt.s32.f32 %v1318
        %v1831 = vcvt.s32.f32 %v1319
        %v1832 = vcvt.s32.f32 %v1320
        %v1833 = vcvt.s32.f32 %v1321
        %v1834 = vcvt.s32.f32 %v1322
        %v1835 = vcvt.s32.f32 %v1323
        %v1836 = vcvt.s32.f32 %v1324
        %v1837 = vcvt.s32.f32 %v1325
        %v1838 = vcvt.s32.f32 %v1326
        %v1839 = vcvt.s32.f32 %v1327
        %v1840 = vcvt.s32.f32 %v1328
        %v1841 = vcvt.s32.f32 %v1329
        %v1842 = vcvt.s32.f32 %v1330
        %v1843 = vcvt.s32.f32 %v1331
        %v1844 = vcvt.s32.f32 %v1332
        %v1845 = vcvt.s32.f32 %v1333
        %v1846 = vcvt.s32.f32 %v1334
        %v1847 = vcvt.s32.f32 %v1335
        %v1848 = vcvt.s32.f32 %v1336
        %v1849 = vcvt.s32.f32 %v1337
        %v1850 = vcvt.s32.f32 %v1338
        %v1851 = vcvt.s32.f32 %v1339
        %v1852 = vcvt.s32.f32 %v1340
        %v1853 = vcvt.s32.f32 %v1341
        %v1854 = vcvt.s32.f32 %v1342
        %v1855 = vcvt.s32.f32 %v1343
        %v1856 = vcvt.s32.f32 %v1344
        %v1857 = vcvt.s32.f32 %v1345
        %v1858 = vcvt.s32.f32 %v1346
        %v1859 = vcvt.s32.f32 %v1347
        %v1860 = vcvt.s32.f32 %v1348
        %v1861 = vcvt.s32.f32 %v1349
        %v1862 = vcvt.s32.f32 %v1350
        %v1863 = vcvt.s32.f32 %v1351
        %v1864 = vcvt.s32.f32 %v1352
        %v1865 = vcvt.s32.f32 %v1353
        %v1866 = vcvt.s32.f32 %v1354
        %v1867 = vcvt.s32.f32 %v1355
        %v1868 = vcvt.s32.f32 %v1356
        %v1869 = vcvt.s32.f32 %v1357
        %v1870 = vcvt.s32.f32 %v1358
        %v1871 = vcvt.s32.f32 %v1359
        %v1872 = vcvt.s32.f32 %v1360
        %v1873 = vcvt.s32.f32 %v1361
        %v1874 = vcvt.s32.f32 %v1362
        %v1875 = vcvt.s32.f32 %v1363
        %v1876 = vcvt.s32.f32 %v1364
        %v1877 = vcvt.s32.f32 %v1365
        %v1878 = vcvt.s32.f32 %v1366
        %v1879 = vcvt.s32.f32 %v1367
        %v1880 = vcvt.s32.f32 %v1368
        %v1881 = vcvt.s32.f32 %v1369
        %v1882 = vcvt.s32.f32 %v1370
        %v1883 = vcvt.s32.f32 %v1371
        %v1884 = vcvt.s32.f32 %v1372
        %v1885 = vcvt.s32.f32 %v1373
        %v1886 = vcvt.s32.f32 %v1374
        %v1887 = vcvt.s32.f32 %v1375
        %v1888 = vcvt.s32.f32 %v1376
        %v1889 = vcvt.s32.f32 %v1377
        %v1890 = vcvt.s32.f32 %v1378
        %v1891 = vcvt.s32.f32 %v1379
        %v1892 = vcvt.s32.f32 %v1380
        %v1893 = vcvt.s32.f32 %v1381
        %v1894 = vcvt.s32.f32 %v1382
        %v1895 = vcvt.s32.f32 %v1383
        %v1896 = vcvt.s32.f32 %v1384
        %v1897 = vcvt.s32.f32 %v1385
        %v1898 = vcvt.s32.f32 %v1386
        %v1899 = vcvt.s32.f32 %v1387
        %v1900 = vcvt.s32.f32 %v1388
        %v1901 = vcvt.s32.f32 %v1389
        %v1902 = vcvt.s32.f32 %v1390
        %v1903 = vcvt.s32.f32 %v1391
        %v1904 = vcvt.s32.f32 %v1392
        %v1905 = vcvt.s32.f32 %v1393
        %v1906 = vcvt.s32.f32 %v1394
        %v1907 = vcvt.s32.f32 %v1395
        %v1908 = vcvt.s32.f32 %v1396
        %v1909 = vcvt.s32.f32 %v1397
        %v1910 = vcvt.s32.f32 %v1398
        %v1911 = vcvt.s32.f32 %v1399
        %v1912 = vcvt.s32.f32 %v1400
        %v1913 = vcvt.s32.f32 %v1401
        %v1914 = vcvt.s32.f32 %v1402
        %v1915 = vcvt.s32.f32 %v1403
        %v1916 = vcvt.s32.f32 %v1404
        %v1917 = vcvt.s32.f32 %v1405
        %v1918 = vcvt.s32.f32 %v1406
        %v1919 = vcvt.s32.f32 %v1407
        %v1920 = vcvt.s32.f32 %v1408
        %v1921 = vcvt.s32.f32 %v1409
        %v1922 = vcvt.s32.f32 %v1410
        %v1923 = vcvt.s32.f32 %v1411
        %v1924 = vcvt.s32.f32 %v1412
        %v1925 = vcvt.s32.f32 %v1413
        %v1926 = vcvt.s32.f32 %v1414
        %v1927 = vcvt.s32.f32 %v1415
        %v1928 = vcvt.s32.f32 %v1416
        %v1929 = vcvt.s32.f32 %v1417
        %v1930 = vcvt.s32.f32 %v1418
        %v1931 = vcvt.s32.f32 %v1419
        %v1932 = vcvt.s32.f32 %v1420
        %v1933 = vcvt.s32.f32 %v1421
        %v1934 = vcvt.s32.f32 %v1422
        %v1935 = vcvt.s32.f32 %v1423
        %v1936 = vcvt.s32.f32 %v1424
        %v1937 = vcvt.s32.f32 %v1425
        %v1938 = vcvt.s32.f32 %v1426
        %v1939 = vcvt.s32.f32 %v1427
        %v1940 = vcvt.s32.f32 %v1428
        %v1941 = vcvt.s32.f32 %v1429
        %v1942 = vcvt.s32.f32 %v1430
        %v1943 = vcvt.s32.f32 %v1431
        %v1944 = vcvt.s32.f32 %v1432
        %v1945 = vcvt.s32.f32 %v1433
        %v1946 = vcvt.s32.f32 %v1434
        %v1947 = vcvt.s32.f32 %v1435
        %v1948 = vcvt.s32.f32 %v1436
        %v1949 = vcvt.s32.f32 %v1437
        %v1950 = vcvt.s32.f32 %v1438
        %v1951 = vcvt.s32.f32 %v1439
        %v1952 = vcvt.s32.f32 %v1440
        %v1953 = vcvt.s32.f32 %v1441
        %v1954 = vcvt.s32.f32 %v1442
        %v1955 = vcvt.s32.f32 %v1443
        %v1956 = vcvt.s32.f32 %v1444
        %v1957 = vcvt.s32.f32 %v1445
        %v1958 = vcvt.s32.f32 %v1446
        %v1959 = vcvt.s32.f32 %v1447
        %v1960 = vcvt.s32.f32 %v1448
        %v1961 = vcvt.s32.f32 %v1449
        %v1962 = vcvt.s32.f32 %v1450
        %v1963 = vcvt.s32.f32 %v1451
        %v1964 = vcvt.s32.f32 %v1452
        %v1965 = vcvt.s32.f32 %v1453
        %v1966 = vcvt.s32.f32 %v1454
        %v1967 = vcvt.s32.f32 %v1455
        %v1968 = vcvt.s32.f32 %v1456
        %v1969 = vcvt.s32.f32 %v1457
        %vm1970 = vcmask 64512
        %v1971 = vsel %vm1970, %v1458, 0.0
        %1972 = vadd.xlane.f32.xlu0 %v1971
        %v1973 = vpop.xlane.xlu0 %1972
        %v1974 = vsel %vm1970, %v1459, 0.0
        %1975 = vadd.xlane.f32.xlu0 %v1974
        %v1976 = vpop.xlane.xlu0 %1975
        %v1977 = vsel %vm1970, %v1460, 0.0
        %1978 = vadd.xlane.f32.xlu0 %v1977
        %v1979 = vpop.xlane.xlu0 %1978
        %v1980 = vsel %vm1970, %v1461, 0.0
        %1981 = vadd.xlane.f32.xlu0 %v1980
        %v1982 = vpop.xlane.xlu0 %1981
        %v1983 = vsel %vm1970, %v1462, 0.0
        %1984 = vadd.xlane.f32.xlu0 %v1983
        %v1985 = vpop.xlane.xlu0 %1984
        %v1986 = vsel %vm1970, %v1463, 0.0
        %1987 = vadd.xlane.f32.xlu0 %v1986
        %v1988 = vpop.xlane.xlu0 %1987
        %v1989 = vsel %vm1970, %v1464, 0.0
        %1990 = vadd.xlane.f32.xlu0 %v1989
        %v1991 = vpop.xlane.xlu0 %1990
        %v1992 = vsel %vm1970, %v1465, 0.0
        %1993 = vadd.xlane.f32.xlu0 %v1992
        %v1994 = vpop.xlane.xlu0 %1993
        %v1995 = vsel %vm1970, %v1466, 0.0
        %1996 = vadd.xlane.f32.xlu0 %v1995
        %v1997 = vpop.xlane.xlu0 %1996
        %v1998 = vsel %vm1970, %v1467, 0.0
        %1999 = vadd.xlane.f32.xlu0 %v1998
        %v2000 = vpop.xlane.xlu0 %1999
        %v2001 = vsel %vm1970, %v1468, 0.0
        %2002 = vadd.xlane.f32.xlu0 %v2001
        %v2003 = vpop.xlane.xlu0 %2002
        %v2004 = vsel %vm1970, %v1469, 0.0
        %2005 = vadd.xlane.f32.xlu0 %v2004
        %v2006 = vpop.xlane.xlu0 %2005
        %v2007 = vsel %vm1970, %v1470, 0.0
        %2008 = vadd.xlane.f32.xlu0 %v2007
        %v2009 = vpop.xlane.xlu0 %2008
        %v2010 = vsel %vm1970, %v1471, 0.0
        %2011 = vadd.xlane.f32.xlu0 %v2010
        %v2012 = vpop.xlane.xlu0 %2011
        %v2013 = vsel %vm1970, %v1472, 0.0
        %2014 = vadd.xlane.f32.xlu0 %v2013
        %v2015 = vpop.xlane.xlu0 %2014
        %v2016 = vsel %vm1970, %v1473, 0.0
        %2017 = vadd.xlane.f32.xlu0 %v2016
        %v2018 = vpop.xlane.xlu0 %2017
        %v2019 = vsel %vm1970, %v1474, 0.0
        %2020 = vadd.xlane.f32.xlu0 %v2019
        %v2021 = vpop.xlane.xlu0 %2020
        %v2022 = vsel %vm1970, %v1475, 0.0
        %2023 = vadd.xlane.f32.xlu0 %v2022
        %v2024 = vpop.xlane.xlu0 %2023
        %v2025 = vsel %vm1970, %v1476, 0.0
        %2026 = vadd.xlane.f32.xlu0 %v2025
        %v2027 = vpop.xlane.xlu0 %2026
        %v2028 = vsel %vm1970, %v1477, 0.0
        %2029 = vadd.xlane.f32.xlu0 %v2028
        %v2030 = vpop.xlane.xlu0 %2029
        %v2031 = vsel %vm1970, %v1478, 0.0
        %2032 = vadd.xlane.f32.xlu0 %v2031
        %v2033 = vpop.xlane.xlu0 %2032
        %v2034 = vsel %vm1970, %v1479, 0.0
        %2035 = vadd.xlane.f32.xlu0 %v2034
        %v2036 = vpop.xlane.xlu0 %2035
        %v2037 = vsel %vm1970, %v1480, 0.0
        %2038 = vadd.xlane.f32.xlu0 %v2037
        %v2039 = vpop.xlane.xlu0 %2038
        %v2040 = vsel %vm1970, %v1481, 0.0
        %2041 = vadd.xlane.f32.xlu0 %v2040
        %v2042 = vpop.xlane.xlu0 %2041
        %v2043 = vsel %vm1970, %v1482, 0.0
        %2044 = vadd.xlane.f32.xlu0 %v2043
        %v2045 = vpop.xlane.xlu0 %2044
        %v2046 = vsel %vm1970, %v1483, 0.0
        %2047 = vadd.xlane.f32.xlu0 %v2046
        %v2048 = vpop.xlane.xlu0 %2047
        %v2049 = vsel %vm1970, %v1484, 0.0
        %2050 = vadd.xlane.f32.xlu0 %v2049
        %v2051 = vpop.xlane.xlu0 %2050
        %v2052 = vsel %vm1970, %v1485, 0.0
        %2053 = vadd.xlane.f32.xlu0 %v2052
        %v2054 = vpop.xlane.xlu0 %2053
        %v2055 = vsel %vm1970, %v1486, 0.0
        %2056 = vadd.xlane.f32.xlu0 %v2055
        %v2057 = vpop.xlane.xlu0 %2056
        %v2058 = vsel %vm1970, %v1487, 0.0
        %2059 = vadd.xlane.f32.xlu0 %v2058
        %v2060 = vpop.xlane.xlu0 %2059
        %v2061 = vsel %vm1970, %v1488, 0.0
        %2062 = vadd.xlane.f32.xlu0 %v2061
        %v2063 = vpop.xlane.xlu0 %2062
        %v2064 = vsel %vm1970, %v1489, 0.0
        %2065 = vadd.xlane.f32.xlu0 %v2064
        %v2066 = vpop.xlane.xlu0 %2065
        %v2067 = vsel %vm1970, %v1490, 0.0
        %2068 = vadd.xlane.f32.xlu0 %v2067
        %v2069 = vpop.xlane.xlu0 %2068
        %v2070 = vsel %vm1970, %v1491, 0.0
        %2071 = vadd.xlane.f32.xlu0 %v2070
        %v2072 = vpop.xlane.xlu0 %2071
        %v2073 = vsel %vm1970, %v1492, 0.0
        %2074 = vadd.xlane.f32.xlu0 %v2073
        %v2075 = vpop.xlane.xlu0 %2074
        %v2076 = vsel %vm1970, %v1493, 0.0
        %2077 = vadd.xlane.f32.xlu0 %v2076
        %v2078 = vpop.xlane.xlu0 %2077
        %v2079 = vsel %vm1970, %v1494, 0.0
        %2080 = vadd.xlane.f32.xlu0 %v2079
        %v2081 = vpop.xlane.xlu0 %2080
        %v2082 = vsel %vm1970, %v1495, 0.0
        %2083 = vadd.xlane.f32.xlu0 %v2082
        %v2084 = vpop.xlane.xlu0 %2083
        %v2085 = vsel %vm1970, %v1496, 0.0
        %2086 = vadd.xlane.f32.xlu0 %v2085
        %v2087 = vpop.xlane.xlu0 %2086
        %v2088 = vsel %vm1970, %v1497, 0.0
        %2089 = vadd.xlane.f32.xlu0 %v2088
        %v2090 = vpop.xlane.xlu0 %2089
        %v2091 = vsel %vm1970, %v1498, 0.0
        %2092 = vadd.xlane.f32.xlu0 %v2091
        %v2093 = vpop.xlane.xlu0 %2092
        %v2094 = vsel %vm1970, %v1499, 0.0
        %2095 = vadd.xlane.f32.xlu0 %v2094
        %v2096 = vpop.xlane.xlu0 %2095
        %v2097 = vsel %vm1970, %v1500, 0.0
        %2098 = vadd.xlane.f32.xlu0 %v2097
        %v2099 = vpop.xlane.xlu0 %2098
        %v2100 = vsel %vm1970, %v1501, 0.0
        %2101 = vadd.xlane.f32.xlu0 %v2100
        %v2102 = vpop.xlane.xlu0 %2101
        %v2103 = vsel %vm1970, %v1502, 0.0
        %2104 = vadd.xlane.f32.xlu0 %v2103
        %v2105 = vpop.xlane.xlu0 %2104
        %v2106 = vsel %vm1970, %v1503, 0.0
        %2107 = vadd.xlane.f32.xlu0 %v2106
        %v2108 = vpop.xlane.xlu0 %2107
        %v2109 = vsel %vm1970, %v1504, 0.0
        %2110 = vadd.xlane.f32.xlu0 %v2109
        %v2111 = vpop.xlane.xlu0 %2110
        %v2112 = vsel %vm1970, %v1505, 0.0
        %2113 = vadd.xlane.f32.xlu0 %v2112
        %v2114 = vpop.xlane.xlu0 %2113
        %v2115 = vsel %vm1970, %v1506, 0.0
        %2116 = vadd.xlane.f32.xlu0 %v2115
        %v2117 = vpop.xlane.xlu0 %2116
        %v2118 = vsel %vm1970, %v1507, 0.0
        %2119 = vadd.xlane.f32.xlu0 %v2118
        %v2120 = vpop.xlane.xlu0 %2119
        %v2121 = vsel %vm1970, %v1508, 0.0
        %2122 = vadd.xlane.f32.xlu0 %v2121
        %v2123 = vpop.xlane.xlu0 %2122
        %v2124 = vsel %vm1970, %v1509, 0.0
        %2125 = vadd.xlane.f32.xlu0 %v2124
        %v2126 = vpop.xlane.xlu0 %2125
        %v2127 = vsel %vm1970, %v1510, 0.0
        %2128 = vadd.xlane.f32.xlu0 %v2127
        %v2129 = vpop.xlane.xlu0 %2128
        %v2130 = vsel %vm1970, %v1511, 0.0
        %2131 = vadd.xlane.f32.xlu0 %v2130
        %v2132 = vpop.xlane.xlu0 %2131
        %v2133 = vsel %vm1970, %v1512, 0.0
        %2134 = vadd.xlane.f32.xlu0 %v2133
        %v2135 = vpop.xlane.xlu0 %2134
        %v2136 = vsel %vm1970, %v1513, 0.0
        %2137 = vadd.xlane.f32.xlu0 %v2136
        %v2138 = vpop.xlane.xlu0 %2137
        %v2139 = vsel %vm1970, %v1514, 0.0
        %2140 = vadd.xlane.f32.xlu0 %v2139
        %v2141 = vpop.xlane.xlu0 %2140
        %v2142 = vsel %vm1970, %v1515, 0.0
        %2143 = vadd.xlane.f32.xlu0 %v2142
        %v2144 = vpop.xlane.xlu0 %2143
        %v2145 = vsel %vm1970, %v1516, 0.0
        %2146 = vadd.xlane.f32.xlu0 %v2145
        %v2147 = vpop.xlane.xlu0 %2146
        %v2148 = vsel %vm1970, %v1517, 0.0
        %2149 = vadd.xlane.f32.xlu0 %v2148
        %v2150 = vpop.xlane.xlu0 %2149
        %v2151 = vsel %vm1970, %v1518, 0.0
        %2152 = vadd.xlane.f32.xlu0 %v2151
        %v2153 = vpop.xlane.xlu0 %2152
        %v2154 = vsel %vm1970, %v1519, 0.0
        %2155 = vadd.xlane.f32.xlu0 %v2154
        %v2156 = vpop.xlane.xlu0 %2155
        %v2157 = vsel %vm1970, %v1520, 0.0
        %2158 = vadd.xlane.f32.xlu0 %v2157
        %v2159 = vpop.xlane.xlu0 %2158
        %v2160 = vsel %vm1970, %v1521, 0.0
        %2161 = vadd.xlane.f32.xlu0 %v2160
        %v2162 = vpop.xlane.xlu0 %2161
        %v2163 = vsel %vm1970, %v1522, 0.0
        %2164 = vadd.xlane.f32.xlu0 %v2163
        %v2165 = vpop.xlane.xlu0 %2164
        %v2166 = vsel %vm1970, %v1523, 0.0
        %2167 = vadd.xlane.f32.xlu0 %v2166
        %v2168 = vpop.xlane.xlu0 %2167
        %v2169 = vsel %vm1970, %v1524, 0.0
        %2170 = vadd.xlane.f32.xlu0 %v2169
        %v2171 = vpop.xlane.xlu0 %2170
        %v2172 = vsel %vm1970, %v1525, 0.0
        %2173 = vadd.xlane.f32.xlu0 %v2172
        %v2174 = vpop.xlane.xlu0 %2173
        %v2175 = vsel %vm1970, %v1526, 0.0
        %2176 = vadd.xlane.f32.xlu0 %v2175
        %v2177 = vpop.xlane.xlu0 %2176
        %v2178 = vsel %vm1970, %v1527, 0.0
        %2179 = vadd.xlane.f32.xlu0 %v2178
        %v2180 = vpop.xlane.xlu0 %2179
        %v2181 = vsel %vm1970, %v1528, 0.0
        %2182 = vadd.xlane.f32.xlu0 %v2181
        %v2183 = vpop.xlane.xlu0 %2182
        %v2184 = vsel %vm1970, %v1529, 0.0
        %2185 = vadd.xlane.f32.xlu0 %v2184
        %v2186 = vpop.xlane.xlu0 %2185
        %v2187 = vsel %vm1970, %v1530, 0.0
        %2188 = vadd.xlane.f32.xlu0 %v2187
        %v2189 = vpop.xlane.xlu0 %2188
        %v2190 = vsel %vm1970, %v1531, 0.0
        %2191 = vadd.xlane.f32.xlu0 %v2190
        %v2192 = vpop.xlane.xlu0 %2191
        %v2193 = vsel %vm1970, %v1532, 0.0
        %2194 = vadd.xlane.f32.xlu0 %v2193
        %v2195 = vpop.xlane.xlu0 %2194
        %v2196 = vsel %vm1970, %v1533, 0.0
        %2197 = vadd.xlane.f32.xlu0 %v2196
        %v2198 = vpop.xlane.xlu0 %2197
        %v2199 = vsel %vm1970, %v1534, 0.0
        %2200 = vadd.xlane.f32.xlu0 %v2199
        %v2201 = vpop.xlane.xlu0 %2200
        %v2202 = vsel %vm1970, %v1535, 0.0
        %2203 = vadd.xlane.f32.xlu0 %v2202
        %v2204 = vpop.xlane.xlu0 %2203
        %v2205 = vsel %vm1970, %v1536, 0.0
        %2206 = vadd.xlane.f32.xlu0 %v2205
        %v2207 = vpop.xlane.xlu0 %2206
        %v2208 = vsel %vm1970, %v1537, 0.0
        %2209 = vadd.xlane.f32.xlu0 %v2208
        %v2210 = vpop.xlane.xlu0 %2209
        %v2211 = vsel %vm1970, %v1538, 0.0
        %2212 = vadd.xlane.f32.xlu0 %v2211
        %v2213 = vpop.xlane.xlu0 %2212
        %v2214 = vsel %vm1970, %v1539, 0.0
        %2215 = vadd.xlane.f32.xlu0 %v2214
        %v2216 = vpop.xlane.xlu0 %2215
        %v2217 = vsel %vm1970, %v1540, 0.0
        %2218 = vadd.xlane.f32.xlu0 %v2217
        %v2219 = vpop.xlane.xlu0 %2218
        %v2220 = vsel %vm1970, %v1541, 0.0
        %2221 = vadd.xlane.f32.xlu0 %v2220
        %v2222 = vpop.xlane.xlu0 %2221
        %v2223 = vsel %vm1970, %v1542, 0.0
        %2224 = vadd.xlane.f32.xlu0 %v2223
        %v2225 = vpop.xlane.xlu0 %2224
        %v2226 = vsel %vm1970, %v1543, 0.0
        %2227 = vadd.xlane.f32.xlu0 %v2226
        %v2228 = vpop.xlane.xlu0 %2227
        %v2229 = vsel %vm1970, %v1544, 0.0
        %2230 = vadd.xlane.f32.xlu0 %v2229
        %v2231 = vpop.xlane.xlu0 %2230
        %v2232 = vsel %vm1970, %v1545, 0.0
        %2233 = vadd.xlane.f32.xlu0 %v2232
        %v2234 = vpop.xlane.xlu0 %2233
        %v2235 = vsel %vm1970, %v1546, 0.0
        %2236 = vadd.xlane.f32.xlu0 %v2235
        %v2237 = vpop.xlane.xlu0 %2236
        %v2238 = vsel %vm1970, %v1547, 0.0
        %2239 = vadd.xlane.f32.xlu0 %v2238
        %v2240 = vpop.xlane.xlu0 %2239
        %v2241 = vsel %vm1970, %v1548, 0.0
        %2242 = vadd.xlane.f32.xlu0 %v2241
        %v2243 = vpop.xlane.xlu0 %2242
        %v2244 = vsel %vm1970, %v1549, 0.0
        %2245 = vadd.xlane.f32.xlu0 %v2244
        %v2246 = vpop.xlane.xlu0 %2245
        %v2247 = vsel %vm1970, %v1550, 0.0
        %2248 = vadd.xlane.f32.xlu0 %v2247
        %v2249 = vpop.xlane.xlu0 %2248
        %v2250 = vsel %vm1970, %v1551, 0.0
        %2251 = vadd.xlane.f32.xlu0 %v2250
        %v2252 = vpop.xlane.xlu0 %2251
        %v2253 = vsel %vm1970, %v1552, 0.0
        %2254 = vadd.xlane.f32.xlu0 %v2253
        %v2255 = vpop.xlane.xlu0 %2254
        %v2256 = vsel %vm1970, %v1553, 0.0
        %2257 = vadd.xlane.f32.xlu0 %v2256
        %v2258 = vpop.xlane.xlu0 %2257
        %v2259 = vsel %vm1970, %v1554, 0.0
        %2260 = vadd.xlane.f32.xlu0 %v2259
        %v2261 = vpop.xlane.xlu0 %2260
        %v2262 = vsel %vm1970, %v1555, 0.0
        %2263 = vadd.xlane.f32.xlu0 %v2262
        %v2264 = vpop.xlane.xlu0 %2263
        %v2265 = vsel %vm1970, %v1556, 0.0
        %2266 = vadd.xlane.f32.xlu0 %v2265
        %v2267 = vpop.xlane.xlu0 %2266
        %v2268 = vsel %vm1970, %v1557, 0.0
        %2269 = vadd.xlane.f32.xlu0 %v2268
        %v2270 = vpop.xlane.xlu0 %2269
        %v2271 = vsel %vm1970, %v1558, 0.0
        %2272 = vadd.xlane.f32.xlu0 %v2271
        %v2273 = vpop.xlane.xlu0 %2272
        %v2274 = vsel %vm1970, %v1559, 0.0
        %2275 = vadd.xlane.f32.xlu0 %v2274
        %v2276 = vpop.xlane.xlu0 %2275
        %v2277 = vsel %vm1970, %v1560, 0.0
        %2278 = vadd.xlane.f32.xlu0 %v2277
        %v2279 = vpop.xlane.xlu0 %2278
        %v2280 = vsel %vm1970, %v1561, 0.0
        %2281 = vadd.xlane.f32.xlu0 %v2280
        %v2282 = vpop.xlane.xlu0 %2281
        %v2283 = vsel %vm1970, %v1562, 0.0
        %2284 = vadd.xlane.f32.xlu0 %v2283
        %v2285 = vpop.xlane.xlu0 %2284
        %v2286 = vsel %vm1970, %v1563, 0.0
        %2287 = vadd.xlane.f32.xlu0 %v2286
        %v2288 = vpop.xlane.xlu0 %2287
        %v2289 = vsel %vm1970, %v1564, 0.0
        %2290 = vadd.xlane.f32.xlu0 %v2289
        %v2291 = vpop.xlane.xlu0 %2290
        %v2292 = vsel %vm1970, %v1565, 0.0
        %2293 = vadd.xlane.f32.xlu0 %v2292
        %v2294 = vpop.xlane.xlu0 %2293
        %v2295 = vsel %vm1970, %v1566, 0.0
        %2296 = vadd.xlane.f32.xlu0 %v2295
        %v2297 = vpop.xlane.xlu0 %2296
        %v2298 = vsel %vm1970, %v1567, 0.0
        %2299 = vadd.xlane.f32.xlu0 %v2298
        %v2300 = vpop.xlane.xlu0 %2299
        %v2301 = vsel %vm1970, %v1568, 0.0
        %2302 = vadd.xlane.f32.xlu0 %v2301
        %v2303 = vpop.xlane.xlu0 %2302
        %v2304 = vsel %vm1970, %v1569, 0.0
        %2305 = vadd.xlane.f32.xlu0 %v2304
        %v2306 = vpop.xlane.xlu0 %2305
        %v2307 = vsel %vm1970, %v1570, 0.0
        %2308 = vadd.xlane.f32.xlu0 %v2307
        %v2309 = vpop.xlane.xlu0 %2308
        %v2310 = vsel %vm1970, %v1571, 0.0
        %2311 = vadd.xlane.f32.xlu0 %v2310
        %v2312 = vpop.xlane.xlu0 %2311
        %v2313 = vsel %vm1970, %v1572, 0.0
        %2314 = vadd.xlane.f32.xlu0 %v2313
        %v2315 = vpop.xlane.xlu0 %2314
        %v2316 = vsel %vm1970, %v1573, 0.0
        %2317 = vadd.xlane.f32.xlu0 %v2316
        %v2318 = vpop.xlane.xlu0 %2317
        %v2319 = vsel %vm1970, %v1574, 0.0
        %2320 = vadd.xlane.f32.xlu0 %v2319
        %v2321 = vpop.xlane.xlu0 %2320
        %v2322 = vsel %vm1970, %v1575, 0.0
        %2323 = vadd.xlane.f32.xlu0 %v2322
        %v2324 = vpop.xlane.xlu0 %2323
        %v2325 = vsel %vm1970, %v1576, 0.0
        %2326 = vadd.xlane.f32.xlu0 %v2325
        %v2327 = vpop.xlane.xlu0 %2326
        %v2328 = vsel %vm1970, %v1577, 0.0
        %2329 = vadd.xlane.f32.xlu0 %v2328
        %v2330 = vpop.xlane.xlu0 %2329
        %v2331 = vsel %vm1970, %v1578, 0.0
        %2332 = vadd.xlane.f32.xlu0 %v2331
        %v2333 = vpop.xlane.xlu0 %2332
        %v2334 = vsel %vm1970, %v1579, 0.0
        %2335 = vadd.xlane.f32.xlu0 %v2334
        %v2336 = vpop.xlane.xlu0 %2335
        %v2337 = vsel %vm1970, %v1580, 0.0
        %2338 = vadd.xlane.f32.xlu0 %v2337
        %v2339 = vpop.xlane.xlu0 %2338
        %v2340 = vsel %vm1970, %v1581, 0.0
        %2341 = vadd.xlane.f32.xlu0 %v2340
        %v2342 = vpop.xlane.xlu0 %2341
        %v2343 = vsel %vm1970, %v1582, 0.0
        %2344 = vadd.xlane.f32.xlu0 %v2343
        %v2345 = vpop.xlane.xlu0 %2344
        %v2346 = vsel %vm1970, %v1583, 0.0
        %2347 = vadd.xlane.f32.xlu0 %v2346
        %v2348 = vpop.xlane.xlu0 %2347
        %v2349 = vsel %vm1970, %v1584, 0.0
        %2350 = vadd.xlane.f32.xlu0 %v2349
        %v2351 = vpop.xlane.xlu0 %2350
        %v2352 = vsel %vm1970, %v1585, 0.0
        %2353 = vadd.xlane.f32.xlu0 %v2352
        %v2354 = vpop.xlane.xlu0 %2353
        %v2355 = vsel %vm1970, %v1586, 0.0
        %2356 = vadd.xlane.f32.xlu0 %v2355
        %v2357 = vpop.xlane.xlu0 %2356
        %v2358 = vsel %vm1970, %v1587, 0.0
        %2359 = vadd.xlane.f32.xlu0 %v2358
        %v2360 = vpop.xlane.xlu0 %2359
        %v2361 = vsel %vm1970, %v1588, 0.0
        %2362 = vadd.xlane.f32.xlu0 %v2361
        %v2363 = vpop.xlane.xlu0 %2362
        %v2364 = vsel %vm1970, %v1589, 0.0
        %2365 = vadd.xlane.f32.xlu0 %v2364
        %v2366 = vpop.xlane.xlu0 %2365
        %v2367 = vsel %vm1970, %v1590, 0.0
        %2368 = vadd.xlane.f32.xlu0 %v2367
        %v2369 = vpop.xlane.xlu0 %2368
        %v2370 = vsel %vm1970, %v1591, 0.0
        %2371 = vadd.xlane.f32.xlu0 %v2370
        %v2372 = vpop.xlane.xlu0 %2371
        %v2373 = vsel %vm1970, %v1592, 0.0
        %2374 = vadd.xlane.f32.xlu0 %v2373
        %v2375 = vpop.xlane.xlu0 %2374
        %v2376 = vsel %vm1970, %v1593, 0.0
        %2377 = vadd.xlane.f32.xlu0 %v2376
        %v2378 = vpop.xlane.xlu0 %2377
        %v2379 = vsel %vm1970, %v1594, 0.0
        %2380 = vadd.xlane.f32.xlu0 %v2379
        %v2381 = vpop.xlane.xlu0 %2380
        %v2382 = vsel %vm1970, %v1595, 0.0
        %2383 = vadd.xlane.f32.xlu0 %v2382
        %v2384 = vpop.xlane.xlu0 %2383
        %v2385 = vsel %vm1970, %v1596, 0.0
        %2386 = vadd.xlane.f32.xlu0 %v2385
        %v2387 = vpop.xlane.xlu0 %2386
        %v2388 = vsel %vm1970, %v1597, 0.0
        %2389 = vadd.xlane.f32.xlu0 %v2388
        %v2390 = vpop.xlane.xlu0 %2389
        %v2391 = vsel %vm1970, %v1598, 0.0
        %2392 = vadd.xlane.f32.xlu0 %v2391
        %v2393 = vpop.xlane.xlu0 %2392
        %v2394 = vsel %vm1970, %v1599, 0.0
        %2395 = vadd.xlane.f32.xlu0 %v2394
        %v2396 = vpop.xlane.xlu0 %2395
        %v2397 = vsel %vm1970, %v1600, 0.0
        %2398 = vadd.xlane.f32.xlu0 %v2397
        %v2399 = vpop.xlane.xlu0 %2398
        %v2400 = vsel %vm1970, %v1601, 0.0
        %2401 = vadd.xlane.f32.xlu0 %v2400
        %v2402 = vpop.xlane.xlu0 %2401
        %v2403 = vsel %vm1970, %v1602, 0.0
        %2404 = vadd.xlane.f32.xlu0 %v2403
        %v2405 = vpop.xlane.xlu0 %2404
        %v2406 = vsel %vm1970, %v1603, 0.0
        %2407 = vadd.xlane.f32.xlu0 %v2406
        %v2408 = vpop.xlane.xlu0 %2407
        %v2409 = vsel %vm1970, %v1604, 0.0
        %2410 = vadd.xlane.f32.xlu0 %v2409
        %v2411 = vpop.xlane.xlu0 %2410
        %v2412 = vsel %vm1970, %v1605, 0.0
        %2413 = vadd.xlane.f32.xlu0 %v2412
        %v2414 = vpop.xlane.xlu0 %2413
        %v2415 = vsel %vm1970, %v1606, 0.0
        %2416 = vadd.xlane.f32.xlu0 %v2415
        %v2417 = vpop.xlane.xlu0 %2416
        %v2418 = vsel %vm1970, %v1607, 0.0
        %2419 = vadd.xlane.f32.xlu0 %v2418
        %v2420 = vpop.xlane.xlu0 %2419
        %v2421 = vsel %vm1970, %v1608, 0.0
        %2422 = vadd.xlane.f32.xlu0 %v2421
        %v2423 = vpop.xlane.xlu0 %2422
        %v2424 = vsel %vm1970, %v1609, 0.0
        %2425 = vadd.xlane.f32.xlu0 %v2424
        %v2426 = vpop.xlane.xlu0 %2425
        %v2427 = vsel %vm1970, %v1610, 0.0
        %2428 = vadd.xlane.f32.xlu0 %v2427
        %v2429 = vpop.xlane.xlu0 %2428
        %v2430 = vsel %vm1970, %v1611, 0.0
        %2431 = vadd.xlane.f32.xlu0 %v2430
        %v2432 = vpop.xlane.xlu0 %2431
        %v2433 = vsel %vm1970, %v1612, 0.0
        %2434 = vadd.xlane.f32.xlu0 %v2433
        %v2435 = vpop.xlane.xlu0 %2434
        %v2436 = vsel %vm1970, %v1613, 0.0
        %2437 = vadd.xlane.f32.xlu0 %v2436
        %v2438 = vpop.xlane.xlu0 %2437
        %v2439 = vsel %vm1970, %v1614, 0.0
        %2440 = vadd.xlane.f32.xlu0 %v2439
        %v2441 = vpop.xlane.xlu0 %2440
        %v2442 = vsel %vm1970, %v1615, 0.0
        %2443 = vadd.xlane.f32.xlu0 %v2442
        %v2444 = vpop.xlane.xlu0 %2443
        %v2445 = vsel %vm1970, %v1616, 0.0
        %2446 = vadd.xlane.f32.xlu0 %v2445
        %v2447 = vpop.xlane.xlu0 %2446
        %v2448 = vsel %vm1970, %v1617, 0.0
        %2449 = vadd.xlane.f32.xlu0 %v2448
        %v2450 = vpop.xlane.xlu0 %2449
        %v2451 = vsel %vm1970, %v1618, 0.0
        %2452 = vadd.xlane.f32.xlu0 %v2451
        %v2453 = vpop.xlane.xlu0 %2452
        %v2454 = vsel %vm1970, %v1619, 0.0
        %2455 = vadd.xlane.f32.xlu0 %v2454
        %v2456 = vpop.xlane.xlu0 %2455
        %v2457 = vsel %vm1970, %v1620, 0.0
        %2458 = vadd.xlane.f32.xlu0 %v2457
        %v2459 = vpop.xlane.xlu0 %2458
        %v2460 = vsel %vm1970, %v1621, 0.0
        %2461 = vadd.xlane.f32.xlu0 %v2460
        %v2462 = vpop.xlane.xlu0 %2461
        %v2463 = vsel %vm1970, %v1622, 0.0
        %2464 = vadd.xlane.f32.xlu0 %v2463
        %v2465 = vpop.xlane.xlu0 %2464
        %v2466 = vsel %vm1970, %v1623, 0.0
        %2467 = vadd.xlane.f32.xlu0 %v2466
        %v2468 = vpop.xlane.xlu0 %2467
        %v2469 = vsel %vm1970, %v1624, 0.0
        %2470 = vadd.xlane.f32.xlu0 %v2469
        %v2471 = vpop.xlane.xlu0 %2470
        %v2472 = vsel %vm1970, %v1625, 0.0
        %2473 = vadd.xlane.f32.xlu0 %v2472
        %v2474 = vpop.xlane.xlu0 %2473
        %v2475 = vsel %vm1970, %v1626, 0.0
        %2476 = vadd.xlane.f32.xlu0 %v2475
        %v2477 = vpop.xlane.xlu0 %2476
        %v2478 = vsel %vm1970, %v1627, 0.0
        %2479 = vadd.xlane.f32.xlu0 %v2478
        %v2480 = vpop.xlane.xlu0 %2479
        %v2481 = vsel %vm1970, %v1628, 0.0
        %2482 = vadd.xlane.f32.xlu0 %v2481
        %v2483 = vpop.xlane.xlu0 %2482
        %v2484 = vsel %vm1970, %v1629, 0.0
        %2485 = vadd.xlane.f32.xlu0 %v2484
        %v2486 = vpop.xlane.xlu0 %2485
        %v2487 = vsel %vm1970, %v1630, 0.0
        %2488 = vadd.xlane.f32.xlu0 %v2487
        %v2489 = vpop.xlane.xlu0 %2488
        %v2490 = vsel %vm1970, %v1631, 0.0
        %2491 = vadd.xlane.f32.xlu0 %v2490
        %v2492 = vpop.xlane.xlu0 %2491
        %v2493 = vsel %vm1970, %v1632, 0.0
        %2494 = vadd.xlane.f32.xlu0 %v2493
        %v2495 = vpop.xlane.xlu0 %2494
        %v2496 = vsel %vm1970, %v1633, 0.0
        %2497 = vadd.xlane.f32.xlu0 %v2496
        %v2498 = vpop.xlane.xlu0 %2497
        %v2499 = vsel %vm1970, %v1634, 0.0
        %2500 = vadd.xlane.f32.xlu0 %v2499
        %v2501 = vpop.xlane.xlu0 %2500
        %v2502 = vsel %vm1970, %v1635, 0.0
        %2503 = vadd.xlane.f32.xlu0 %v2502
        %v2504 = vpop.xlane.xlu0 %2503
        %v2505 = vsel %vm1970, %v1636, 0.0
        %2506 = vadd.xlane.f32.xlu0 %v2505
        %v2507 = vpop.xlane.xlu0 %2506
        %v2508 = vsel %vm1970, %v1637, 0.0
        %2509 = vadd.xlane.f32.xlu0 %v2508
        %v2510 = vpop.xlane.xlu0 %2509
        %v2511 = vsel %vm1970, %v1638, 0.0
        %2512 = vadd.xlane.f32.xlu0 %v2511
        %v2513 = vpop.xlane.xlu0 %2512
        %v2514 = vsel %vm1970, %v1639, 0.0
        %2515 = vadd.xlane.f32.xlu0 %v2514
        %v2516 = vpop.xlane.xlu0 %2515
        %v2517 = vsel %vm1970, %v1640, 0.0
        %2518 = vadd.xlane.f32.xlu0 %v2517
        %v2519 = vpop.xlane.xlu0 %2518
        %v2520 = vsel %vm1970, %v1641, 0.0
        %2521 = vadd.xlane.f32.xlu0 %v2520
        %v2522 = vpop.xlane.xlu0 %2521
        %v2523 = vsel %vm1970, %v1642, 0.0
        %2524 = vadd.xlane.f32.xlu0 %v2523
        %v2525 = vpop.xlane.xlu0 %2524
        %v2526 = vsel %vm1970, %v1643, 0.0
        %2527 = vadd.xlane.f32.xlu0 %v2526
        %v2528 = vpop.xlane.xlu0 %2527
        %v2529 = vsel %vm1970, %v1644, 0.0
        %2530 = vadd.xlane.f32.xlu0 %v2529
        %v2531 = vpop.xlane.xlu0 %2530
        %v2532 = vsel %vm1970, %v1645, 0.0
        %2533 = vadd.xlane.f32.xlu0 %v2532
        %v2534 = vpop.xlane.xlu0 %2533
        %v2535 = vsel %vm1970, %v1646, 0.0
        %2536 = vadd.xlane.f32.xlu0 %v2535
        %v2537 = vpop.xlane.xlu0 %2536
        %v2538 = vsel %vm1970, %v1647, 0.0
        %2539 = vadd.xlane.f32.xlu0 %v2538
        %v2540 = vpop.xlane.xlu0 %2539
        %v2541 = vsel %vm1970, %v1648, 0.0
        %2542 = vadd.xlane.f32.xlu0 %v2541
        %v2543 = vpop.xlane.xlu0 %2542
        %v2544 = vsel %vm1970, %v1649, 0.0
        %2545 = vadd.xlane.f32.xlu0 %v2544
        %v2546 = vpop.xlane.xlu0 %2545
        %v2547 = vsel %vm1970, %v1650, 0.0
        %2548 = vadd.xlane.f32.xlu0 %v2547
        %v2549 = vpop.xlane.xlu0 %2548
        %v2550 = vsel %vm1970, %v1651, 0.0
        %2551 = vadd.xlane.f32.xlu0 %v2550
        %v2552 = vpop.xlane.xlu0 %2551
        %v2553 = vsel %vm1970, %v1652, 0.0
        %2554 = vadd.xlane.f32.xlu0 %v2553
        %v2555 = vpop.xlane.xlu0 %2554
        %v2556 = vsel %vm1970, %v1653, 0.0
        %2557 = vadd.xlane.f32.xlu0 %v2556
        %v2558 = vpop.xlane.xlu0 %2557
        %v2559 = vsel %vm1970, %v1654, 0.0
        %2560 = vadd.xlane.f32.xlu0 %v2559
        %v2561 = vpop.xlane.xlu0 %2560
        %v2562 = vsel %vm1970, %v1655, 0.0
        %2563 = vadd.xlane.f32.xlu0 %v2562
        %v2564 = vpop.xlane.xlu0 %2563
        %v2565 = vsel %vm1970, %v1656, 0.0
        %2566 = vadd.xlane.f32.xlu0 %v2565
        %v2567 = vpop.xlane.xlu0 %2566
        %v2568 = vsel %vm1970, %v1657, 0.0
        %2569 = vadd.xlane.f32.xlu0 %v2568
        %v2570 = vpop.xlane.xlu0 %2569
        %v2571 = vsel %vm1970, %v1658, 0.0
        %2572 = vadd.xlane.f32.xlu0 %v2571
        %v2573 = vpop.xlane.xlu0 %2572
        %v2574 = vsel %vm1970, %v1659, 0.0
        %2575 = vadd.xlane.f32.xlu0 %v2574
        %v2576 = vpop.xlane.xlu0 %2575
        %v2577 = vsel %vm1970, %v1660, 0.0
        %2578 = vadd.xlane.f32.xlu0 %v2577
        %v2579 = vpop.xlane.xlu0 %2578
        %v2580 = vsel %vm1970, %v1661, 0.0
        %2581 = vadd.xlane.f32.xlu0 %v2580
        %v2582 = vpop.xlane.xlu0 %2581
        %v2583 = vsel %vm1970, %v1662, 0.0
        %2584 = vadd.xlane.f32.xlu0 %v2583
        %v2585 = vpop.xlane.xlu0 %2584
        %v2586 = vsel %vm1970, %v1663, 0.0
        %2587 = vadd.xlane.f32.xlu0 %v2586
        %v2588 = vpop.xlane.xlu0 %2587
        %v2589 = vsel %vm1970, %v1664, 0.0
        %2590 = vadd.xlane.f32.xlu0 %v2589
        %v2591 = vpop.xlane.xlu0 %2590
        %v2592 = vsel %vm1970, %v1665, 0.0
        %2593 = vadd.xlane.f32.xlu0 %v2592
        %v2594 = vpop.xlane.xlu0 %2593
        %v2595 = vsel %vm1970, %v1666, 0.0
        %2596 = vadd.xlane.f32.xlu0 %v2595
        %v2597 = vpop.xlane.xlu0 %2596
        %v2598 = vsel %vm1970, %v1667, 0.0
        %2599 = vadd.xlane.f32.xlu0 %v2598
        %v2600 = vpop.xlane.xlu0 %2599
        %v2601 = vsel %vm1970, %v1668, 0.0
        %2602 = vadd.xlane.f32.xlu0 %v2601
        %v2603 = vpop.xlane.xlu0 %2602
        %v2604 = vsel %vm1970, %v1669, 0.0
        %2605 = vadd.xlane.f32.xlu0 %v2604
        %v2606 = vpop.xlane.xlu0 %2605
        %v2607 = vsel %vm1970, %v1670, 0.0
        %2608 = vadd.xlane.f32.xlu0 %v2607
        %v2609 = vpop.xlane.xlu0 %2608
        %v2610 = vsel %vm1970, %v1671, 0.0
        %2611 = vadd.xlane.f32.xlu0 %v2610
        %v2612 = vpop.xlane.xlu0 %2611
        %v2613 = vsel %vm1970, %v1672, 0.0
        %2614 = vadd.xlane.f32.xlu0 %v2613
        %v2615 = vpop.xlane.xlu0 %2614
        %v2616 = vsel %vm1970, %v1673, 0.0
        %2617 = vadd.xlane.f32.xlu0 %v2616
        %v2618 = vpop.xlane.xlu0 %2617
        %v2619 = vsel %vm1970, %v1674, 0.0
        %2620 = vadd.xlane.f32.xlu0 %v2619
        %v2621 = vpop.xlane.xlu0 %2620
        %v2622 = vsel %vm1970, %v1675, 0.0
        %2623 = vadd.xlane.f32.xlu0 %v2622
        %v2624 = vpop.xlane.xlu0 %2623
        %v2625 = vsel %vm1970, %v1676, 0.0
        %2626 = vadd.xlane.f32.xlu0 %v2625
        %v2627 = vpop.xlane.xlu0 %2626
        %v2628 = vsel %vm1970, %v1677, 0.0
        %2629 = vadd.xlane.f32.xlu0 %v2628
        %v2630 = vpop.xlane.xlu0 %2629
        %v2631 = vsel %vm1970, %v1678, 0.0
        %2632 = vadd.xlane.f32.xlu0 %v2631
        %v2633 = vpop.xlane.xlu0 %2632
        %v2634 = vsel %vm1970, %v1679, 0.0
        %2635 = vadd.xlane.f32.xlu0 %v2634
        %v2636 = vpop.xlane.xlu0 %2635
        %v2637 = vsel %vm1970, %v1680, 0.0
        %2638 = vadd.xlane.f32.xlu0 %v2637
        %v2639 = vpop.xlane.xlu0 %2638
        %v2640 = vsel %vm1970, %v1681, 0.0
        %2641 = vadd.xlane.f32.xlu0 %v2640
        %v2642 = vpop.xlane.xlu0 %2641
        %v2643 = vsel %vm1970, %v1682, 0.0
        %2644 = vadd.xlane.f32.xlu0 %v2643
        %v2645 = vpop.xlane.xlu0 %2644
        %v2646 = vsel %vm1970, %v1683, 0.0
        %2647 = vadd.xlane.f32.xlu0 %v2646
        %v2648 = vpop.xlane.xlu0 %2647
        %v2649 = vsel %vm1970, %v1684, 0.0
        %2650 = vadd.xlane.f32.xlu0 %v2649
        %v2651 = vpop.xlane.xlu0 %2650
        %v2652 = vsel %vm1970, %v1685, 0.0
        %2653 = vadd.xlane.f32.xlu0 %v2652
        %v2654 = vpop.xlane.xlu0 %2653
        %v2655 = vsel %vm1970, %v1686, 0.0
        %2656 = vadd.xlane.f32.xlu0 %v2655
        %v2657 = vpop.xlane.xlu0 %2656
        %v2658 = vsel %vm1970, %v1687, 0.0
        %2659 = vadd.xlane.f32.xlu0 %v2658
        %v2660 = vpop.xlane.xlu0 %2659
        %v2661 = vsel %vm1970, %v1688, 0.0
        %2662 = vadd.xlane.f32.xlu0 %v2661
        %v2663 = vpop.xlane.xlu0 %2662
        %v2664 = vsel %vm1970, %v1689, 0.0
        %2665 = vadd.xlane.f32.xlu0 %v2664
        %v2666 = vpop.xlane.xlu0 %2665
        %v2667 = vsel %vm1970, %v1690, 0.0
        %2668 = vadd.xlane.f32.xlu0 %v2667
        %v2669 = vpop.xlane.xlu0 %2668
        %v2670 = vsel %vm1970, %v1691, 0.0
        %2671 = vadd.xlane.f32.xlu0 %v2670
        %v2672 = vpop.xlane.xlu0 %2671
        %v2673 = vsel %vm1970, %v1692, 0.0
        %2674 = vadd.xlane.f32.xlu0 %v2673
        %v2675 = vpop.xlane.xlu0 %2674
        %v2676 = vsel %vm1970, %v1693, 0.0
        %2677 = vadd.xlane.f32.xlu0 %v2676
        %v2678 = vpop.xlane.xlu0 %2677
        %v2679 = vsel %vm1970, %v1694, 0.0
        %2680 = vadd.xlane.f32.xlu0 %v2679
        %v2681 = vpop.xlane.xlu0 %2680
        %v2682 = vsel %vm1970, %v1695, 0.0
        %2683 = vadd.xlane.f32.xlu0 %v2682
        %v2684 = vpop.xlane.xlu0 %2683
        %v2685 = vsel %vm1970, %v1696, 0.0
        %2686 = vadd.xlane.f32.xlu0 %v2685
        %v2687 = vpop.xlane.xlu0 %2686
        %v2688 = vsel %vm1970, %v1697, 0.0
        %2689 = vadd.xlane.f32.xlu0 %v2688
        %v2690 = vpop.xlane.xlu0 %2689
        %v2691 = vsel %vm1970, %v1698, 0.0
        %2692 = vadd.xlane.f32.xlu0 %v2691
        %v2693 = vpop.xlane.xlu0 %2692
        %v2694 = vsel %vm1970, %v1699, 0.0
        %2695 = vadd.xlane.f32.xlu0 %v2694
        %v2696 = vpop.xlane.xlu0 %2695
        %v2697 = vsel %vm1970, %v1700, 0.0
        %2698 = vadd.xlane.f32.xlu0 %v2697
        %v2699 = vpop.xlane.xlu0 %2698
        %v2700 = vsel %vm1970, %v1701, 0.0
        %2701 = vadd.xlane.f32.xlu0 %v2700
        %v2702 = vpop.xlane.xlu0 %2701
        %v2703 = vsel %vm1970, %v1702, 0.0
        %2704 = vadd.xlane.f32.xlu0 %v2703
        %v2705 = vpop.xlane.xlu0 %2704
        %v2706 = vsel %vm1970, %v1703, 0.0
        %2707 = vadd.xlane.f32.xlu0 %v2706
        %v2708 = vpop.xlane.xlu0 %2707
        %v2709 = vsel %vm1970, %v1704, 0.0
        %2710 = vadd.xlane.f32.xlu0 %v2709
        %v2711 = vpop.xlane.xlu0 %2710
        %v2712 = vsel %vm1970, %v1705, 0.0
        %2713 = vadd.xlane.f32.xlu0 %v2712
        %v2714 = vpop.xlane.xlu0 %2713
        %v2715 = vsel %vm1970, %v1706, 0.0
        %2716 = vadd.xlane.f32.xlu0 %v2715
        %v2717 = vpop.xlane.xlu0 %2716
        %v2718 = vsel %vm1970, %v1707, 0.0
        %2719 = vadd.xlane.f32.xlu0 %v2718
        %v2720 = vpop.xlane.xlu0 %2719
        %v2721 = vsel %vm1970, %v1708, 0.0
        %2722 = vadd.xlane.f32.xlu0 %v2721
        %v2723 = vpop.xlane.xlu0 %2722
        %v2724 = vsel %vm1970, %v1709, 0.0
        %2725 = vadd.xlane.f32.xlu0 %v2724
        %v2726 = vpop.xlane.xlu0 %2725
        %v2727 = vsel %vm1970, %v1710, 0.0
        %2728 = vadd.xlane.f32.xlu0 %v2727
        %v2729 = vpop.xlane.xlu0 %2728
        %v2730 = vsel %vm1970, %v1711, 0.0
        %2731 = vadd.xlane.f32.xlu0 %v2730
        %v2732 = vpop.xlane.xlu0 %2731
        %v2733 = vsel %vm1970, %v1712, 0.0
        %2734 = vadd.xlane.f32.xlu0 %v2733
        %v2735 = vpop.xlane.xlu0 %2734
        %v2736 = vsel %vm1970, %v1713, 0.0
        %2737 = vadd.xlane.f32.xlu0 %v2736
        %v2738 = vpop.xlane.xlu0 %2737
        %v2739 = vsel %vm1970, %v1714, 0.0
        %2740 = vadd.xlane.f32.xlu0 %v2739
        %v2741 = vpop.xlane.xlu0 %2740
        %v2742 = vsel %vm1970, %v1715, 0.0
        %2743 = vadd.xlane.f32.xlu0 %v2742
        %v2744 = vpop.xlane.xlu0 %2743
        %v2745 = vsel %vm1970, %v1716, 0.0
        %2746 = vadd.xlane.f32.xlu0 %v2745
        %v2747 = vpop.xlane.xlu0 %2746
        %v2748 = vsel %vm1970, %v1717, 0.0
        %2749 = vadd.xlane.f32.xlu0 %v2748
        %v2750 = vpop.xlane.xlu0 %2749
        %v2751 = vsel %vm1970, %v1718, 0.0
        %2752 = vadd.xlane.f32.xlu0 %v2751
        %v2753 = vpop.xlane.xlu0 %2752
        %v2754 = vsel %vm1970, %v1719, 0.0
        %2755 = vadd.xlane.f32.xlu0 %v2754
        %v2756 = vpop.xlane.xlu0 %2755
        %v2757 = vsel %vm1970, %v1720, 0.0
        %2758 = vadd.xlane.f32.xlu0 %v2757
        %v2759 = vpop.xlane.xlu0 %2758
        %v2760 = vsel %vm1970, %v1721, 0.0
        %2761 = vadd.xlane.f32.xlu0 %v2760
        %v2762 = vpop.xlane.xlu0 %2761
        %v2763 = vsel %vm1970, %v1722, 0.0
        %2764 = vadd.xlane.f32.xlu0 %v2763
        %v2765 = vpop.xlane.xlu0 %2764
        %v2766 = vsel %vm1970, %v1723, 0.0
        %2767 = vadd.xlane.f32.xlu0 %v2766
        %v2768 = vpop.xlane.xlu0 %2767
        %v2769 = vsel %vm1970, %v1724, 0.0
        %2770 = vadd.xlane.f32.xlu0 %v2769
        %v2771 = vpop.xlane.xlu0 %2770
        %v2772 = vsel %vm1970, %v1725, 0.0
        %2773 = vadd.xlane.f32.xlu0 %v2772
        %v2774 = vpop.xlane.xlu0 %2773
        %v2775 = vsel %vm1970, %v1726, 0.0
        %2776 = vadd.xlane.f32.xlu0 %v2775
        %v2777 = vpop.xlane.xlu0 %2776
        %v2778 = vsel %vm1970, %v1727, 0.0
        %2779 = vadd.xlane.f32.xlu0 %v2778
        %v2780 = vpop.xlane.xlu0 %2779
        %v2781 = vsel %vm1970, %v1728, 0.0
        %2782 = vadd.xlane.f32.xlu0 %v2781
        %v2783 = vpop.xlane.xlu0 %2782
        %v2784 = vsel %vm1970, %v1729, 0.0
        %2785 = vadd.xlane.f32.xlu0 %v2784
        %v2786 = vpop.xlane.xlu0 %2785
        %v2787 = vsel %vm1970, %v1730, 0.0
        %2788 = vadd.xlane.f32.xlu0 %v2787
        %v2789 = vpop.xlane.xlu0 %2788
        %v2790 = vsel %vm1970, %v1731, 0.0
        %2791 = vadd.xlane.f32.xlu0 %v2790
        %v2792 = vpop.xlane.xlu0 %2791
        %v2793 = vsel %vm1970, %v1732, 0.0
        %2794 = vadd.xlane.f32.xlu0 %v2793
        %v2795 = vpop.xlane.xlu0 %2794
        %v2796 = vsel %vm1970, %v1733, 0.0
        %2797 = vadd.xlane.f32.xlu0 %v2796
        %v2798 = vpop.xlane.xlu0 %2797
        %v2799 = vsel %vm1970, %v1734, 0.0
        %2800 = vadd.xlane.f32.xlu0 %v2799
        %v2801 = vpop.xlane.xlu0 %2800
        %v2802 = vsel %vm1970, %v1735, 0.0
        %2803 = vadd.xlane.f32.xlu0 %v2802
        %v2804 = vpop.xlane.xlu0 %2803
        %v2805 = vsel %vm1970, %v1736, 0.0
        %2806 = vadd.xlane.f32.xlu0 %v2805
        %v2807 = vpop.xlane.xlu0 %2806
        %v2808 = vsel %vm1970, %v1737, 0.0
        %2809 = vadd.xlane.f32.xlu0 %v2808
        %v2810 = vpop.xlane.xlu0 %2809
        %v2811 = vsel %vm1970, %v1738, 0.0
        %2812 = vadd.xlane.f32.xlu0 %v2811
        %v2813 = vpop.xlane.xlu0 %2812
        %v2814 = vsel %vm1970, %v1739, 0.0
        %2815 = vadd.xlane.f32.xlu0 %v2814
        %v2816 = vpop.xlane.xlu0 %2815
        %v2817 = vsel %vm1970, %v1740, 0.0
        %2818 = vadd.xlane.f32.xlu0 %v2817
        %v2819 = vpop.xlane.xlu0 %2818
        %v2820 = vsel %vm1970, %v1741, 0.0
        %2821 = vadd.xlane.f32.xlu0 %v2820
        %v2822 = vpop.xlane.xlu0 %2821
        %v2823 = vsel %vm1970, %v1742, 0.0
        %2824 = vadd.xlane.f32.xlu0 %v2823
        %v2825 = vpop.xlane.xlu0 %2824
        %v2826 = vsel %vm1970, %v1743, 0.0
        %2827 = vadd.xlane.f32.xlu0 %v2826
        %v2828 = vpop.xlane.xlu0 %2827
        %v2829 = vsel %vm1970, %v1744, 0.0
        %2830 = vadd.xlane.f32.xlu0 %v2829
        %v2831 = vpop.xlane.xlu0 %2830
        %v2832 = vsel %vm1970, %v1745, 0.0
        %2833 = vadd.xlane.f32.xlu0 %v2832
        %v2834 = vpop.xlane.xlu0 %2833
        %v2835 = vsel %vm1970, %v1746, 0.0
        %2836 = vadd.xlane.f32.xlu0 %v2835
        %v2837 = vpop.xlane.xlu0 %2836
        %v2838 = vsel %vm1970, %v1747, 0.0
        %2839 = vadd.xlane.f32.xlu0 %v2838
        %v2840 = vpop.xlane.xlu0 %2839
        %v2841 = vsel %vm1970, %v1748, 0.0
        %2842 = vadd.xlane.f32.xlu0 %v2841
        %v2843 = vpop.xlane.xlu0 %2842
        %v2844 = vsel %vm1970, %v1749, 0.0
        %2845 = vadd.xlane.f32.xlu0 %v2844
        %v2846 = vpop.xlane.xlu0 %2845
        %v2847 = vsel %vm1970, %v1750, 0.0
        %2848 = vadd.xlane.f32.xlu0 %v2847
        %v2849 = vpop.xlane.xlu0 %2848
        %v2850 = vsel %vm1970, %v1751, 0.0
        %2851 = vadd.xlane.f32.xlu0 %v2850
        %v2852 = vpop.xlane.xlu0 %2851
        %v2853 = vsel %vm1970, %v1752, 0.0
        %2854 = vadd.xlane.f32.xlu0 %v2853
        %v2855 = vpop.xlane.xlu0 %2854
        %v2856 = vsel %vm1970, %v1753, 0.0
        %2857 = vadd.xlane.f32.xlu0 %v2856
        %v2858 = vpop.xlane.xlu0 %2857
        %v2859 = vsel %vm1970, %v1754, 0.0
        %2860 = vadd.xlane.f32.xlu0 %v2859
        %v2861 = vpop.xlane.xlu0 %2860
        %v2862 = vsel %vm1970, %v1755, 0.0
        %2863 = vadd.xlane.f32.xlu0 %v2862
        %v2864 = vpop.xlane.xlu0 %2863
        %v2865 = vsel %vm1970, %v1756, 0.0
        %2866 = vadd.xlane.f32.xlu0 %v2865
        %v2867 = vpop.xlane.xlu0 %2866
        %v2868 = vsel %vm1970, %v1757, 0.0
        %2869 = vadd.xlane.f32.xlu0 %v2868
        %v2870 = vpop.xlane.xlu0 %2869
        %v2871 = vsel %vm1970, %v1758, 0.0
        %2872 = vadd.xlane.f32.xlu0 %v2871
        %v2873 = vpop.xlane.xlu0 %2872
        %v2874 = vsel %vm1970, %v1759, 0.0
        %2875 = vadd.xlane.f32.xlu0 %v2874
        %v2876 = vpop.xlane.xlu0 %2875
        %v2877 = vsel %vm1970, %v1760, 0.0
        %2878 = vadd.xlane.f32.xlu0 %v2877
        %v2879 = vpop.xlane.xlu0 %2878
        %v2880 = vsel %vm1970, %v1761, 0.0
        %2881 = vadd.xlane.f32.xlu0 %v2880
        %v2882 = vpop.xlane.xlu0 %2881
        %v2883 = vsel %vm1970, %v1762, 0.0
        %2884 = vadd.xlane.f32.xlu0 %v2883
        %v2885 = vpop.xlane.xlu0 %2884
        %v2886 = vsel %vm1970, %v1763, 0.0
        %2887 = vadd.xlane.f32.xlu0 %v2886
        %v2888 = vpop.xlane.xlu0 %2887
        %v2889 = vsel %vm1970, %v1764, 0.0
        %2890 = vadd.xlane.f32.xlu0 %v2889
        %v2891 = vpop.xlane.xlu0 %2890
        %v2892 = vsel %vm1970, %v1765, 0.0
        %2893 = vadd.xlane.f32.xlu0 %v2892
        %v2894 = vpop.xlane.xlu0 %2893
        %v2895 = vsel %vm1970, %v1766, 0.0
        %2896 = vadd.xlane.f32.xlu0 %v2895
        %v2897 = vpop.xlane.xlu0 %2896
        %v2898 = vsel %vm1970, %v1767, 0.0
        %2899 = vadd.xlane.f32.xlu0 %v2898
        %v2900 = vpop.xlane.xlu0 %2899
        %v2901 = vsel %vm1970, %v1768, 0.0
        %2902 = vadd.xlane.f32.xlu0 %v2901
        %v2903 = vpop.xlane.xlu0 %2902
        %v2904 = vsel %vm1970, %v1769, 0.0
        %2905 = vadd.xlane.f32.xlu0 %v2904
        %v2906 = vpop.xlane.xlu0 %2905
        %v2907 = vsel %vm1970, %v1770, 0.0
        %2908 = vadd.xlane.f32.xlu0 %v2907
        %v2909 = vpop.xlane.xlu0 %2908
        %v2910 = vsel %vm1970, %v1771, 0.0
        %2911 = vadd.xlane.f32.xlu0 %v2910
        %v2912 = vpop.xlane.xlu0 %2911
        %v2913 = vsel %vm1970, %v1772, 0.0
        %2914 = vadd.xlane.f32.xlu0 %v2913
        %v2915 = vpop.xlane.xlu0 %2914
        %v2916 = vsel %vm1970, %v1773, 0.0
        %2917 = vadd.xlane.f32.xlu0 %v2916
        %v2918 = vpop.xlane.xlu0 %2917
        %v2919 = vsel %vm1970, %v1774, 0.0
        %2920 = vadd.xlane.f32.xlu0 %v2919
        %v2921 = vpop.xlane.xlu0 %2920
        %v2922 = vsel %vm1970, %v1775, 0.0
        %2923 = vadd.xlane.f32.xlu0 %v2922
        %v2924 = vpop.xlane.xlu0 %2923
        %v2925 = vsel %vm1970, %v1776, 0.0
        %2926 = vadd.xlane.f32.xlu0 %v2925
        %v2927 = vpop.xlane.xlu0 %2926
        %v2928 = vsel %vm1970, %v1777, 0.0
        %2929 = vadd.xlane.f32.xlu0 %v2928
        %v2930 = vpop.xlane.xlu0 %2929
        %v2931 = vsel %vm1970, %v1778, 0.0
        %2932 = vadd.xlane.f32.xlu0 %v2931
        %v2933 = vpop.xlane.xlu0 %2932
        %v2934 = vsel %vm1970, %v1779, 0.0
        %2935 = vadd.xlane.f32.xlu0 %v2934
        %v2936 = vpop.xlane.xlu0 %2935
        %v2937 = vsel %vm1970, %v1780, 0.0
        %2938 = vadd.xlane.f32.xlu0 %v2937
        %v2939 = vpop.xlane.xlu0 %2938
        %v2940 = vsel %vm1970, %v1781, 0.0
        %2941 = vadd.xlane.f32.xlu0 %v2940
        %v2942 = vpop.xlane.xlu0 %2941
        %v2943 = vsel %vm1970, %v1782, 0.0
        %2944 = vadd.xlane.f32.xlu0 %v2943
        %v2945 = vpop.xlane.xlu0 %2944
        %v2946 = vsel %vm1970, %v1783, 0.0
        %2947 = vadd.xlane.f32.xlu0 %v2946
        %v2948 = vpop.xlane.xlu0 %2947
        %v2949 = vsel %vm1970, %v1784, 0.0
        %2950 = vadd.xlane.f32.xlu0 %v2949
        %v2951 = vpop.xlane.xlu0 %2950
        %v2952 = vsel %vm1970, %v1785, 0.0
        %2953 = vadd.xlane.f32.xlu0 %v2952
        %v2954 = vpop.xlane.xlu0 %2953
        %v2955 = vsel %vm1970, %v1786, 0.0
        %2956 = vadd.xlane.f32.xlu0 %v2955
        %v2957 = vpop.xlane.xlu0 %2956
        %v2958 = vsel %vm1970, %v1787, 0.0
        %2959 = vadd.xlane.f32.xlu0 %v2958
        %v2960 = vpop.xlane.xlu0 %2959
        %v2961 = vsel %vm1970, %v1788, 0.0
        %2962 = vadd.xlane.f32.xlu0 %v2961
        %v2963 = vpop.xlane.xlu0 %2962
        %v2964 = vsel %vm1970, %v1789, 0.0
        %2965 = vadd.xlane.f32.xlu0 %v2964
        %v2966 = vpop.xlane.xlu0 %2965
        %v2967 = vsel %vm1970, %v1790, 0.0
        %2968 = vadd.xlane.f32.xlu0 %v2967
        %v2969 = vpop.xlane.xlu0 %2968
        %v2970 = vsel %vm1970, %v1791, 0.0
        %2971 = vadd.xlane.f32.xlu0 %v2970
        %v2972 = vpop.xlane.xlu0 %2971
        %v2973 = vsel %vm1970, %v1792, 0.0
        %2974 = vadd.xlane.f32.xlu0 %v2973
        %v2975 = vpop.xlane.xlu0 %2974
        %v2976 = vsel %vm1970, %v1793, 0.0
        %2977 = vadd.xlane.f32.xlu0 %v2976
        %v2978 = vpop.xlane.xlu0 %2977
        %v2979 = vsel %vm1970, %v1794, 0.0
        %2980 = vadd.xlane.f32.xlu0 %v2979
        %v2981 = vpop.xlane.xlu0 %2980
        %v2982 = vsel %vm1970, %v1795, 0.0
        %2983 = vadd.xlane.f32.xlu0 %v2982
        %v2984 = vpop.xlane.xlu0 %2983
        %v2985 = vsel %vm1970, %v1796, 0.0
        %2986 = vadd.xlane.f32.xlu0 %v2985
        %v2987 = vpop.xlane.xlu0 %2986
        %v2988 = vsel %vm1970, %v1797, 0.0
        %2989 = vadd.xlane.f32.xlu0 %v2988
        %v2990 = vpop.xlane.xlu0 %2989
        %v2991 = vsel %vm1970, %v1798, 0.0
        %2992 = vadd.xlane.f32.xlu0 %v2991
        %v2993 = vpop.xlane.xlu0 %2992
        %v2994 = vsel %vm1970, %v1799, 0.0
        %2995 = vadd.xlane.f32.xlu0 %v2994
        %v2996 = vpop.xlane.xlu0 %2995
        %v2997 = vsel %vm1970, %v1800, 0.0
        %2998 = vadd.xlane.f32.xlu0 %v2997
        %v2999 = vpop.xlane.xlu0 %2998
        %v3000 = vsel %vm1970, %v1801, 0.0
        %3001 = vadd.xlane.f32.xlu0 %v3000
        %v3002 = vpop.xlane.xlu0 %3001
        %v3003 = vsel %vm1970, %v1802, 0.0
        %3004 = vadd.xlane.f32.xlu0 %v3003
        %v3005 = vpop.xlane.xlu0 %3004
        %v3006 = vsel %vm1970, %v1803, 0.0
        %3007 = vadd.xlane.f32.xlu0 %v3006
        %v3008 = vpop.xlane.xlu0 %3007
        %v3009 = vsel %vm1970, %v1804, 0.0
        %3010 = vadd.xlane.f32.xlu0 %v3009
        %v3011 = vpop.xlane.xlu0 %3010
        %v3012 = vsel %vm1970, %v1805, 0.0
        %3013 = vadd.xlane.f32.xlu0 %v3012
        %v3014 = vpop.xlane.xlu0 %3013
        %v3015 = vsel %vm1970, %v1806, 0.0
        %3016 = vadd.xlane.f32.xlu0 %v3015
        %v3017 = vpop.xlane.xlu0 %3016
        %v3018 = vsel %vm1970, %v1807, 0.0
        %3019 = vadd.xlane.f32.xlu0 %v3018
        %v3020 = vpop.xlane.xlu0 %3019
        %v3021 = vsel %vm1970, %v1808, 0.0
        %3022 = vadd.xlane.f32.xlu0 %v3021
        %v3023 = vpop.xlane.xlu0 %3022
        %v3024 = vsel %vm1970, %v1809, 0.0
        %3025 = vadd.xlane.f32.xlu0 %v3024
        %v3026 = vpop.xlane.xlu0 %3025
        %v3027 = vsel %vm1970, %v1810, 0.0
        %3028 = vadd.xlane.f32.xlu0 %v3027
        %v3029 = vpop.xlane.xlu0 %3028
        %v3030 = vsel %vm1970, %v1811, 0.0
        %3031 = vadd.xlane.f32.xlu0 %v3030
        %v3032 = vpop.xlane.xlu0 %3031
        %v3033 = vsel %vm1970, %v1812, 0.0
        %3034 = vadd.xlane.f32.xlu0 %v3033
        %v3035 = vpop.xlane.xlu0 %3034
        %v3036 = vsel %vm1970, %v1813, 0.0
        %3037 = vadd.xlane.f32.xlu0 %v3036
        %v3038 = vpop.xlane.xlu0 %3037
        %v3039 = vsel %vm1970, %v1814, 0.0
        %3040 = vadd.xlane.f32.xlu0 %v3039
        %v3041 = vpop.xlane.xlu0 %3040
        %v3042 = vsel %vm1970, %v1815, 0.0
        %3043 = vadd.xlane.f32.xlu0 %v3042
        %v3044 = vpop.xlane.xlu0 %3043
        %v3045 = vsel %vm1970, %v1816, 0.0
        %3046 = vadd.xlane.f32.xlu0 %v3045
        %v3047 = vpop.xlane.xlu0 %3046
        %v3048 = vsel %vm1970, %v1817, 0.0
        %3049 = vadd.xlane.f32.xlu0 %v3048
        %v3050 = vpop.xlane.xlu0 %3049
        %v3051 = vsel %vm1970, %v1818, 0.0
        %3052 = vadd.xlane.f32.xlu0 %v3051
        %v3053 = vpop.xlane.xlu0 %3052
        %v3054 = vsel %vm1970, %v1819, 0.0
        %3055 = vadd.xlane.f32.xlu0 %v3054
        %v3056 = vpop.xlane.xlu0 %3055
        %v3057 = vsel %vm1970, %v1820, 0.0
        %3058 = vadd.xlane.f32.xlu0 %v3057
        %v3059 = vpop.xlane.xlu0 %3058
        %v3060 = vsel %vm1970, %v1821, 0.0
        %3061 = vadd.xlane.f32.xlu0 %v3060
        %v3062 = vpop.xlane.xlu0 %3061
        %v3063 = vsel %vm1970, %v1822, 0.0
        %3064 = vadd.xlane.f32.xlu0 %v3063
        %v3065 = vpop.xlane.xlu0 %3064
        %v3066 = vsel %vm1970, %v1823, 0.0
        %3067 = vadd.xlane.f32.xlu0 %v3066
        %v3068 = vpop.xlane.xlu0 %3067
        %v3069 = vsel %vm1970, %v1824, 0.0
        %3070 = vadd.xlane.f32.xlu0 %v3069
        %v3071 = vpop.xlane.xlu0 %3070
        %v3072 = vsel %vm1970, %v1825, 0.0
        %3073 = vadd.xlane.f32.xlu0 %v3072
        %v3074 = vpop.xlane.xlu0 %3073
        %v3075 = vsel %vm1970, %v1826, 0.0
        %3076 = vadd.xlane.f32.xlu0 %v3075
        %v3077 = vpop.xlane.xlu0 %3076
        %v3078 = vsel %vm1970, %v1827, 0.0
        %3079 = vadd.xlane.f32.xlu0 %v3078
        %v3080 = vpop.xlane.xlu0 %3079
        %v3081 = vsel %vm1970, %v1828, 0.0
        %3082 = vadd.xlane.f32.xlu0 %v3081
        %v3083 = vpop.xlane.xlu0 %3082
        %v3084 = vsel %vm1970, %v1829, 0.0
        %3085 = vadd.xlane.f32.xlu0 %v3084
        %v3086 = vpop.xlane.xlu0 %3085
        %v3087 = vsel %vm1970, %v1830, 0.0
        %3088 = vadd.xlane.f32.xlu0 %v3087
        %v3089 = vpop.xlane.xlu0 %3088
        %v3090 = vsel %vm1970, %v1831, 0.0
        %3091 = vadd.xlane.f32.xlu0 %v3090
        %v3092 = vpop.xlane.xlu0 %3091
        %v3093 = vsel %vm1970, %v1832, 0.0
        %3094 = vadd.xlane.f32.xlu0 %v3093
        %v3095 = vpop.xlane.xlu0 %3094
        %v3096 = vsel %vm1970, %v1833, 0.0
        %3097 = vadd.xlane.f32.xlu0 %v3096
        %v3098 = vpop.xlane.xlu0 %3097
        %v3099 = vsel %vm1970, %v1834, 0.0
        %3100 = vadd.xlane.f32.xlu0 %v3099
        %v3101 = vpop.xlane.xlu0 %3100
        %v3102 = vsel %vm1970, %v1835, 0.0
        %3103 = vadd.xlane.f32.xlu0 %v3102
        %v3104 = vpop.xlane.xlu0 %3103
        %v3105 = vsel %vm1970, %v1836, 0.0
        %3106 = vadd.xlane.f32.xlu0 %v3105
        %v3107 = vpop.xlane.xlu0 %3106
        %v3108 = vsel %vm1970, %v1837, 0.0
        %3109 = vadd.xlane.f32.xlu0 %v3108
        %v3110 = vpop.xlane.xlu0 %3109
        %v3111 = vsel %vm1970, %v1838, 0.0
        %3112 = vadd.xlane.f32.xlu0 %v3111
        %v3113 = vpop.xlane.xlu0 %3112
        %v3114 = vsel %vm1970, %v1839, 0.0
        %3115 = vadd.xlane.f32.xlu0 %v3114
        %v3116 = vpop.xlane.xlu0 %3115
        %v3117 = vsel %vm1970, %v1840, 0.0
        %3118 = vadd.xlane.f32.xlu0 %v3117
        %v3119 = vpop.xlane.xlu0 %3118
        %v3120 = vsel %vm1970, %v1841, 0.0
        %3121 = vadd.xlane.f32.xlu0 %v3120
        %v3122 = vpop.xlane.xlu0 %3121
        %v3123 = vsel %vm1970, %v1842, 0.0
        %3124 = vadd.xlane.f32.xlu0 %v3123
        %v3125 = vpop.xlane.xlu0 %3124
        %v3126 = vsel %vm1970, %v1843, 0.0
        %3127 = vadd.xlane.f32.xlu0 %v3126
        %v3128 = vpop.xlane.xlu0 %3127
        %v3129 = vsel %vm1970, %v1844, 0.0
        %3130 = vadd.xlane.f32.xlu0 %v3129
        %v3131 = vpop.xlane.xlu0 %3130
        %v3132 = vsel %vm1970, %v1845, 0.0
        %3133 = vadd.xlane.f32.xlu0 %v3132
        %v3134 = vpop.xlane.xlu0 %3133
        %v3135 = vsel %vm1970, %v1846, 0.0
        %3136 = vadd.xlane.f32.xlu0 %v3135
        %v3137 = vpop.xlane.xlu0 %3136
        %v3138 = vsel %vm1970, %v1847, 0.0
        %3139 = vadd.xlane.f32.xlu0 %v3138
        %v3140 = vpop.xlane.xlu0 %3139
        %v3141 = vsel %vm1970, %v1848, 0.0
        %3142 = vadd.xlane.f32.xlu0 %v3141
        %v3143 = vpop.xlane.xlu0 %3142
        %v3144 = vsel %vm1970, %v1849, 0.0
        %3145 = vadd.xlane.f32.xlu0 %v3144
        %v3146 = vpop.xlane.xlu0 %3145
        %v3147 = vsel %vm1970, %v1850, 0.0
        %3148 = vadd.xlane.f32.xlu0 %v3147
        %v3149 = vpop.xlane.xlu0 %3148
        %v3150 = vsel %vm1970, %v1851, 0.0
        %3151 = vadd.xlane.f32.xlu0 %v3150
        %v3152 = vpop.xlane.xlu0 %3151
        %v3153 = vsel %vm1970, %v1852, 0.0
        %3154 = vadd.xlane.f32.xlu0 %v3153
        %v3155 = vpop.xlane.xlu0 %3154
        %v3156 = vsel %vm1970, %v1853, 0.0
        %3157 = vadd.xlane.f32.xlu0 %v3156
        %v3158 = vpop.xlane.xlu0 %3157
        %v3159 = vsel %vm1970, %v1854, 0.0
        %3160 = vadd.xlane.f32.xlu0 %v3159
        %v3161 = vpop.xlane.xlu0 %3160
        %v3162 = vsel %vm1970, %v1855, 0.0
        %3163 = vadd.xlane.f32.xlu0 %v3162
        %v3164 = vpop.xlane.xlu0 %3163
        %v3165 = vsel %vm1970, %v1856, 0.0
        %3166 = vadd.xlane.f32.xlu0 %v3165
        %v3167 = vpop.xlane.xlu0 %3166
        %v3168 = vsel %vm1970, %v1857, 0.0
        %3169 = vadd.xlane.f32.xlu0 %v3168
        %v3170 = vpop.xlane.xlu0 %3169
        %v3171 = vsel %vm1970, %v1858, 0.0
        %3172 = vadd.xlane.f32.xlu0 %v3171
        %v3173 = vpop.xlane.xlu0 %3172
        %v3174 = vsel %vm1970, %v1859, 0.0
        %3175 = vadd.xlane.f32.xlu0 %v3174
        %v3176 = vpop.xlane.xlu0 %3175
        %v3177 = vsel %vm1970, %v1860, 0.0
        %3178 = vadd.xlane.f32.xlu0 %v3177
        %v3179 = vpop.xlane.xlu0 %3178
        %v3180 = vsel %vm1970, %v1861, 0.0
        %3181 = vadd.xlane.f32.xlu0 %v3180
        %v3182 = vpop.xlane.xlu0 %3181
        %v3183 = vsel %vm1970, %v1862, 0.0
        %3184 = vadd.xlane.f32.xlu0 %v3183
        %v3185 = vpop.xlane.xlu0 %3184
        %v3186 = vsel %vm1970, %v1863, 0.0
        %3187 = vadd.xlane.f32.xlu0 %v3186
        %v3188 = vpop.xlane.xlu0 %3187
        %v3189 = vsel %vm1970, %v1864, 0.0
        %3190 = vadd.xlane.f32.xlu0 %v3189
        %v3191 = vpop.xlane.xlu0 %3190
        %v3192 = vsel %vm1970, %v1865, 0.0
        %3193 = vadd.xlane.f32.xlu0 %v3192
        %v3194 = vpop.xlane.xlu0 %3193
        %v3195 = vsel %vm1970, %v1866, 0.0
        %3196 = vadd.xlane.f32.xlu0 %v3195
        %v3197 = vpop.xlane.xlu0 %3196
        %v3198 = vsel %vm1970, %v1867, 0.0
        %3199 = vadd.xlane.f32.xlu0 %v3198
        %v3200 = vpop.xlane.xlu0 %3199
        %v3201 = vsel %vm1970, %v1868, 0.0
        %3202 = vadd.xlane.f32.xlu0 %v3201
        %v3203 = vpop.xlane.xlu0 %3202
        %v3204 = vsel %vm1970, %v1869, 0.0
        %3205 = vadd.xlane.f32.xlu0 %v3204
        %v3206 = vpop.xlane.xlu0 %3205
        %v3207 = vsel %vm1970, %v1870, 0.0
        %3208 = vadd.xlane.f32.xlu0 %v3207
        %v3209 = vpop.xlane.xlu0 %3208
        %v3210 = vsel %vm1970, %v1871, 0.0
        %3211 = vadd.xlane.f32.xlu0 %v3210
        %v3212 = vpop.xlane.xlu0 %3211
        %v3213 = vsel %vm1970, %v1872, 0.0
        %3214 = vadd.xlane.f32.xlu0 %v3213
        %v3215 = vpop.xlane.xlu0 %3214
        %v3216 = vsel %vm1970, %v1873, 0.0
        %3217 = vadd.xlane.f32.xlu0 %v3216
        %v3218 = vpop.xlane.xlu0 %3217
        %v3219 = vsel %vm1970, %v1874, 0.0
        %3220 = vadd.xlane.f32.xlu0 %v3219
        %v3221 = vpop.xlane.xlu0 %3220
        %v3222 = vsel %vm1970, %v1875, 0.0
        %3223 = vadd.xlane.f32.xlu0 %v3222
        %v3224 = vpop.xlane.xlu0 %3223
        %v3225 = vsel %vm1970, %v1876, 0.0
        %3226 = vadd.xlane.f32.xlu0 %v3225
        %v3227 = vpop.xlane.xlu0 %3226
        %v3228 = vsel %vm1970, %v1877, 0.0
        %3229 = vadd.xlane.f32.xlu0 %v3228
        %v3230 = vpop.xlane.xlu0 %3229
        %v3231 = vsel %vm1970, %v1878, 0.0
        %3232 = vadd.xlane.f32.xlu0 %v3231
        %v3233 = vpop.xlane.xlu0 %3232
        %v3234 = vsel %vm1970, %v1879, 0.0
        %3235 = vadd.xlane.f32.xlu0 %v3234
        %v3236 = vpop.xlane.xlu0 %3235
        %v3237 = vsel %vm1970, %v1880, 0.0
        %3238 = vadd.xlane.f32.xlu0 %v3237
        %v3239 = vpop.xlane.xlu0 %3238
        %v3240 = vsel %vm1970, %v1881, 0.0
        %3241 = vadd.xlane.f32.xlu0 %v3240
        %v3242 = vpop.xlane.xlu0 %3241
        %v3243 = vsel %vm1970, %v1882, 0.0
        %3244 = vadd.xlane.f32.xlu0 %v3243
        %v3245 = vpop.xlane.xlu0 %3244
        %v3246 = vsel %vm1970, %v1883, 0.0
        %3247 = vadd.xlane.f32.xlu0 %v3246
        %v3248 = vpop.xlane.xlu0 %3247
        %v3249 = vsel %vm1970, %v1884, 0.0
        %3250 = vadd.xlane.f32.xlu0 %v3249
        %v3251 = vpop.xlane.xlu0 %3250
        %v3252 = vsel %vm1970, %v1885, 0.0
        %3253 = vadd.xlane.f32.xlu0 %v3252
        %v3254 = vpop.xlane.xlu0 %3253
        %v3255 = vsel %vm1970, %v1886, 0.0
        %3256 = vadd.xlane.f32.xlu0 %v3255
        %v3257 = vpop.xlane.xlu0 %3256
        %v3258 = vsel %vm1970, %v1887, 0.0
        %3259 = vadd.xlane.f32.xlu0 %v3258
        %v3260 = vpop.xlane.xlu0 %3259
        %v3261 = vsel %vm1970, %v1888, 0.0
        %3262 = vadd.xlane.f32.xlu0 %v3261
        %v3263 = vpop.xlane.xlu0 %3262
        %v3264 = vsel %vm1970, %v1889, 0.0
        %3265 = vadd.xlane.f32.xlu0 %v3264
        %v3266 = vpop.xlane.xlu0 %3265
        %v3267 = vsel %vm1970, %v1890, 0.0
        %3268 = vadd.xlane.f32.xlu0 %v3267
        %v3269 = vpop.xlane.xlu0 %3268
        %v3270 = vsel %vm1970, %v1891, 0.0
        %3271 = vadd.xlane.f32.xlu0 %v3270
        %v3272 = vpop.xlane.xlu0 %3271
        %v3273 = vsel %vm1970, %v1892, 0.0
        %3274 = vadd.xlane.f32.xlu0 %v3273
        %v3275 = vpop.xlane.xlu0 %3274
        %v3276 = vsel %vm1970, %v1893, 0.0
        %3277 = vadd.xlane.f32.xlu0 %v3276
        %v3278 = vpop.xlane.xlu0 %3277
        %v3279 = vsel %vm1970, %v1894, 0.0
        %3280 = vadd.xlane.f32.xlu0 %v3279
        %v3281 = vpop.xlane.xlu0 %3280
        %v3282 = vsel %vm1970, %v1895, 0.0
        %3283 = vadd.xlane.f32.xlu0 %v3282
        %v3284 = vpop.xlane.xlu0 %3283
        %v3285 = vsel %vm1970, %v1896, 0.0
        %3286 = vadd.xlane.f32.xlu0 %v3285
        %v3287 = vpop.xlane.xlu0 %3286
        %v3288 = vsel %vm1970, %v1897, 0.0
        %3289 = vadd.xlane.f32.xlu0 %v3288
        %v3290 = vpop.xlane.xlu0 %3289
        %v3291 = vsel %vm1970, %v1898, 0.0
        %3292 = vadd.xlane.f32.xlu0 %v3291
        %v3293 = vpop.xlane.xlu0 %3292
        %v3294 = vsel %vm1970, %v1899, 0.0
        %3295 = vadd.xlane.f32.xlu0 %v3294
        %v3296 = vpop.xlane.xlu0 %3295
        %v3297 = vsel %vm1970, %v1900, 0.0
        %3298 = vadd.xlane.f32.xlu0 %v3297
        %v3299 = vpop.xlane.xlu0 %3298
        %v3300 = vsel %vm1970, %v1901, 0.0
        %3301 = vadd.xlane.f32.xlu0 %v3300
        %v3302 = vpop.xlane.xlu0 %3301
        %v3303 = vsel %vm1970, %v1902, 0.0
        %3304 = vadd.xlane.f32.xlu0 %v3303
        %v3305 = vpop.xlane.xlu0 %3304
        %v3306 = vsel %vm1970, %v1903, 0.0
        %3307 = vadd.xlane.f32.xlu0 %v3306
        %v3308 = vpop.xlane.xlu0 %3307
        %v3309 = vsel %vm1970, %v1904, 0.0
        %3310 = vadd.xlane.f32.xlu0 %v3309
        %v3311 = vpop.xlane.xlu0 %3310
        %v3312 = vsel %vm1970, %v1905, 0.0
        %3313 = vadd.xlane.f32.xlu0 %v3312
        %v3314 = vpop.xlane.xlu0 %3313
        %v3315 = vsel %vm1970, %v1906, 0.0
        %3316 = vadd.xlane.f32.xlu0 %v3315
        %v3317 = vpop.xlane.xlu0 %3316
        %v3318 = vsel %vm1970, %v1907, 0.0
        %3319 = vadd.xlane.f32.xlu0 %v3318
        %v3320 = vpop.xlane.xlu0 %3319
        %v3321 = vsel %vm1970, %v1908, 0.0
        %3322 = vadd.xlane.f32.xlu0 %v3321
        %v3323 = vpop.xlane.xlu0 %3322
        %v3324 = vsel %vm1970, %v1909, 0.0
        %3325 = vadd.xlane.f32.xlu0 %v3324
        %v3326 = vpop.xlane.xlu0 %3325
        %v3327 = vsel %vm1970, %v1910, 0.0
        %3328 = vadd.xlane.f32.xlu0 %v3327
        %v3329 = vpop.xlane.xlu0 %3328
        %v3330 = vsel %vm1970, %v1911, 0.0
        %3331 = vadd.xlane.f32.xlu0 %v3330
        %v3332 = vpop.xlane.xlu0 %3331
        %v3333 = vsel %vm1970, %v1912, 0.0
        %3334 = vadd.xlane.f32.xlu0 %v3333
        %v3335 = vpop.xlane.xlu0 %3334
        %v3336 = vsel %vm1970, %v1913, 0.0
        %3337 = vadd.xlane.f32.xlu0 %v3336
        %v3338 = vpop.xlane.xlu0 %3337
        %v3339 = vsel %vm1970, %v1914, 0.0
        %3340 = vadd.xlane.f32.xlu0 %v3339
        %v3341 = vpop.xlane.xlu0 %3340
        %v3342 = vsel %vm1970, %v1915, 0.0
        %3343 = vadd.xlane.f32.xlu0 %v3342
        %v3344 = vpop.xlane.xlu0 %3343
        %v3345 = vsel %vm1970, %v1916, 0.0
        %3346 = vadd.xlane.f32.xlu0 %v3345
        %v3347 = vpop.xlane.xlu0 %3346
        %v3348 = vsel %vm1970, %v1917, 0.0
        %3349 = vadd.xlane.f32.xlu0 %v3348
        %v3350 = vpop.xlane.xlu0 %3349
        %v3351 = vsel %vm1970, %v1918, 0.0
        %3352 = vadd.xlane.f32.xlu0 %v3351
        %v3353 = vpop.xlane.xlu0 %3352
        %v3354 = vsel %vm1970, %v1919, 0.0
        %3355 = vadd.xlane.f32.xlu0 %v3354
        %v3356 = vpop.xlane.xlu0 %3355
        %v3357 = vsel %vm1970, %v1920, 0.0
        %3358 = vadd.xlane.f32.xlu0 %v3357
        %v3359 = vpop.xlane.xlu0 %3358
        %v3360 = vsel %vm1970, %v1921, 0.0
        %3361 = vadd.xlane.f32.xlu0 %v3360
        %v3362 = vpop.xlane.xlu0 %3361
        %v3363 = vsel %vm1970, %v1922, 0.0
        %3364 = vadd.xlane.f32.xlu0 %v3363
        %v3365 = vpop.xlane.xlu0 %3364
        %v3366 = vsel %vm1970, %v1923, 0.0
        %3367 = vadd.xlane.f32.xlu0 %v3366
        %v3368 = vpop.xlane.xlu0 %3367
        %v3369 = vsel %vm1970, %v1924, 0.0
        %3370 = vadd.xlane.f32.xlu0 %v3369
        %v3371 = vpop.xlane.xlu0 %3370
        %v3372 = vsel %vm1970, %v1925, 0.0
        %3373 = vadd.xlane.f32.xlu0 %v3372
        %v3374 = vpop.xlane.xlu0 %3373
        %v3375 = vsel %vm1970, %v1926, 0.0
        %3376 = vadd.xlane.f32.xlu0 %v3375
        %v3377 = vpop.xlane.xlu0 %3376
        %v3378 = vsel %vm1970, %v1927, 0.0
        %3379 = vadd.xlane.f32.xlu0 %v3378
        %v3380 = vpop.xlane.xlu0 %3379
        %v3381 = vsel %vm1970, %v1928, 0.0
        %3382 = vadd.xlane.f32.xlu0 %v3381
        %v3383 = vpop.xlane.xlu0 %3382
        %v3384 = vsel %vm1970, %v1929, 0.0
        %3385 = vadd.xlane.f32.xlu0 %v3384
        %v3386 = vpop.xlane.xlu0 %3385
        %v3387 = vsel %vm1970, %v1930, 0.0
        %3388 = vadd.xlane.f32.xlu0 %v3387
        %v3389 = vpop.xlane.xlu0 %3388
        %v3390 = vsel %vm1970, %v1931, 0.0
        %3391 = vadd.xlane.f32.xlu0 %v3390
        %v3392 = vpop.xlane.xlu0 %3391
        %v3393 = vsel %vm1970, %v1932, 0.0
        %3394 = vadd.xlane.f32.xlu0 %v3393
        %v3395 = vpop.xlane.xlu0 %3394
        %v3396 = vsel %vm1970, %v1933, 0.0
        %3397 = vadd.xlane.f32.xlu0 %v3396
        %v3398 = vpop.xlane.xlu0 %3397
        %v3399 = vsel %vm1970, %v1934, 0.0
        %3400 = vadd.xlane.f32.xlu0 %v3399
        %v3401 = vpop.xlane.xlu0 %3400
        %v3402 = vsel %vm1970, %v1935, 0.0
        %3403 = vadd.xlane.f32.xlu0 %v3402
        %v3404 = vpop.xlane.xlu0 %3403
        %v3405 = vsel %vm1970, %v1936, 0.0
        %3406 = vadd.xlane.f32.xlu0 %v3405
        %v3407 = vpop.xlane.xlu0 %3406
        %v3408 = vsel %vm1970, %v1937, 0.0
        %3409 = vadd.xlane.f32.xlu0 %v3408
        %v3410 = vpop.xlane.xlu0 %3409
        %v3411 = vsel %vm1970, %v1938, 0.0
        %3412 = vadd.xlane.f32.xlu0 %v3411
        %v3413 = vpop.xlane.xlu0 %3412
        %v3414 = vsel %vm1970, %v1939, 0.0
        %3415 = vadd.xlane.f32.xlu0 %v3414
        %v3416 = vpop.xlane.xlu0 %3415
        %v3417 = vsel %vm1970, %v1940, 0.0
        %3418 = vadd.xlane.f32.xlu0 %v3417
        %v3419 = vpop.xlane.xlu0 %3418
        %v3420 = vsel %vm1970, %v1941, 0.0
        %3421 = vadd.xlane.f32.xlu0 %v3420
        %v3422 = vpop.xlane.xlu0 %3421
        %v3423 = vsel %vm1970, %v1942, 0.0
        %3424 = vadd.xlane.f32.xlu0 %v3423
        %v3425 = vpop.xlane.xlu0 %3424
        %v3426 = vsel %vm1970, %v1943, 0.0
        %3427 = vadd.xlane.f32.xlu0 %v3426
        %v3428 = vpop.xlane.xlu0 %3427
        %v3429 = vsel %vm1970, %v1944, 0.0
        %3430 = vadd.xlane.f32.xlu0 %v3429
        %v3431 = vpop.xlane.xlu0 %3430
        %v3432 = vsel %vm1970, %v1945, 0.0
        %3433 = vadd.xlane.f32.xlu0 %v3432
        %v3434 = vpop.xlane.xlu0 %3433
        %v3435 = vsel %vm1970, %v1946, 0.0
        %3436 = vadd.xlane.f32.xlu0 %v3435
        %v3437 = vpop.xlane.xlu0 %3436
        %v3438 = vsel %vm1970, %v1947, 0.0
        %3439 = vadd.xlane.f32.xlu0 %v3438
        %v3440 = vpop.xlane.xlu0 %3439
        %v3441 = vsel %vm1970, %v1948, 0.0
        %3442 = vadd.xlane.f32.xlu0 %v3441
        %v3443 = vpop.xlane.xlu0 %3442
        %v3444 = vsel %vm1970, %v1949, 0.0
        %3445 = vadd.xlane.f32.xlu0 %v3444
        %v3446 = vpop.xlane.xlu0 %3445
        %v3447 = vsel %vm1970, %v1950, 0.0
        %3448 = vadd.xlane.f32.xlu0 %v3447
        %v3449 = vpop.xlane.xlu0 %3448
        %v3450 = vsel %vm1970, %v1951, 0.0
        %3451 = vadd.xlane.f32.xlu0 %v3450
        %v3452 = vpop.xlane.xlu0 %3451
        %v3453 = vsel %vm1970, %v1952, 0.0
        %3454 = vadd.xlane.f32.xlu0 %v3453
        %v3455 = vpop.xlane.xlu0 %3454
        %v3456 = vsel %vm1970, %v1953, 0.0
        %3457 = vadd.xlane.f32.xlu0 %v3456
        %v3458 = vpop.xlane.xlu0 %3457
        %v3459 = vsel %vm1970, %v1954, 0.0
        %3460 = vadd.xlane.f32.xlu0 %v3459
        %v3461 = vpop.xlane.xlu0 %3460
        %v3462 = vsel %vm1970, %v1955, 0.0
        %3463 = vadd.xlane.f32.xlu0 %v3462
        %v3464 = vpop.xlane.xlu0 %3463
        %v3465 = vsel %vm1970, %v1956, 0.0
        %3466 = vadd.xlane.f32.xlu0 %v3465
        %v3467 = vpop.xlane.xlu0 %3466
        %v3468 = vsel %vm1970, %v1957, 0.0
        %3469 = vadd.xlane.f32.xlu0 %v3468
        %v3470 = vpop.xlane.xlu0 %3469
        %v3471 = vsel %vm1970, %v1958, 0.0
        %3472 = vadd.xlane.f32.xlu0 %v3471
        %v3473 = vpop.xlane.xlu0 %3472
        %v3474 = vsel %vm1970, %v1959, 0.0
        %3475 = vadd.xlane.f32.xlu0 %v3474
        %v3476 = vpop.xlane.xlu0 %3475
        %v3477 = vsel %vm1970, %v1960, 0.0
        %3478 = vadd.xlane.f32.xlu0 %v3477
        %v3479 = vpop.xlane.xlu0 %3478
        %v3480 = vsel %vm1970, %v1961, 0.0
        %3481 = vadd.xlane.f32.xlu0 %v3480
        %v3482 = vpop.xlane.xlu0 %3481
        %v3483 = vsel %vm1970, %v1962, 0.0
        %3484 = vadd.xlane.f32.xlu0 %v3483
        %v3485 = vpop.xlane.xlu0 %3484
        %v3486 = vsel %vm1970, %v1963, 0.0
        %3487 = vadd.xlane.f32.xlu0 %v3486
        %v3488 = vpop.xlane.xlu0 %3487
        %v3489 = vsel %vm1970, %v1964, 0.0
        %3490 = vadd.xlane.f32.xlu0 %v3489
        %v3491 = vpop.xlane.xlu0 %3490
        %v3492 = vsel %vm1970, %v1965, 0.0
        %3493 = vadd.xlane.f32.xlu0 %v3492
        %v3494 = vpop.xlane.xlu0 %3493
        %v3495 = vsel %vm1970, %v1966, 0.0
        %3496 = vadd.xlane.f32.xlu0 %v3495
        %v3497 = vpop.xlane.xlu0 %3496
        %v3498 = vsel %vm1970, %v1967, 0.0
        %3499 = vadd.xlane.f32.xlu0 %v3498
        %v3500 = vpop.xlane.xlu0 %3499
        %v3501 = vsel %vm1970, %v1968, 0.0
        %3502 = vadd.xlane.f32.xlu0 %v3501
        %v3503 = vpop.xlane.xlu0 %3502
        %v3504 = vsel %vm1970, %v1969, 0.0
        %3505 = vadd.xlane.f32.xlu0 %v3504
        %v3506 = vpop.xlane.xlu0 %3505
        %v3507 = vpack.c.bf16 %v1976, %v1973
        %v3508 = vpack.c.bf16 %v1982, %v1979
        %v3509 = vpack.c.bf16 %v1988, %v1985
        %v3510 = vpack.c.bf16 %v1994, %v1991
        %v3511 = vpack.c.bf16 %v2000, %v1997
        %v3512 = vpack.c.bf16 %v2006, %v2003
        %v3513 = vpack.c.bf16 %v2012, %v2009
        %v3514 = vpack.c.bf16 %v2018, %v2015
        %v3515 = vpack.c.bf16 %v2024, %v2021
        %v3516 = vpack.c.bf16 %v2030, %v2027
        %v3517 = vpack.c.bf16 %v2036, %v2033
        %v3518 = vpack.c.bf16 %v2042, %v2039
        %v3519 = vpack.c.bf16 %v2048, %v2045
        %v3520 = vpack.c.bf16 %v2054, %v2051
        %v3521 = vpack.c.bf16 %v2060, %v2057
        %v3522 = vpack.c.bf16 %v2066, %v2063
        %v3523 = vpack.c.bf16 %v2072, %v2069
        %v3524 = vpack.c.bf16 %v2078, %v2075
        %v3525 = vpack.c.bf16 %v2084, %v2081
        %v3526 = vpack.c.bf16 %v2090, %v2087
        %v3527 = vpack.c.bf16 %v2096, %v2093
        %v3528 = vpack.c.bf16 %v2102, %v2099
        %v3529 = vpack.c.bf16 %v2108, %v2105
        %v3530 = vpack.c.bf16 %v2114, %v2111
        %v3531 = vpack.c.bf16 %v2120, %v2117
        %v3532 = vpack.c.bf16 %v2126, %v2123
        %v3533 = vpack.c.bf16 %v2132, %v2129
        %v3534 = vpack.c.bf16 %v2138, %v2135
        %v3535 = vpack.c.bf16 %v2144, %v2141
        %v3536 = vpack.c.bf16 %v2150, %v2147
        %v3537 = vpack.c.bf16 %v2156, %v2153
        %v3538 = vpack.c.bf16 %v2162, %v2159
        %v3539 = vpack.c.bf16 %v2168, %v2165
        %v3540 = vpack.c.bf16 %v2174, %v2171
        %v3541 = vpack.c.bf16 %v2180, %v2177
        %v3542 = vpack.c.bf16 %v2186, %v2183
        %v3543 = vpack.c.bf16 %v2192, %v2189
        %v3544 = vpack.c.bf16 %v2198, %v2195
        %v3545 = vpack.c.bf16 %v2204, %v2201
        %v3546 = vpack.c.bf16 %v2210, %v2207
        %v3547 = vpack.c.bf16 %v2216, %v2213
        %v3548 = vpack.c.bf16 %v2222, %v2219
        %v3549 = vpack.c.bf16 %v2228, %v2225
        %v3550 = vpack.c.bf16 %v2234, %v2231
        %v3551 = vpack.c.bf16 %v2240, %v2237
        %v3552 = vpack.c.bf16 %v2246, %v2243
        %v3553 = vpack.c.bf16 %v2252, %v2249
        %v3554 = vpack.c.bf16 %v2258, %v2255
        %v3555 = vpack.c.bf16 %v2264, %v2261
        %v3556 = vpack.c.bf16 %v2270, %v2267
        %v3557 = vpack.c.bf16 %v2276, %v2273
        %v3558 = vpack.c.bf16 %v2282, %v2279
        %v3559 = vpack.c.bf16 %v2288, %v2285
        %v3560 = vpack.c.bf16 %v2294, %v2291
        %v3561 = vpack.c.bf16 %v2300, %v2297
        %v3562 = vpack.c.bf16 %v2306, %v2303
        %v3563 = vpack.c.bf16 %v2312, %v2309
        %v3564 = vpack.c.bf16 %v2318, %v2315
        %v3565 = vpack.c.bf16 %v2324, %v2321
        %v3566 = vpack.c.bf16 %v2330, %v2327
        %v3567 = vpack.c.bf16 %v2336, %v2333
        %v3568 = vpack.c.bf16 %v2342, %v2339
        %v3569 = vpack.c.bf16 %v2348, %v2345
        %v3570 = vpack.c.bf16 %v2354, %v2351
        %v3571 = vpack.c.bf16 %v2360, %v2357
        %v3572 = vpack.c.bf16 %v2366, %v2363
        %v3573 = vpack.c.bf16 %v2372, %v2369
        %v3574 = vpack.c.bf16 %v2378, %v2375
        %v3575 = vpack.c.bf16 %v2384, %v2381
        %v3576 = vpack.c.bf16 %v2390, %v2387
        %v3577 = vpack.c.bf16 %v2396, %v2393
        %v3578 = vpack.c.bf16 %v2402, %v2399
        %v3579 = vpack.c.bf16 %v2408, %v2405
        %v3580 = vpack.c.bf16 %v2414, %v2411
        %v3581 = vpack.c.bf16 %v2420, %v2417
        %v3582 = vpack.c.bf16 %v2426, %v2423
        %v3583 = vpack.c.bf16 %v2432, %v2429
        %v3584 = vpack.c.bf16 %v2438, %v2435
        %v3585 = vpack.c.bf16 %v2444, %v2441
        %v3586 = vpack.c.bf16 %v2450, %v2447
        %v3587 = vpack.c.bf16 %v2456, %v2453
        %v3588 = vpack.c.bf16 %v2462, %v2459
        %v3589 = vpack.c.bf16 %v2468, %v2465
        %v3590 = vpack.c.bf16 %v2474, %v2471
        %v3591 = vpack.c.bf16 %v2480, %v2477
        %v3592 = vpack.c.bf16 %v2486, %v2483
        %v3593 = vpack.c.bf16 %v2492, %v2489
        %v3594 = vpack.c.bf16 %v2498, %v2495
        %v3595 = vpack.c.bf16 %v2504, %v2501
        %v3596 = vpack.c.bf16 %v2510, %v2507
        %v3597 = vpack.c.bf16 %v2516, %v2513
        %v3598 = vpack.c.bf16 %v2522, %v2519
        %v3599 = vpack.c.bf16 %v2528, %v2525
        %v3600 = vpack.c.bf16 %v2534, %v2531
        %v3601 = vpack.c.bf16 %v2540, %v2537
        %v3602 = vpack.c.bf16 %v2546, %v2543
        %v3603 = vpack.c.bf16 %v2552, %v2549
        %v3604 = vpack.c.bf16 %v2558, %v2555
        %v3605 = vpack.c.bf16 %v2564, %v2561
        %v3606 = vpack.c.bf16 %v2570, %v2567
        %v3607 = vpack.c.bf16 %v2576, %v2573
        %v3608 = vpack.c.bf16 %v2582, %v2579
        %v3609 = vpack.c.bf16 %v2588, %v2585
        %v3610 = vpack.c.bf16 %v2594, %v2591
        %v3611 = vpack.c.bf16 %v2600, %v2597
        %v3612 = vpack.c.bf16 %v2606, %v2603
        %v3613 = vpack.c.bf16 %v2612, %v2609
        %v3614 = vpack.c.bf16 %v2618, %v2615
        %v3615 = vpack.c.bf16 %v2624, %v2621
        %v3616 = vpack.c.bf16 %v2630, %v2627
        %v3617 = vpack.c.bf16 %v2636, %v2633
        %v3618 = vpack.c.bf16 %v2642, %v2639
        %v3619 = vpack.c.bf16 %v2648, %v2645
        %v3620 = vpack.c.bf16 %v2654, %v2651
        %v3621 = vpack.c.bf16 %v2660, %v2657
        %v3622 = vpack.c.bf16 %v2666, %v2663
        %v3623 = vpack.c.bf16 %v2672, %v2669
        %v3624 = vpack.c.bf16 %v2678, %v2675
        %v3625 = vpack.c.bf16 %v2684, %v2681
        %v3626 = vpack.c.bf16 %v2690, %v2687
        %v3627 = vpack.c.bf16 %v2696, %v2693
        %v3628 = vpack.c.bf16 %v2702, %v2699
        %v3629 = vpack.c.bf16 %v2708, %v2705
        %v3630 = vpack.c.bf16 %v2714, %v2711
        %v3631 = vpack.c.bf16 %v2720, %v2717
        %v3632 = vpack.c.bf16 %v2726, %v2723
        %v3633 = vpack.c.bf16 %v2732, %v2729
        %v3634 = vpack.c.bf16 %v2738, %v2735
        %v3635 = vpack.c.bf16 %v2744, %v2741
        %v3636 = vpack.c.bf16 %v2750, %v2747
        %v3637 = vpack.c.bf16 %v2756, %v2753
        %v3638 = vpack.c.bf16 %v2762, %v2759
        %v3639 = vpack.c.bf16 %v2768, %v2765
        %v3640 = vpack.c.bf16 %v2774, %v2771
        %v3641 = vpack.c.bf16 %v2780, %v2777
        %v3642 = vpack.c.bf16 %v2786, %v2783
        %v3643 = vpack.c.bf16 %v2792, %v2789
        %v3644 = vpack.c.bf16 %v2798, %v2795
        %v3645 = vpack.c.bf16 %v2804, %v2801
        %v3646 = vpack.c.bf16 %v2810, %v2807
        %v3647 = vpack.c.bf16 %v2816, %v2813
        %v3648 = vpack.c.bf16 %v2822, %v2819
        %v3649 = vpack.c.bf16 %v2828, %v2825
        %v3650 = vpack.c.bf16 %v2834, %v2831
        %v3651 = vpack.c.bf16 %v2840, %v2837
        %v3652 = vpack.c.bf16 %v2846, %v2843
        %v3653 = vpack.c.bf16 %v2852, %v2849
        %v3654 = vpack.c.bf16 %v2858, %v2855
        %v3655 = vpack.c.bf16 %v2864, %v2861
        %v3656 = vpack.c.bf16 %v2870, %v2867
        %v3657 = vpack.c.bf16 %v2876, %v2873
        %v3658 = vpack.c.bf16 %v2882, %v2879
        %v3659 = vpack.c.bf16 %v2888, %v2885
        %v3660 = vpack.c.bf16 %v2894, %v2891
        %v3661 = vpack.c.bf16 %v2900, %v2897
        %v3662 = vpack.c.bf16 %v2906, %v2903
        %v3663 = vpack.c.bf16 %v2912, %v2909
        %v3664 = vpack.c.bf16 %v2918, %v2915
        %v3665 = vpack.c.bf16 %v2924, %v2921
        %v3666 = vpack.c.bf16 %v2930, %v2927
        %v3667 = vpack.c.bf16 %v2936, %v2933
        %v3668 = vpack.c.bf16 %v2942, %v2939
        %v3669 = vpack.c.bf16 %v2948, %v2945
        %v3670 = vpack.c.bf16 %v2954, %v2951
        %v3671 = vpack.c.bf16 %v2960, %v2957
        %v3672 = vpack.c.bf16 %v2966, %v2963
        %v3673 = vpack.c.bf16 %v2972, %v2969
        %v3674 = vpack.c.bf16 %v2978, %v2975
        %v3675 = vpack.c.bf16 %v2984, %v2981
        %v3676 = vpack.c.bf16 %v2990, %v2987
        %v3677 = vpack.c.bf16 %v2996, %v2993
        %v3678 = vpack.c.bf16 %v3002, %v2999
        %v3679 = vpack.c.bf16 %v3008, %v3005
        %v3680 = vpack.c.bf16 %v3014, %v3011
        %v3681 = vpack.c.bf16 %v3020, %v3017
        %v3682 = vpack.c.bf16 %v3026, %v3023
        %v3683 = vpack.c.bf16 %v3032, %v3029
        %v3684 = vpack.c.bf16 %v3038, %v3035
        %v3685 = vpack.c.bf16 %v3044, %v3041
        %v3686 = vpack.c.bf16 %v3050, %v3047
        %v3687 = vpack.c.bf16 %v3056, %v3053
        %v3688 = vpack.c.bf16 %v3062, %v3059
        %v3689 = vpack.c.bf16 %v3068, %v3065
        %v3690 = vpack.c.bf16 %v3074, %v3071
        %v3691 = vpack.c.bf16 %v3080, %v3077
        %v3692 = vpack.c.bf16 %v3086, %v3083
        %v3693 = vpack.c.bf16 %v3092, %v3089
        %v3694 = vpack.c.bf16 %v3098, %v3095
        %v3695 = vpack.c.bf16 %v3104, %v3101
        %v3696 = vpack.c.bf16 %v3110, %v3107
        %v3697 = vpack.c.bf16 %v3116, %v3113
        %v3698 = vpack.c.bf16 %v3122, %v3119
        %v3699 = vpack.c.bf16 %v3128, %v3125
        %v3700 = vpack.c.bf16 %v3134, %v3131
        %v3701 = vpack.c.bf16 %v3140, %v3137
        %v3702 = vpack.c.bf16 %v3146, %v3143
        %v3703 = vpack.c.bf16 %v3152, %v3149
        %v3704 = vpack.c.bf16 %v3158, %v3155
        %v3705 = vpack.c.bf16 %v3164, %v3161
        %v3706 = vpack.c.bf16 %v3170, %v3167
        %v3707 = vpack.c.bf16 %v3176, %v3173
        %v3708 = vpack.c.bf16 %v3182, %v3179
        %v3709 = vpack.c.bf16 %v3188, %v3185
        %v3710 = vpack.c.bf16 %v3194, %v3191
        %v3711 = vpack.c.bf16 %v3200, %v3197
        %v3712 = vpack.c.bf16 %v3206, %v3203
        %v3713 = vpack.c.bf16 %v3212, %v3209
        %v3714 = vpack.c.bf16 %v3218, %v3215
        %v3715 = vpack.c.bf16 %v3224, %v3221
        %v3716 = vpack.c.bf16 %v3230, %v3227
        %v3717 = vpack.c.bf16 %v3236, %v3233
        %v3718 = vpack.c.bf16 %v3242, %v3239
        %v3719 = vpack.c.bf16 %v3248, %v3245
        %v3720 = vpack.c.bf16 %v3254, %v3251
        %v3721 = vpack.c.bf16 %v3260, %v3257
        %v3722 = vpack.c.bf16 %v3266, %v3263
        %v3723 = vpack.c.bf16 %v3272, %v3269
        %v3724 = vpack.c.bf16 %v3278, %v3275
        %v3725 = vpack.c.bf16 %v3284, %v3281
        %v3726 = vpack.c.bf16 %v3290, %v3287
        %v3727 = vpack.c.bf16 %v3296, %v3293
        %v3728 = vpack.c.bf16 %v3302, %v3299
        %v3729 = vpack.c.bf16 %v3308, %v3305
        %v3730 = vpack.c.bf16 %v3314, %v3311
        %v3731 = vpack.c.bf16 %v3320, %v3317
        %v3732 = vpack.c.bf16 %v3326, %v3323
        %v3733 = vpack.c.bf16 %v3332, %v3329
        %v3734 = vpack.c.bf16 %v3338, %v3335
        %v3735 = vpack.c.bf16 %v3344, %v3341
        %v3736 = vpack.c.bf16 %v3350, %v3347
        %v3737 = vpack.c.bf16 %v3356, %v3353
        %v3738 = vpack.c.bf16 %v3362, %v3359
        %v3739 = vpack.c.bf16 %v3368, %v3365
        %v3740 = vpack.c.bf16 %v3374, %v3371
        %v3741 = vpack.c.bf16 %v3380, %v3377
        %v3742 = vpack.c.bf16 %v3386, %v3383
        %v3743 = vpack.c.bf16 %v3392, %v3389
        %v3744 = vpack.c.bf16 %v3398, %v3395
        %v3745 = vpack.c.bf16 %v3404, %v3401
        %v3746 = vpack.c.bf16 %v3410, %v3407
        %v3747 = vpack.c.bf16 %v3416, %v3413
        %v3748 = vpack.c.bf16 %v3422, %v3419
        %v3749 = vpack.c.bf16 %v3428, %v3425
        %v3750 = vpack.c.bf16 %v3434, %v3431
        %v3751 = vpack.c.bf16 %v3440, %v3437
        %v3752 = vpack.c.bf16 %v3446, %v3443
        %v3753 = vpack.c.bf16 %v3452, %v3449
        %v3754 = vpack.c.bf16 %v3458, %v3455
        %v3755 = vpack.c.bf16 %v3464, %v3461
        %v3756 = vpack.c.bf16 %v3470, %v3467
        %v3757 = vpack.c.bf16 %v3476, %v3473
        %v3758 = vpack.c.bf16 %v3482, %v3479
        %v3759 = vpack.c.bf16 %v3488, %v3485
        %v3760 = vpack.c.bf16 %v3494, %v3491
        %v3761 = vpack.c.bf16 %v3500, %v3497
        %v3762 = vpack.c.bf16 %v3506, %v3503
        %v3763 = vld [vmem:[%s1] sm:$0xf]
        %v3764 = vld [vmem:[%s1 + $0x4] sm:$0xf]
        %v3765 = vld [vmem:[%s1 + $0x8] sm:$0xf]
        %v3766 = vld [vmem:[%s1 + $0xc] sm:$0xf]
        %v4023 = vunpack.c.l.b16 %v3507
        %v4024 = vunpack.c.h.b16 %v3507
        %v4025 = vunpack.c.l.b16 %v3508
        %v4026 = vunpack.c.h.b16 %v3508
        %v4027 = vunpack.c.l.b16 %v3509
        %v4028 = vunpack.c.h.b16 %v3509
        %v4029 = vunpack.c.l.b16 %v3510
        %v4030 = vunpack.c.h.b16 %v3510
        %v4031 = vunpack.c.l.b16 %v3511
        %v4032 = vunpack.c.h.b16 %v3511
        %v4033 = vunpack.c.l.b16 %v3512
        %v4034 = vunpack.c.h.b16 %v3512
        %v4035 = vunpack.c.l.b16 %v3513
        %v4036 = vunpack.c.h.b16 %v3513
        %v4037 = vunpack.c.l.b16 %v3514
        %v4038 = vunpack.c.h.b16 %v3514
        %v4039 = vunpack.c.l.b16 %v3515
        %v4040 = vunpack.c.h.b16 %v3515
        %v4041 = vunpack.c.l.b16 %v3516
        %v4042 = vunpack.c.h.b16 %v3516
        %v4043 = vunpack.c.l.b16 %v3517
        %v4044 = vunpack.c.h.b16 %v3517
        %v4045 = vunpack.c.l.b16 %v3518
        %v4046 = vunpack.c.h.b16 %v3518
        %v4047 = vunpack.c.l.b16 %v3519
        %v4048 = vunpack.c.h.b16 %v3519
        %v4049 = vunpack.c.l.b16 %v3520
        %v4050 = vunpack.c.h.b16 %v3520
        %v4051 = vunpack.c.l.b16 %v3521
        %v4052 = vunpack.c.h.b16 %v3521
        %v4053 = vunpack.c.l.b16 %v3522
        %v4054 = vunpack.c.h.b16 %v3522
        %v4055 = vunpack.c.l.b16 %v3523
        %v4056 = vunpack.c.h.b16 %v3523
        %v4057 = vunpack.c.l.b16 %v3524
        %v4058 = vunpack.c.h.b16 %v3524
        %v4059 = vunpack.c.l.b16 %v3525
        %v4060 = vunpack.c.h.b16 %v3525
        %v4061 = vunpack.c.l.b16 %v3526
        %v4062 = vunpack.c.h.b16 %v3526
        %v4063 = vunpack.c.l.b16 %v3527
        %v4064 = vunpack.c.h.b16 %v3527
        %v4065 = vunpack.c.l.b16 %v3528
        %v4066 = vunpack.c.h.b16 %v3528
        %v4067 = vunpack.c.l.b16 %v3529
        %v4068 = vunpack.c.h.b16 %v3529
        %v4069 = vunpack.c.l.b16 %v3530
        %v4070 = vunpack.c.h.b16 %v3530
        %v4071 = vunpack.c.l.b16 %v3531
        %v4072 = vunpack.c.h.b16 %v3531
        %v4073 = vunpack.c.l.b16 %v3532
        %v4074 = vunpack.c.h.b16 %v3532
        %v4075 = vunpack.c.l.b16 %v3533
        %v4076 = vunpack.c.h.b16 %v3533
        %v4077 = vunpack.c.l.b16 %v3534
        %v4078 = vunpack.c.h.b16 %v3534
        %v4079 = vunpack.c.l.b16 %v3535
        %v4080 = vunpack.c.h.b16 %v3535
        %v4081 = vunpack.c.l.b16 %v3536
        %v4082 = vunpack.c.h.b16 %v3536
        %v4083 = vunpack.c.l.b16 %v3537
        %v4084 = vunpack.c.h.b16 %v3537
        %v4085 = vunpack.c.l.b16 %v3538
        %v4086 = vunpack.c.h.b16 %v3538
        %v4087 = vunpack.c.l.b16 %v3539
        %v4088 = vunpack.c.h.b16 %v3539
        %v4089 = vunpack.c.l.b16 %v3540
        %v4090 = vunpack.c.h.b16 %v3540
        %v4091 = vunpack.c.l.b16 %v3541
        %v4092 = vunpack.c.h.b16 %v3541
        %v4093 = vunpack.c.l.b16 %v3542
        %v4094 = vunpack.c.h.b16 %v3542
        %v4095 = vunpack.c.l.b16 %v3543
        %v4096 = vunpack.c.h.b16 %v3543
        %v4097 = vunpack.c.l.b16 %v3544
        %v4098 = vunpack.c.h.b16 %v3544
        %v4099 = vunpack.c.l.b16 %v3545
        %v4100 = vunpack.c.h.b16 %v3545
        %v4101 = vunpack.c.l.b16 %v3546
        %v4102 = vunpack.c.h.b16 %v3546
        %v4103 = vunpack.c.l.b16 %v3547
        %v4104 = vunpack.c.h.b16 %v3547
        %v4105 = vunpack.c.l.b16 %v3548
        %v4106 = vunpack.c.h.b16 %v3548
        %v4107 = vunpack.c.l.b16 %v3549
        %v4108 = vunpack.c.h.b16 %v3549
        %v4109 = vunpack.c.l.b16 %v3550
        %v4110 = vunpack.c.h.b16 %v3550
        %v4111 = vunpack.c.l.b16 %v3551
        %v4112 = vunpack.c.h.b16 %v3551
        %v4113 = vunpack.c.l.b16 %v3552
        %v4114 = vunpack.c.h.b16 %v3552
        %v4115 = vunpack.c.l.b16 %v3553
        %v4116 = vunpack.c.h.b16 %v3553
        %v4117 = vunpack.c.l.b16 %v3554
        %v4118 = vunpack.c.h.b16 %v3554
        %v4119 = vunpack.c.l.b16 %v3555
        %v4120 = vunpack.c.h.b16 %v3555
        %v4121 = vunpack.c.l.b16 %v3556
        %v4122 = vunpack.c.h.b16 %v3556
        %v4123 = vunpack.c.l.b16 %v3557
        %v4124 = vunpack.c.h.b16 %v3557
        %v4125 = vunpack.c.l.b16 %v3558
        %v4126 = vunpack.c.h.b16 %v3558
        %v4127 = vunpack.c.l.b16 %v3559
        %v4128 = vunpack.c.h.b16 %v3559
        %v4129 = vunpack.c.l.b16 %v3560
        %v4130 = vunpack.c.h.b16 %v3560
        %v4131 = vunpack.c.l.b16 %v3561
        %v4132 = vunpack.c.h.b16 %v3561
        %v4133 = vunpack.c.l.b16 %v3562
        %v4134 = vunpack.c.h.b16 %v3562
        %v4135 = vunpack.c.l.b16 %v3563
        %v4136 = vunpack.c.h.b16 %v3563
        %v4137 = vunpack.c.l.b16 %v3564
        %v4138 = vunpack.c.h.b16 %v3564
        %v4139 = vunpack.c.l.b16 %v3565
        %v4140 = vunpack.c.h.b16 %v3565
        %v4141 = vunpack.c.l.b16 %v3566
        %v4142 = vunpack.c.h.b16 %v3566
        %v4143 = vunpack.c.l.b16 %v3567
        %v4144 = vunpack.c.h.b16 %v3567
        %v4145 = vunpack.c.l.b16 %v3568
        %v4146 = vunpack.c.h.b16 %v3568
        %v4147 = vunpack.c.l.b16 %v3569
        %v4148 = vunpack.c.h.b16 %v3569
        %v4149 = vunpack.c.l.b16 %v3570
        %v4150 = vunpack.c.h.b16 %v3570
        %v4151 = vunpack.c.l.b16 %v3571
        %v4152 = vunpack.c.h.b16 %v3571
        %v4153 = vunpack.c.l.b16 %v3572
        %v4154 = vunpack.c.h.b16 %v3572
        %v4155 = vunpack.c.l.b16 %v3573
        %v4156 = vunpack.c.h.b16 %v3573
        %v4157 = vunpack.c.l.b16 %v3574
        %v4158 = vunpack.c.h.b16 %v3574
        %v4159 = vunpack.c.l.b16 %v3575
        %v4160 = vunpack.c.h.b16 %v3575
        %v4161 = vunpack.c.l.b16 %v3576
        %v4162 = vunpack.c.h.b16 %v3576
        %v4163 = vunpack.c.l.b16 %v3577
        %v4164 = vunpack.c.h.b16 %v3577
        %v4165 = vunpack.c.l.b16 %v3578
        %v4166 = vunpack.c.h.b16 %v3578
        %v4167 = vunpack.c.l.b16 %v3579
        %v4168 = vunpack.c.h.b16 %v3579
        %v4169 = vunpack.c.l.b16 %v3580
        %v4170 = vunpack.c.h.b16 %v3580
        %v4171 = vunpack.c.l.b16 %v3581
        %v4172 = vunpack.c.h.b16 %v3581
        %v4173 = vunpack.c.l.b16 %v3582
        %v4174 = vunpack.c.h.b16 %v3582
        %v4175 = vunpack.c.l.b16 %v3583
        %v4176 = vunpack.c.h.b16 %v3583
        %v4177 = vunpack.c.l.b16 %v3584
        %v4178 = vunpack.c.h.b16 %v3584
        %v4179 = vunpack.c.l.b16 %v3585
        %v4180 = vunpack.c.h.b16 %v3585
        %v4181 = vunpack.c.l.b16 %v3586
        %v4182 = vunpack.c.h.b16 %v3586
        %v4183 = vunpack.c.l.b16 %v3587
        %v4184 = vunpack.c.h.b16 %v3587
        %v4185 = vunpack.c.l.b16 %v3588
        %v4186 = vunpack.c.h.b16 %v3588
        %v4187 = vunpack.c.l.b16 %v3589
        %v4188 = vunpack.c.h.b16 %v3589
        %v4189 = vunpack.c.l.b16 %v3590
        %v4190 = vunpack.c.h.b16 %v3590
        %v4191 = vunpack.c.l.b16 %v3591
        %v4192 = vunpack.c.h.b16 %v3591
        %v4193 = vunpack.c.l.b16 %v3592
        %v4194 = vunpack.c.h.b16 %v3592
        %v4195 = vunpack.c.l.b16 %v3593
        %v4196 = vunpack.c.h.b16 %v3593
        %v4197 = vunpack.c.l.b16 %v3594
        %v4198 = vunpack.c.h.b16 %v3594
        %v4199 = vunpack.c.l.b16 %v3595
        %v4200 = vunpack.c.h.b16 %v3595
        %v4201 = vunpack.c.l.b16 %v3596
        %v4202 = vunpack.c.h.b16 %v3596
        %v4203 = vunpack.c.l.b16 %v3597
        %v4204 = vunpack.c.h.b16 %v3597
        %v4205 = vunpack.c.l.b16 %v3598
        %v4206 = vunpack.c.h.b16 %v3598
        %v4207 = vunpack.c.l.b16 %v3599
        %v4208 = vunpack.c.h.b16 %v3599
        %v4209 = vunpack.c.l.b16 %v3600
        %v4210 = vunpack.c.h.b16 %v3600
        %v4211 = vunpack.c.l.b16 %v3601
        %v4212 = vunpack.c.h.b16 %v3601
        %v4213 = vunpack.c.l.b16 %v3602
        %v4214 = vunpack.c.h.b16 %v3602
        %v4215 = vunpack.c.l.b16 %v3603
        %v4216 = vunpack.c.h.b16 %v3603
        %v4217 = vunpack.c.l.b16 %v3604
        %v4218 = vunpack.c.h.b16 %v3604
        %v4219 = vunpack.c.l.b16 %v3605
        %v4220 = vunpack.c.h.b16 %v3605
        %v4221 = vunpack.c.l.b16 %v3606
        %v4222 = vunpack.c.h.b16 %v3606
        %v4223 = vunpack.c.l.b16 %v3607
        %v4224 = vunpack.c.h.b16 %v3607
        %v4225 = vunpack.c.l.b16 %v3608
        %v4226 = vunpack.c.h.b16 %v3608
        %v4227 = vunpack.c.l.b16 %v3609
        %v4228 = vunpack.c.h.b16 %v3609
        %v4229 = vunpack.c.l.b16 %v3610
        %v4230 = vunpack.c.h.b16 %v3610
        %v4231 = vunpack.c.l.b16 %v3611
        %v4232 = vunpack.c.h.b16 %v3611
        %v4233 = vunpack.c.l.b16 %v3612
        %v4234 = vunpack.c.h.b16 %v3612
        %v4235 = vunpack.c.l.b16 %v3613
        %v4236 = vunpack.c.h.b16 %v3613
        %v4237 = vunpack.c.l.b16 %v3614
        %v4238 = vunpack.c.h.b16 %v3614
        %v4239 = vunpack.c.l.b16 %v3615
        %v4240 = vunpack.c.h.b16 %v3615
        %v4241 = vunpack.c.l.b16 %v3616
        %v4242 = vunpack.c.h.b16 %v3616
        %v4243 = vunpack.c.l.b16 %v3617
        %v4244 = vunpack.c.h.b16 %v3617
        %v4245 = vunpack.c.l.b16 %v3618
        %v4246 = vunpack.c.h.b16 %v3618
        %v4247 = vunpack.c.l.b16 %v3619
        %v4248 = vunpack.c.h.b16 %v3619
        %v4249 = vunpack.c.l.b16 %v3620
        %v4250 = vunpack.c.h.b16 %v3620
        %v4251 = vunpack.c.l.b16 %v3621
        %v4252 = vunpack.c.h.b16 %v3621
        %v4253 = vunpack.c.l.b16 %v3622
        %v4254 = vunpack.c.h.b16 %v3622
        %v4255 = vunpack.c.l.b16 %v3623
        %v4256 = vunpack.c.h.b16 %v3623
        %v4257 = vunpack.c.l.b16 %v3624
        %v4258 = vunpack.c.h.b16 %v3624
        %v4259 = vunpack.c.l.b16 %v3625
        %v4260 = vunpack.c.h.b16 %v3625
        %v4261 = vunpack.c.l.b16 %v3626
        %v4262 = vunpack.c.h.b16 %v3626
        %v4263 = vunpack.c.l.b16 %v3627
        %v4264 = vunpack.c.h.b16 %v3627
        %v4265 = vunpack.c.l.b16 %v3628
        %v4266 = vunpack.c.h.b16 %v3628
        %v4267 = vunpack.c.l.b16 %v3629
        %v4268 = vunpack.c.h.b16 %v3629
        %v4269 = vunpack.c.l.b16 %v3630
        %v4270 = vunpack.c.h.b16 %v3630
        %v4271 = vunpack.c.l.b16 %v3631
        %v4272 = vunpack.c.h.b16 %v3631
        %v4273 = vunpack.c.l.b16 %v3632
        %v4274 = vunpack.c.h.b16 %v3632
        %v4275 = vunpack.c.l.b16 %v3633
        %v4276 = vunpack.c.h.b16 %v3633
        %v4277 = vunpack.c.l.b16 %v3634
        %v4278 = vunpack.c.h.b16 %v3634
        %v4279 = vunpack.c.l.b16 %v3635
        %v4280 = vunpack.c.h.b16 %v3635
        %v4281 = vunpack.c.l.b16 %v3636
        %v4282 = vunpack.c.h.b16 %v3636
        %v4283 = vunpack.c.l.b16 %v3637
        %v4284 = vunpack.c.h.b16 %v3637
        %v4285 = vunpack.c.l.b16 %v3638
        %v4286 = vunpack.c.h.b16 %v3638
        %v4287 = vunpack.c.l.b16 %v3639
        %v4288 = vunpack.c.h.b16 %v3639
        %v4289 = vunpack.c.l.b16 %v3640
        %v4290 = vunpack.c.h.b16 %v3640
        %v4291 = vunpack.c.l.b16 %v3641
        %v4292 = vunpack.c.h.b16 %v3641
        %v4293 = vunpack.c.l.b16 %v3642
        %v4294 = vunpack.c.h.b16 %v3642
        %v4295 = vunpack.c.l.b16 %v3643
        %v4296 = vunpack.c.h.b16 %v3643
        %v4297 = vunpack.c.l.b16 %v3644
        %v4298 = vunpack.c.h.b16 %v3644
        %v4299 = vunpack.c.l.b16 %v3645
        %v4300 = vunpack.c.h.b16 %v3645
        %v4301 = vunpack.c.l.b16 %v3646
        %v4302 = vunpack.c.h.b16 %v3646
        %v4303 = vunpack.c.l.b16 %v3647
        %v4304 = vunpack.c.h.b16 %v3647
        %v4305 = vunpack.c.l.b16 %v3648
        %v4306 = vunpack.c.h.b16 %v3648
        %v4307 = vunpack.c.l.b16 %v3649
        %v4308 = vunpack.c.h.b16 %v3649
        %v4309 = vunpack.c.l.b16 %v3650
        %v4310 = vunpack.c.h.b16 %v3650
        %v4311 = vunpack.c.l.b16 %v3651
        %v4312 = vunpack.c.h.b16 %v3651
        %v4313 = vunpack.c.l.b16 %v3652
        %v4314 = vunpack.c.h.b16 %v3652
        %v4315 = vunpack.c.l.b16 %v3653
        %v4316 = vunpack.c.h.b16 %v3653
        %v4317 = vunpack.c.l.b16 %v3654
        %v4318 = vunpack.c.h.b16 %v3654
        %v4319 = vunpack.c.l.b16 %v3655
        %v4320 = vunpack.c.h.b16 %v3655
        %v4321 = vunpack.c.l.b16 %v3656
        %v4322 = vunpack.c.h.b16 %v3656
        %v4323 = vunpack.c.l.b16 %v3657
        %v4324 = vunpack.c.h.b16 %v3657
        %v4325 = vunpack.c.l.b16 %v3658
        %v4326 = vunpack.c.h.b16 %v3658
        %v4327 = vunpack.c.l.b16 %v3659
        %v4328 = vunpack.c.h.b16 %v3659
        %v4329 = vunpack.c.l.b16 %v3660
        %v4330 = vunpack.c.h.b16 %v3660
        %v4331 = vunpack.c.l.b16 %v3661
        %v4332 = vunpack.c.h.b16 %v3661
        %v4333 = vunpack.c.l.b16 %v3662
        %v4334 = vunpack.c.h.b16 %v3662
        %v4335 = vunpack.c.l.b16 %v3663
        %v4336 = vunpack.c.h.b16 %v3663
        %v4337 = vunpack.c.l.b16 %v3664
        %v4338 = vunpack.c.h.b16 %v3664
        %v4339 = vunpack.c.l.b16 %v3665
        %v4340 = vunpack.c.h.b16 %v3665
        %v4341 = vunpack.c.l.b16 %v3666
        %v4342 = vunpack.c.h.b16 %v3666
        %v4343 = vunpack.c.l.b16 %v3667
        %v4344 = vunpack.c.h.b16 %v3667
        %v4345 = vunpack.c.l.b16 %v3668
        %v4346 = vunpack.c.h.b16 %v3668
        %v4347 = vunpack.c.l.b16 %v3669
        %v4348 = vunpack.c.h.b16 %v3669
        %v4349 = vunpack.c.l.b16 %v3670
        %v4350 = vunpack.c.h.b16 %v3670
        %v4351 = vunpack.c.l.b16 %v3671
        %v4352 = vunpack.c.h.b16 %v3671
        %v4353 = vunpack.c.l.b16 %v3672
        %v4354 = vunpack.c.h.b16 %v3672
        %v4355 = vunpack.c.l.b16 %v3673
        %v4356 = vunpack.c.h.b16 %v3673
        %v4357 = vunpack.c.l.b16 %v3674
        %v4358 = vunpack.c.h.b16 %v3674
        %v4359 = vunpack.c.l.b16 %v3675
        %v4360 = vunpack.c.h.b16 %v3675
        %v4361 = vunpack.c.l.b16 %v3676
        %v4362 = vunpack.c.h.b16 %v3676
        %v4363 = vunpack.c.l.b16 %v3677
        %v4364 = vunpack.c.h.b16 %v3677
        %v4365 = vunpack.c.l.b16 %v3678
        %v4366 = vunpack.c.h.b16 %v3678
        %v4367 = vunpack.c.l.b16 %v3679
        %v4368 = vunpack.c.h.b16 %v3679
        %v4369 = vunpack.c.l.b16 %v3680
        %v4370 = vunpack.c.h.b16 %v3680
        %v4371 = vunpack.c.l.b16 %v3681
        %v4372 = vunpack.c.h.b16 %v3681
        %v4373 = vunpack.c.l.b16 %v3682
        %v4374 = vunpack.c.h.b16 %v3682
        %v4375 = vunpack.c.l.b16 %v3683
        %v4376 = vunpack.c.h.b16 %v3683
        %v4377 = vunpack.c.l.b16 %v3684
        %v4378 = vunpack.c.h.b16 %v3684
        %v4379 = vunpack.c.l.b16 %v3685
        %v4380 = vunpack.c.h.b16 %v3685
        %v4381 = vunpack.c.l.b16 %v3686
        %v4382 = vunpack.c.h.b16 %v3686
        %v4383 = vunpack.c.l.b16 %v3687
        %v4384 = vunpack.c.h.b16 %v3687
        %v4385 = vunpack.c.l.b16 %v3688
        %v4386 = vunpack.c.h.b16 %v3688
        %v4387 = vunpack.c.l.b16 %v3689
        %v4388 = vunpack.c.h.b16 %v3689
        %v4389 = vunpack.c.l.b16 %v3690
        %v4390 = vunpack.c.h.b16 %v3690
        %v4391 = vunpack.c.l.b16 %v3691
        %v4392 = vunpack.c.h.b16 %v3691
        %v4393 = vunpack.c.l.b16 %v3692
        %v4394 = vunpack.c.h.b16 %v3692
        %v4395 = vunpack.c.l.b16 %v3693
        %v4396 = vunpack.c.h.b16 %v3693
        %v4397 = vunpack.c.l.b16 %v3694
        %v4398 = vunpack.c.h.b16 %v3694
        %v4399 = vunpack.c.l.b16 %v3695
        %v4400 = vunpack.c.h.b16 %v3695
        %v4401 = vunpack.c.l.b16 %v3696
        %v4402 = vunpack.c.h.b16 %v3696
        %v4403 = vunpack.c.l.b16 %v3697
        %v4404 = vunpack.c.h.b16 %v3697
        %v4405 = vunpack.c.l.b16 %v3698
        %v4406 = vunpack.c.h.b16 %v3698
        %v4407 = vunpack.c.l.b16 %v3699
        %v4408 = vunpack.c.h.b16 %v3699
        %v4409 = vunpack.c.l.b16 %v3700
        %v4410 = vunpack.c.h.b16 %v3700
        %v4411 = vunpack.c.l.b16 %v3701
        %v4412 = vunpack.c.h.b16 %v3701
        %v4413 = vunpack.c.l.b16 %v3702
        %v4414 = vunpack.c.h.b16 %v3702
        %v4415 = vunpack.c.l.b16 %v3703
        %v4416 = vunpack.c.h.b16 %v3703
        %v4417 = vunpack.c.l.b16 %v3704
        %v4418 = vunpack.c.h.b16 %v3704
        %v4419 = vunpack.c.l.b16 %v3705
        %v4420 = vunpack.c.h.b16 %v3705
        %v4421 = vunpack.c.l.b16 %v3706
        %v4422 = vunpack.c.h.b16 %v3706
        %v4423 = vunpack.c.l.b16 %v3707
        %v4424 = vunpack.c.h.b16 %v3707
        %v4425 = vunpack.c.l.b16 %v3708
        %v4426 = vunpack.c.h.b16 %v3708
        %v4427 = vunpack.c.l.b16 %v3709
        %v4428 = vunpack.c.h.b16 %v3709
        %v4429 = vunpack.c.l.b16 %v3710
        %v4430 = vunpack.c.h.b16 %v3710
        %v4431 = vunpack.c.l.b16 %v3711
        %v4432 = vunpack.c.h.b16 %v3711
        %v4433 = vunpack.c.l.b16 %v3712
        %v4434 = vunpack.c.h.b16 %v3712
        %v4435 = vunpack.c.l.b16 %v3713
        %v4436 = vunpack.c.h.b16 %v3713
        %v4437 = vunpack.c.l.b16 %v3714
        %v4438 = vunpack.c.h.b16 %v3714
        %v4439 = vunpack.c.l.b16 %v3715
        %v4440 = vunpack.c.h.b16 %v3715
        %v4441 = vunpack.c.l.b16 %v3716
        %v4442 = vunpack.c.h.b16 %v3716
        %v4443 = vunpack.c.l.b16 %v3717
        %v4444 = vunpack.c.h.b16 %v3717
        %v4445 = vunpack.c.l.b16 %v3718
        %v4446 = vunpack.c.h.b16 %v3718
        %v4447 = vunpack.c.l.b16 %v3719
        %v4448 = vunpack.c.h.b16 %v3719
        %v4449 = vunpack.c.l.b16 %v3720
        %v4450 = vunpack.c.h.b16 %v3720
        %v4451 = vunpack.c.l.b16 %v3721
        %v4452 = vunpack.c.h.b16 %v3721
        %v4453 = vunpack.c.l.b16 %v3722
        %v4454 = vunpack.c.h.b16 %v3722
        %v4455 = vunpack.c.l.b16 %v3723
        %v4456 = vunpack.c.h.b16 %v3723
        %v4457 = vunpack.c.l.b16 %v3724
        %v4458 = vunpack.c.h.b16 %v3724
        %v4459 = vunpack.c.l.b16 %v3725
        %v4460 = vunpack.c.h.b16 %v3725
        %v4461 = vunpack.c.l.b16 %v3726
        %v4462 = vunpack.c.h.b16 %v3726
        %v4463 = vunpack.c.l.b16 %v3727
        %v4464 = vunpack.c.h.b16 %v3727
        %v4465 = vunpack.c.l.b16 %v3728
        %v4466 = vunpack.c.h.b16 %v3728
        %v4467 = vunpack.c.l.b16 %v3729
        %v4468 = vunpack.c.h.b16 %v3729
        %v4469 = vunpack.c.l.b16 %v3730
        %v4470 = vunpack.c.h.b16 %v3730
        %v4471 = vunpack.c.l.b16 %v3731
        %v4472 = vunpack.c.h.b16 %v3731
        %v4473 = vunpack.c.l.b16 %v3732
        %v4474 = vunpack.c.h.b16 %v3732
        %v4475 = vunpack.c.l.b16 %v3733
        %v4476 = vunpack.c.h.b16 %v3733
        %v4477 = vunpack.c.l.b16 %v3734
        %v4478 = vunpack.c.h.b16 %v3734
        %v4479 = vunpack.c.l.b16 %v3735
        %v4480 = vunpack.c.h.b16 %v3735
        %v4481 = vunpack.c.l.b16 %v3736
        %v4482 = vunpack.c.h.b16 %v3736
        %v4483 = vunpack.c.l.b16 %v3737
        %v4484 = vunpack.c.h.b16 %v3737
        %v4485 = vunpack.c.l.b16 %v3738
        %v4486 = vunpack.c.h.b16 %v3738
        %v4487 = vunpack.c.l.b16 %v3739
        %v4488 = vunpack.c.h.b16 %v3739
        %v4489 = vunpack.c.l.b16 %v3740
        %v4490 = vunpack.c.h.b16 %v3740
        %v4491 = vunpack.c.l.b16 %v3741
        %v4492 = vunpack.c.h.b16 %v3741
        %v4493 = vunpack.c.l.b16 %v3742
        %v4494 = vunpack.c.h.b16 %v3742
        %v4495 = vunpack.c.l.b16 %v3743
        %v4496 = vunpack.c.h.b16 %v3743
        %v4497 = vunpack.c.l.b16 %v3744
        %v4498 = vunpack.c.h.b16 %v3744
        %v4499 = vunpack.c.l.b16 %v3745
        %v4500 = vunpack.c.h.b16 %v3745
        %v4501 = vunpack.c.l.b16 %v3746
        %v4502 = vunpack.c.h.b16 %v3746
        %v4503 = vunpack.c.l.b16 %v3747
        %v4504 = vunpack.c.h.b16 %v3747
        %v4505 = vunpack.c.l.b16 %v3748
        %v4506 = vunpack.c.h.b16 %v3748
        %v4507 = vunpack.c.l.b16 %v3749
        %v4508 = vunpack.c.h.b16 %v3749
        %v4509 = vunpack.c.l.b16 %v3750
        %v4510 = vunpack.c.h.b16 %v3750
        %v4511 = vunpack.c.l.b16 %v3751
        %v4512 = vunpack.c.h.b16 %v3751
        %v4513 = vunpack.c.l.b16 %v3752
        %v4514 = vunpack.c.h.b16 %v3752
        %v4515 = vunpack.c.l.b16 %v3753
        %v4516 = vunpack.c.h.b16 %v3753
        %v4517 = vunpack.c.l.b16 %v3754
        %v4518 = vunpack.c.h.b16 %v3754
        %v4519 = vunpack.c.l.b16 %v3755
        %v4520 = vunpack.c.h.b16 %v3755
        %v4521 = vunpack.c.l.b16 %v3756
        %v4522 = vunpack.c.h.b16 %v3756
        %v4523 = vunpack.c.l.b16 %v3757
        %v4524 = vunpack.c.h.b16 %v3757
        %v4525 = vunpack.c.l.b16 %v3758
        %v4526 = vunpack.c.h.b16 %v3758
        %v4527 = vunpack.c.l.b16 %v3759
        %v4528 = vunpack.c.h.b16 %v3759
        %v4529 = vunpack.c.l.b16 %v3760
        %v4530 = vunpack.c.h.b16 %v3760
        %v4531 = vunpack.c.l.b16 %v3761
        %v4532 = vunpack.c.h.b16 %v3761
        %v4533 = vunpack.c.l.b16 %v3762
        %v4534 = vunpack.c.h.b16 %v3762
        %v4535 = vlaneseq
        %v4536 = vand.u32 %v4535, 127
        %v4537 = vperm.slane %v4023, %v4536
        %v4538 = vadd.s32 %v4536, 4294967288
        %v4539 = vperm.slane %v4024, %v4538
        %vm4540 = vcmask 130112
        %v4541 = vsel %vm4540, %v4539, %v4537
        %v4542 = vadd.s32 %v4536, 4294967280
        %v4543 = vperm.slane %v4025, %v4542
        %vm4544 = vcmask 195712
        %v4545 = vsel %vm4544, %v4543, %v4541
        %v4546 = vadd.s32 %v4536, 4294967272
        %v4547 = vperm.slane %v4026, %v4546
        %vm4548 = vcmask 261312
        %v4549 = vsel %vm4548, %v4547, %v4545
        %v4550 = vperm.slane %v4027, %v4536
        %v4551 = vperm.slane %v4028, %v4538
        %v4552 = vsel %vm4540, %v4551, %v4550
        %v4553 = vperm.slane %v4029, %v4542
        %v4554 = vsel %vm4544, %v4553, %v4552
        %v4555 = vperm.slane %v4030, %v4546
        %v4556 = vsel %vm4548, %v4555, %v4554
        %v4557 = vperm.slane %v4031, %v4536
        %v4558 = vperm.slane %v4032, %v4538
        %v4559 = vsel %vm4540, %v4558, %v4557
        %v4560 = vperm.slane %v4033, %v4542
        %v4561 = vsel %vm4544, %v4560, %v4559
        %v4562 = vperm.slane %v4034, %v4546
        %v4563 = vsel %vm4548, %v4562, %v4561
        %v4564 = vperm.slane %v4035, %v4536
        %v4565 = vperm.slane %v4036, %v4538
        %v4566 = vsel %vm4540, %v4565, %v4564
        %v4567 = vperm.slane %v4037, %v4542
        %v4568 = vsel %vm4544, %v4567, %v4566
        %v4569 = vperm.slane %v4038, %v4546
        %v4570 = vsel %vm4548, %v4569, %v4568
        %v4571 = vperm.slane %v4039, %v4536
        %v4572 = vperm.slane %v4040, %v4538
        %v4573 = vsel %vm4540, %v4572, %v4571
        %v4574 = vperm.slane %v4041, %v4542
        %v4575 = vsel %vm4544, %v4574, %v4573
        %v4576 = vperm.slane %v4042, %v4546
        %v4577 = vsel %vm4548, %v4576, %v4575
        %v4578 = vperm.slane %v4043, %v4536
        %v4579 = vperm.slane %v4044, %v4538
        %v4580 = vsel %vm4540, %v4579, %v4578
        %v4581 = vperm.slane %v4045, %v4542
        %v4582 = vsel %vm4544, %v4581, %v4580
        %v4583 = vperm.slane %v4046, %v4546
        %v4584 = vsel %vm4548, %v4583, %v4582
        %v4585 = vperm.slane %v4047, %v4536
        %v4586 = vperm.slane %v4048, %v4538
        %v4587 = vsel %vm4540, %v4586, %v4585
        %v4588 = vperm.slane %v4049, %v4542
        %v4589 = vsel %vm4544, %v4588, %v4587
        %v4590 = vperm.slane %v4050, %v4546
        %v4591 = vsel %vm4548, %v4590, %v4589
        %v4592 = vperm.slane %v4051, %v4536
        %v4593 = vperm.slane %v4052, %v4538
        %v4594 = vsel %vm4540, %v4593, %v4592
        %v4595 = vperm.slane %v4053, %v4542
        %v4596 = vsel %vm4544, %v4595, %v4594
        %v4597 = vperm.slane %v4054, %v4546
        %v4598 = vsel %vm4548, %v4597, %v4596
        %v4599 = vperm.slane %v4055, %v4536
        %v4600 = vperm.slane %v4056, %v4538
        %v4601 = vsel %vm4540, %v4600, %v4599
        %v4602 = vperm.slane %v4057, %v4542
        %v4603 = vsel %vm4544, %v4602, %v4601
        %v4604 = vperm.slane %v4058, %v4546
        %v4605 = vsel %vm4548, %v4604, %v4603
        %v4606 = vperm.slane %v4059, %v4536
        %v4607 = vperm.slane %v4060, %v4538
        %v4608 = vsel %vm4540, %v4607, %v4606
        %v4609 = vperm.slane %v4061, %v4542
        %v4610 = vsel %vm4544, %v4609, %v4608
        %v4611 = vperm.slane %v4062, %v4546
        %v4612 = vsel %vm4548, %v4611, %v4610
        %v4613 = vperm.slane %v4063, %v4536
        %v4614 = vperm.slane %v4064, %v4538
        %v4615 = vsel %vm4540, %v4614, %v4613
        %v4616 = vperm.slane %v4065, %v4542
        %v4617 = vsel %vm4544, %v4616, %v4615
        %v4618 = vperm.slane %v4066, %v4546
        %v4619 = vsel %vm4548, %v4618, %v4617
        %v4620 = vperm.slane %v4067, %v4536
        %v4621 = vperm.slane %v4068, %v4538
        %v4622 = vsel %vm4540, %v4621, %v4620
        %v4623 = vperm.slane %v4069, %v4542
        %v4624 = vsel %vm4544, %v4623, %v4622
        %v4625 = vperm.slane %v4070, %v4546
        %v4626 = vsel %vm4548, %v4625, %v4624
        %v4627 = vperm.slane %v4071, %v4536
        %v4628 = vperm.slane %v4072, %v4538
        %v4629 = vsel %vm4540, %v4628, %v4627
        %v4630 = vperm.slane %v4073, %v4542
        %v4631 = vsel %vm4544, %v4630, %v4629
        %v4632 = vperm.slane %v4074, %v4546
        %v4633 = vsel %vm4548, %v4632, %v4631
        %v4634 = vperm.slane %v4075, %v4536
        %v4635 = vperm.slane %v4076, %v4538
        %v4636 = vsel %vm4540, %v4635, %v4634
        %v4637 = vperm.slane %v4077, %v4542
        %v4638 = vsel %vm4544, %v4637, %v4636
        %v4639 = vperm.slane %v4078, %v4546
        %v4640 = vsel %vm4548, %v4639, %v4638
        %v4641 = vperm.slane %v4079, %v4536
        %v4642 = vperm.slane %v4080, %v4538
        %v4643 = vsel %vm4540, %v4642, %v4641
        %v4644 = vperm.slane %v4081, %v4542
        %v4645 = vsel %vm4544, %v4644, %v4643
        %v4646 = vperm.slane %v4082, %v4546
        %v4647 = vsel %vm4548, %v4646, %v4645
        %v4648 = vperm.slane %v4083, %v4536
        %v4649 = vperm.slane %v4084, %v4538
        %v4650 = vsel %vm4540, %v4649, %v4648
        %v4651 = vperm.slane %v4085, %v4542
        %v4652 = vsel %vm4544, %v4651, %v4650
        %v4653 = vperm.slane %v4086, %v4546
        %v4654 = vsel %vm4548, %v4653, %v4652
        %v4655 = vperm.slane %v4087, %v4536
        %v4656 = vperm.slane %v4088, %v4538
        %v4657 = vsel %vm4540, %v4656, %v4655
        %v4658 = vperm.slane %v4089, %v4542
        %v4659 = vsel %vm4544, %v4658, %v4657
        %v4660 = vperm.slane %v4090, %v4546
        %v4661 = vsel %vm4548, %v4660, %v4659
        %v4662 = vperm.slane %v4091, %v4536
        %v4663 = vperm.slane %v4092, %v4538
        %v4664 = vsel %vm4540, %v4663, %v4662
        %v4665 = vperm.slane %v4093, %v4542
        %v4666 = vsel %vm4544, %v4665, %v4664
        %v4667 = vperm.slane %v4094, %v4546
        %v4668 = vsel %vm4548, %v4667, %v4666
        %v4669 = vperm.slane %v4095, %v4536
        %v4670 = vperm.slane %v4096, %v4538
        %v4671 = vsel %vm4540, %v4670, %v4669
        %v4672 = vperm.slane %v4097, %v4542
        %v4673 = vsel %vm4544, %v4672, %v4671
        %v4674 = vperm.slane %v4098, %v4546
        %v4675 = vsel %vm4548, %v4674, %v4673
        %v4676 = vperm.slane %v4099, %v4536
        %v4677 = vperm.slane %v4100, %v4538
        %v4678 = vsel %vm4540, %v4677, %v4676
        %v4679 = vperm.slane %v4101, %v4542
        %v4680 = vsel %vm4544, %v4679, %v4678
        %v4681 = vperm.slane %v4102, %v4546
        %v4682 = vsel %vm4548, %v4681, %v4680
        %v4683 = vperm.slane %v4103, %v4536
        %v4684 = vperm.slane %v4104, %v4538
        %v4685 = vsel %vm4540, %v4684, %v4683
        %v4686 = vperm.slane %v4105, %v4542
        %v4687 = vsel %vm4544, %v4686, %v4685
        %v4688 = vperm.slane %v4106, %v4546
        %v4689 = vsel %vm4548, %v4688, %v4687
        %v4690 = vperm.slane %v4107, %v4536
        %v4691 = vperm.slane %v4108, %v4538
        %v4692 = vsel %vm4540, %v4691, %v4690
        %v4693 = vperm.slane %v4109, %v4542
        %v4694 = vsel %vm4544, %v4693, %v4692
        %v4695 = vperm.slane %v4110, %v4546
        %v4696 = vsel %vm4548, %v4695, %v4694
        %v4697 = vperm.slane %v4111, %v4536
        %v4698 = vperm.slane %v4112, %v4538
        %v4699 = vsel %vm4540, %v4698, %v4697
        %v4700 = vperm.slane %v4113, %v4542
        %v4701 = vsel %vm4544, %v4700, %v4699
        %v4702 = vperm.slane %v4114, %v4546
        %v4703 = vsel %vm4548, %v4702, %v4701
        %v4704 = vperm.slane %v4115, %v4536
        %v4705 = vperm.slane %v4116, %v4538
        %v4706 = vsel %vm4540, %v4705, %v4704
        %v4707 = vperm.slane %v4117, %v4542
        %v4708 = vsel %vm4544, %v4707, %v4706
        %v4709 = vperm.slane %v4118, %v4546
        %v4710 = vsel %vm4548, %v4709, %v4708
        %v4711 = vperm.slane %v4119, %v4536
        %v4712 = vperm.slane %v4120, %v4538
        %v4713 = vsel %vm4540, %v4712, %v4711
        %v4714 = vperm.slane %v4121, %v4542
        %v4715 = vsel %vm4544, %v4714, %v4713
        %v4716 = vperm.slane %v4122, %v4546
        %v4717 = vsel %vm4548, %v4716, %v4715
        %v4718 = vperm.slane %v4123, %v4536
        %v4719 = vperm.slane %v4124, %v4538
        %v4720 = vsel %vm4540, %v4719, %v4718
        %v4721 = vperm.slane %v4125, %v4542
        %v4722 = vsel %vm4544, %v4721, %v4720
        %v4723 = vperm.slane %v4126, %v4546
        %v4724 = vsel %vm4548, %v4723, %v4722
        %v4725 = vperm.slane %v4127, %v4536
        %v4726 = vperm.slane %v4128, %v4538
        %v4727 = vsel %vm4540, %v4726, %v4725
        %v4728 = vperm.slane %v4129, %v4542
        %v4729 = vsel %vm4544, %v4728, %v4727
        %v4730 = vperm.slane %v4130, %v4546
        %v4731 = vsel %vm4548, %v4730, %v4729
        %v4732 = vperm.slane %v4131, %v4536
        %v4733 = vperm.slane %v4132, %v4538
        %v4734 = vsel %vm4540, %v4733, %v4732
        %v4735 = vperm.slane %v4133, %v4542
        %v4736 = vsel %vm4544, %v4735, %v4734
        %v4737 = vperm.slane %v4134, %v4546
        %v4738 = vsel %vm4548, %v4737, %v4736
        %v4739 = vperm.slane %v4135, %v4536
        %v4740 = vperm.slane %v4136, %v4538
        %v4741 = vsel %vm4540, %v4740, %v4739
        %v4742 = vperm.slane %v4137, %v4542
        %v4743 = vsel %vm4544, %v4742, %v4741
        %v4744 = vperm.slane %v4138, %v4546
        %v4745 = vsel %vm4548, %v4744, %v4743
        %v4746 = vperm.slane %v4139, %v4536
        %v4747 = vperm.slane %v4140, %v4538
        %v4748 = vsel %vm4540, %v4747, %v4746
        %v4749 = vperm.slane %v4141, %v4542
        %v4750 = vsel %vm4544, %v4749, %v4748
        %v4751 = vperm.slane %v4142, %v4546
        %v4752 = vsel %vm4548, %v4751, %v4750
        %v4753 = vperm.slane %v4143, %v4536
        %v4754 = vperm.slane %v4144, %v4538
        %v4755 = vsel %vm4540, %v4754, %v4753
        %v4756 = vperm.slane %v4145, %v4542
        %v4757 = vsel %vm4544, %v4756, %v4755
        %v4758 = vperm.slane %v4146, %v4546
        %v4759 = vsel %vm4548, %v4758, %v4757
        %v4760 = vperm.slane %v4147, %v4536
        %v4761 = vperm.slane %v4148, %v4538
        %v4762 = vsel %vm4540, %v4761, %v4760
        %v4763 = vperm.slane %v4149, %v4542
        %v4764 = vsel %vm4544, %v4763, %v4762
        %v4765 = vperm.slane %v4150, %v4546
        %v4766 = vsel %vm4548, %v4765, %v4764
        %v4767 = vperm.slane %v4151, %v4536
        %v4768 = vperm.slane %v4152, %v4538
        %v4769 = vsel %vm4540, %v4768, %v4767
        %v4770 = vperm.slane %v4153, %v4542
        %v4771 = vsel %vm4544, %v4770, %v4769
        %v4772 = vperm.slane %v4154, %v4546
        %v4773 = vsel %vm4548, %v4772, %v4771
        %v4774 = vperm.slane %v4155, %v4536
        %v4775 = vperm.slane %v4156, %v4538
        %v4776 = vsel %vm4540, %v4775, %v4774
        %v4777 = vperm.slane %v4157, %v4542
        %v4778 = vsel %vm4544, %v4777, %v4776
        %v4779 = vperm.slane %v4158, %v4546
        %v4780 = vsel %vm4548, %v4779, %v4778
        %v4781 = vperm.slane %v4159, %v4536
        %v4782 = vperm.slane %v4160, %v4538
        %v4783 = vsel %vm4540, %v4782, %v4781
        %v4784 = vperm.slane %v4161, %v4542
        %v4785 = vsel %vm4544, %v4784, %v4783
        %v4786 = vperm.slane %v4162, %v4546
        %v4787 = vsel %vm4548, %v4786, %v4785
        %v4788 = vperm.slane %v4163, %v4536
        %v4789 = vperm.slane %v4164, %v4538
        %v4790 = vsel %vm4540, %v4789, %v4788
        %v4791 = vperm.slane %v4165, %v4542
        %v4792 = vsel %vm4544, %v4791, %v4790
        %v4793 = vperm.slane %v4166, %v4546
        %v4794 = vsel %vm4548, %v4793, %v4792
        %v4795 = vperm.slane %v4167, %v4536
        %v4796 = vperm.slane %v4168, %v4538
        %v4797 = vsel %vm4540, %v4796, %v4795
        %v4798 = vperm.slane %v4169, %v4542
        %v4799 = vsel %vm4544, %v4798, %v4797
        %v4800 = vperm.slane %v4170, %v4546
        %v4801 = vsel %vm4548, %v4800, %v4799
        %v4802 = vperm.slane %v4171, %v4536
        %v4803 = vperm.slane %v4172, %v4538
        %v4804 = vsel %vm4540, %v4803, %v4802
        %v4805 = vperm.slane %v4173, %v4542
        %v4806 = vsel %vm4544, %v4805, %v4804
        %v4807 = vperm.slane %v4174, %v4546
        %v4808 = vsel %vm4548, %v4807, %v4806
        %v4809 = vperm.slane %v4175, %v4536
        %v4810 = vperm.slane %v4176, %v4538
        %v4811 = vsel %vm4540, %v4810, %v4809
        %v4812 = vperm.slane %v4177, %v4542
        %v4813 = vsel %vm4544, %v4812, %v4811
        %v4814 = vperm.slane %v4178, %v4546
        %v4815 = vsel %vm4548, %v4814, %v4813
        %v4816 = vperm.slane %v4179, %v4536
        %v4817 = vperm.slane %v4180, %v4538
        %v4818 = vsel %vm4540, %v4817, %v4816
        %v4819 = vperm.slane %v4181, %v4542
        %v4820 = vsel %vm4544, %v4819, %v4818
        %v4821 = vperm.slane %v4182, %v4546
        %v4822 = vsel %vm4548, %v4821, %v4820
        %v4823 = vperm.slane %v4183, %v4536
        %v4824 = vperm.slane %v4184, %v4538
        %v4825 = vsel %vm4540, %v4824, %v4823
        %v4826 = vperm.slane %v4185, %v4542
        %v4827 = vsel %vm4544, %v4826, %v4825
        %v4828 = vperm.slane %v4186, %v4546
        %v4829 = vsel %vm4548, %v4828, %v4827
        %v4830 = vperm.slane %v4187, %v4536
        %v4831 = vperm.slane %v4188, %v4538
        %v4832 = vsel %vm4540, %v4831, %v4830
        %v4833 = vperm.slane %v4189, %v4542
        %v4834 = vsel %vm4544, %v4833, %v4832
        %v4835 = vperm.slane %v4190, %v4546
        %v4836 = vsel %vm4548, %v4835, %v4834
        %v4837 = vperm.slane %v4191, %v4536
        %v4838 = vperm.slane %v4192, %v4538
        %v4839 = vsel %vm4540, %v4838, %v4837
        %v4840 = vperm.slane %v4193, %v4542
        %v4841 = vsel %vm4544, %v4840, %v4839
        %v4842 = vperm.slane %v4194, %v4546
        %v4843 = vsel %vm4548, %v4842, %v4841
        %v4844 = vperm.slane %v4195, %v4536
        %v4845 = vperm.slane %v4196, %v4538
        %v4846 = vsel %vm4540, %v4845, %v4844
        %v4847 = vperm.slane %v4197, %v4542
        %v4848 = vsel %vm4544, %v4847, %v4846
        %v4849 = vperm.slane %v4198, %v4546
        %v4850 = vsel %vm4548, %v4849, %v4848
        %v4851 = vperm.slane %v4199, %v4536
        %v4852 = vperm.slane %v4200, %v4538
        %v4853 = vsel %vm4540, %v4852, %v4851
        %v4854 = vperm.slane %v4201, %v4542
        %v4855 = vsel %vm4544, %v4854, %v4853
        %v4856 = vperm.slane %v4202, %v4546
        %v4857 = vsel %vm4548, %v4856, %v4855
        %v4858 = vperm.slane %v4203, %v4536
        %v4859 = vperm.slane %v4204, %v4538
        %v4860 = vsel %vm4540, %v4859, %v4858
        %v4861 = vperm.slane %v4205, %v4542
        %v4862 = vsel %vm4544, %v4861, %v4860
        %v4863 = vperm.slane %v4206, %v4546
        %v4864 = vsel %vm4548, %v4863, %v4862
        %v4865 = vperm.slane %v4207, %v4536
        %v4866 = vperm.slane %v4208, %v4538
        %v4867 = vsel %vm4540, %v4866, %v4865
        %v4868 = vperm.slane %v4209, %v4542
        %v4869 = vsel %vm4544, %v4868, %v4867
        %v4870 = vperm.slane %v4210, %v4546
        %v4871 = vsel %vm4548, %v4870, %v4869
        %v4872 = vperm.slane %v4211, %v4536
        %v4873 = vperm.slane %v4212, %v4538
        %v4874 = vsel %vm4540, %v4873, %v4872
        %v4875 = vperm.slane %v4213, %v4542
        %v4876 = vsel %vm4544, %v4875, %v4874
        %v4877 = vperm.slane %v4214, %v4546
        %v4878 = vsel %vm4548, %v4877, %v4876
        %v4879 = vperm.slane %v4215, %v4536
        %v4880 = vperm.slane %v4216, %v4538
        %v4881 = vsel %vm4540, %v4880, %v4879
        %v4882 = vperm.slane %v4217, %v4542
        %v4883 = vsel %vm4544, %v4882, %v4881
        %v4884 = vperm.slane %v4218, %v4546
        %v4885 = vsel %vm4548, %v4884, %v4883
        %v4886 = vperm.slane %v4219, %v4536
        %v4887 = vperm.slane %v4220, %v4538
        %v4888 = vsel %vm4540, %v4887, %v4886
        %v4889 = vperm.slane %v4221, %v4542
        %v4890 = vsel %vm4544, %v4889, %v4888
        %v4891 = vperm.slane %v4222, %v4546
        %v4892 = vsel %vm4548, %v4891, %v4890
        %v4893 = vperm.slane %v4223, %v4536
        %v4894 = vperm.slane %v4224, %v4538
        %v4895 = vsel %vm4540, %v4894, %v4893
        %v4896 = vperm.slane %v4225, %v4542
        %v4897 = vsel %vm4544, %v4896, %v4895
        %v4898 = vperm.slane %v4226, %v4546
        %v4899 = vsel %vm4548, %v4898, %v4897
        %v4900 = vperm.slane %v4227, %v4536
        %v4901 = vperm.slane %v4228, %v4538
        %v4902 = vsel %vm4540, %v4901, %v4900
        %v4903 = vperm.slane %v4229, %v4542
        %v4904 = vsel %vm4544, %v4903, %v4902
        %v4905 = vperm.slane %v4230, %v4546
        %v4906 = vsel %vm4548, %v4905, %v4904
        %v4907 = vperm.slane %v4231, %v4536
        %v4908 = vperm.slane %v4232, %v4538
        %v4909 = vsel %vm4540, %v4908, %v4907
        %v4910 = vperm.slane %v4233, %v4542
        %v4911 = vsel %vm4544, %v4910, %v4909
        %v4912 = vperm.slane %v4234, %v4546
        %v4913 = vsel %vm4548, %v4912, %v4911
        %v4914 = vperm.slane %v4235, %v4536
        %v4915 = vperm.slane %v4236, %v4538
        %v4916 = vsel %vm4540, %v4915, %v4914
        %v4917 = vperm.slane %v4237, %v4542
        %v4918 = vsel %vm4544, %v4917, %v4916
        %v4919 = vperm.slane %v4238, %v4546
        %v4920 = vsel %vm4548, %v4919, %v4918
        %v4921 = vperm.slane %v4239, %v4536
        %v4922 = vperm.slane %v4240, %v4538
        %v4923 = vsel %vm4540, %v4922, %v4921
        %v4924 = vperm.slane %v4241, %v4542
        %v4925 = vsel %vm4544, %v4924, %v4923
        %v4926 = vperm.slane %v4242, %v4546
        %v4927 = vsel %vm4548, %v4926, %v4925
        %v4928 = vperm.slane %v4243, %v4536
        %v4929 = vperm.slane %v4244, %v4538
        %v4930 = vsel %vm4540, %v4929, %v4928
        %v4931 = vperm.slane %v4245, %v4542
        %v4932 = vsel %vm4544, %v4931, %v4930
        %v4933 = vperm.slane %v4246, %v4546
        %v4934 = vsel %vm4548, %v4933, %v4932
        %v4935 = vperm.slane %v4247, %v4536
        %v4936 = vperm.slane %v4248, %v4538
        %v4937 = vsel %vm4540, %v4936, %v4935
        %v4938 = vperm.slane %v4249, %v4542
        %v4939 = vsel %vm4544, %v4938, %v4937
        %v4940 = vperm.slane %v4250, %v4546
        %v4941 = vsel %vm4548, %v4940, %v4939
        %v4942 = vperm.slane %v4251, %v4536
        %v4943 = vperm.slane %v4252, %v4538
        %v4944 = vsel %vm4540, %v4943, %v4942
        %v4945 = vperm.slane %v4253, %v4542
        %v4946 = vsel %vm4544, %v4945, %v4944
        %v4947 = vperm.slane %v4254, %v4546
        %v4948 = vsel %vm4548, %v4947, %v4946
        %v4949 = vperm.slane %v4255, %v4536
        %v4950 = vperm.slane %v4256, %v4538
        %v4951 = vsel %vm4540, %v4950, %v4949
        %v4952 = vperm.slane %v4257, %v4542
        %v4953 = vsel %vm4544, %v4952, %v4951
        %v4954 = vperm.slane %v4258, %v4546
        %v4955 = vsel %vm4548, %v4954, %v4953
        %v4956 = vperm.slane %v4259, %v4536
        %v4957 = vperm.slane %v4260, %v4538
        %v4958 = vsel %vm4540, %v4957, %v4956
        %v4959 = vperm.slane %v4261, %v4542
        %v4960 = vsel %vm4544, %v4959, %v4958
        %v4961 = vperm.slane %v4262, %v4546
        %v4962 = vsel %vm4548, %v4961, %v4960
        %v4963 = vperm.slane %v4263, %v4536
        %v4964 = vperm.slane %v4264, %v4538
        %v4965 = vsel %vm4540, %v4964, %v4963
        %v4966 = vperm.slane %v4265, %v4542
        %v4967 = vsel %vm4544, %v4966, %v4965
        %v4968 = vperm.slane %v4266, %v4546
        %v4969 = vsel %vm4548, %v4968, %v4967
        %v4970 = vperm.slane %v4267, %v4536
        %v4971 = vperm.slane %v4268, %v4538
        %v4972 = vsel %vm4540, %v4971, %v4970
        %v4973 = vperm.slane %v4269, %v4542
        %v4974 = vsel %vm4544, %v4973, %v4972
        %v4975 = vperm.slane %v4270, %v4546
        %v4976 = vsel %vm4548, %v4975, %v4974
        %v4977 = vperm.slane %v4271, %v4536
        %v4978 = vperm.slane %v4272, %v4538
        %v4979 = vsel %vm4540, %v4978, %v4977
        %v4980 = vperm.slane %v4273, %v4542
        %v4981 = vsel %vm4544, %v4980, %v4979
        %v4982 = vperm.slane %v4274, %v4546
        %v4983 = vsel %vm4548, %v4982, %v4981
        %v4984 = vperm.slane %v4275, %v4536
        %v4985 = vperm.slane %v4276, %v4538
        %v4986 = vsel %vm4540, %v4985, %v4984
        %v4987 = vperm.slane %v4277, %v4542
        %v4988 = vsel %vm4544, %v4987, %v4986
        %v4989 = vperm.slane %v4278, %v4546
        %v4990 = vsel %vm4548, %v4989, %v4988
        %v4991 = vperm.slane %v4279, %v4536
        %v4992 = vperm.slane %v4280, %v4538
        %v4993 = vsel %vm4540, %v4992, %v4991
        %v4994 = vperm.slane %v4281, %v4542
        %v4995 = vsel %vm4544, %v4994, %v4993
        %v4996 = vperm.slane %v4282, %v4546
        %v4997 = vsel %vm4548, %v4996, %v4995
        %v4998 = vperm.slane %v4283, %v4536
        %v4999 = vperm.slane %v4284, %v4538
        %v5000 = vsel %vm4540, %v4999, %v4998
        %v5001 = vperm.slane %v4285, %v4542
        %v5002 = vsel %vm4544, %v5001, %v5000
        %v5003 = vperm.slane %v4286, %v4546
        %v5004 = vsel %vm4548, %v5003, %v5002
        %v5005 = vperm.slane %v4287, %v4536
        %v5006 = vperm.slane %v4288, %v4538
        %v5007 = vsel %vm4540, %v5006, %v5005
        %v5008 = vperm.slane %v4289, %v4542
        %v5009 = vsel %vm4544, %v5008, %v5007
        %v5010 = vperm.slane %v4290, %v4546
        %v5011 = vsel %vm4548, %v5010, %v5009
        %v5012 = vperm.slane %v4291, %v4536
        %v5013 = vperm.slane %v4292, %v4538
        %v5014 = vsel %vm4540, %v5013, %v5012
        %v5015 = vperm.slane %v4293, %v4542
        %v5016 = vsel %vm4544, %v5015, %v5014
        %v5017 = vperm.slane %v4294, %v4546
        %v5018 = vsel %vm4548, %v5017, %v5016
        %v5019 = vperm.slane %v4295, %v4536
        %v5020 = vperm.slane %v4296, %v4538
        %v5021 = vsel %vm4540, %v5020, %v5019
        %v5022 = vperm.slane %v4297, %v4542
        %v5023 = vsel %vm4544, %v5022, %v5021
        %v5024 = vperm.slane %v4298, %v4546
        %v5025 = vsel %vm4548, %v5024, %v5023
        %v5026 = vperm.slane %v4299, %v4536
        %v5027 = vperm.slane %v4300, %v4538
        %v5028 = vsel %vm4540, %v5027, %v5026
        %v5029 = vperm.slane %v4301, %v4542
        %v5030 = vsel %vm4544, %v5029, %v5028
        %v5031 = vperm.slane %v4302, %v4546
        %v5032 = vsel %vm4548, %v5031, %v5030
        %v5033 = vperm.slane %v4303, %v4536
        %v5034 = vperm.slane %v4304, %v4538
        %v5035 = vsel %vm4540, %v5034, %v5033
        %v5036 = vperm.slane %v4305, %v4542
        %v5037 = vsel %vm4544, %v5036, %v5035
        %v5038 = vperm.slane %v4306, %v4546
        %v5039 = vsel %vm4548, %v5038, %v5037
        %v5040 = vperm.slane %v4307, %v4536
        %v5041 = vperm.slane %v4308, %v4538
        %v5042 = vsel %vm4540, %v5041, %v5040
        %v5043 = vperm.slane %v4309, %v4542
        %v5044 = vsel %vm4544, %v5043, %v5042
        %v5045 = vperm.slane %v4310, %v4546
        %v5046 = vsel %vm4548, %v5045, %v5044
        %v5047 = vperm.slane %v4311, %v4536
        %v5048 = vperm.slane %v4312, %v4538
        %v5049 = vsel %vm4540, %v5048, %v5047
        %v5050 = vperm.slane %v4313, %v4542
        %v5051 = vsel %vm4544, %v5050, %v5049
        %v5052 = vperm.slane %v4314, %v4546
        %v5053 = vsel %vm4548, %v5052, %v5051
        %v5054 = vperm.slane %v4315, %v4536
        %v5055 = vperm.slane %v4316, %v4538
        %v5056 = vsel %vm4540, %v5055, %v5054
        %v5057 = vperm.slane %v4317, %v4542
        %v5058 = vsel %vm4544, %v5057, %v5056
        %v5059 = vperm.slane %v4318, %v4546
        %v5060 = vsel %vm4548, %v5059, %v5058
        %v5061 = vperm.slane %v4319, %v4536
        %v5062 = vperm.slane %v4320, %v4538
        %v5063 = vsel %vm4540, %v5062, %v5061
        %v5064 = vperm.slane %v4321, %v4542
        %v5065 = vsel %vm4544, %v5064, %v5063
        %v5066 = vperm.slane %v4322, %v4546
        %v5067 = vsel %vm4548, %v5066, %v5065
        %v5068 = vperm.slane %v4323, %v4536
        %v5069 = vperm.slane %v4324, %v4538
        %v5070 = vsel %vm4540, %v5069, %v5068
        %v5071 = vperm.slane %v4325, %v4542
        %v5072 = vsel %vm4544, %v5071, %v5070
        %v5073 = vperm.slane %v4326, %v4546
        %v5074 = vsel %vm4548, %v5073, %v5072
        %v5075 = vperm.slane %v4327, %v4536
        %v5076 = vperm.slane %v4328, %v4538
        %v5077 = vsel %vm4540, %v5076, %v5075
        %v5078 = vperm.slane %v4329, %v4542
        %v5079 = vsel %vm4544, %v5078, %v5077
        %v5080 = vperm.slane %v4330, %v4546
        %v5081 = vsel %vm4548, %v5080, %v5079
        %v5082 = vperm.slane %v4331, %v4536
        %v5083 = vperm.slane %v4332, %v4538
        %v5084 = vsel %vm4540, %v5083, %v5082
        %v5085 = vperm.slane %v4333, %v4542
        %v5086 = vsel %vm4544, %v5085, %v5084
        %v5087 = vperm.slane %v4334, %v4546
        %v5088 = vsel %vm4548, %v5087, %v5086
        %v5089 = vperm.slane %v4335, %v4536
        %v5090 = vperm.slane %v4336, %v4538
        %v5091 = vsel %vm4540, %v5090, %v5089
        %v5092 = vperm.slane %v4337, %v4542
        %v5093 = vsel %vm4544, %v5092, %v5091
        %v5094 = vperm.slane %v4338, %v4546
        %v5095 = vsel %vm4548, %v5094, %v5093
        %v5096 = vperm.slane %v4339, %v4536
        %v5097 = vperm.slane %v4340, %v4538
        %v5098 = vsel %vm4540, %v5097, %v5096
        %v5099 = vperm.slane %v4341, %v4542
        %v5100 = vsel %vm4544, %v5099, %v5098
        %v5101 = vperm.slane %v4342, %v4546
        %v5102 = vsel %vm4548, %v5101, %v5100
        %v5103 = vperm.slane %v4343, %v4536
        %v5104 = vperm.slane %v4344, %v4538
        %v5105 = vsel %vm4540, %v5104, %v5103
        %v5106 = vperm.slane %v4345, %v4542
        %v5107 = vsel %vm4544, %v5106, %v5105
        %v5108 = vperm.slane %v4346, %v4546
        %v5109 = vsel %vm4548, %v5108, %v5107
        %v5110 = vperm.slane %v4347, %v4536
        %v5111 = vperm.slane %v4348, %v4538
        %v5112 = vsel %vm4540, %v5111, %v5110
        %v5113 = vperm.slane %v4349, %v4542
        %v5114 = vsel %vm4544, %v5113, %v5112
        %v5115 = vperm.slane %v4350, %v4546
        %v5116 = vsel %vm4548, %v5115, %v5114
        %v5117 = vperm.slane %v4351, %v4536
        %v5118 = vperm.slane %v4352, %v4538
        %v5119 = vsel %vm4540, %v5118, %v5117
        %v5120 = vperm.slane %v4353, %v4542
        %v5121 = vsel %vm4544, %v5120, %v5119
        %v5122 = vperm.slane %v4354, %v4546
        %v5123 = vsel %vm4548, %v5122, %v5121
        %v5124 = vperm.slane %v4355, %v4536
        %v5125 = vperm.slane %v4356, %v4538
        %v5126 = vsel %vm4540, %v5125, %v5124
        %v5127 = vperm.slane %v4357, %v4542
        %v5128 = vsel %vm4544, %v5127, %v5126
        %v5129 = vperm.slane %v4358, %v4546
        %v5130 = vsel %vm4548, %v5129, %v5128
        %v5131 = vperm.slane %v4359, %v4536
        %v5132 = vperm.slane %v4360, %v4538
        %v5133 = vsel %vm4540, %v5132, %v5131
        %v5134 = vperm.slane %v4361, %v4542
        %v5135 = vsel %vm4544, %v5134, %v5133
        %v5136 = vperm.slane %v4362, %v4546
        %v5137 = vsel %vm4548, %v5136, %v5135
        %v5138 = vperm.slane %v4363, %v4536
        %v5139 = vperm.slane %v4364, %v4538
        %v5140 = vsel %vm4540, %v5139, %v5138
        %v5141 = vperm.slane %v4365, %v4542
        %v5142 = vsel %vm4544, %v5141, %v5140
        %v5143 = vperm.slane %v4366, %v4546
        %v5144 = vsel %vm4548, %v5143, %v5142
        %v5145 = vperm.slane %v4367, %v4536
        %v5146 = vperm.slane %v4368, %v4538
        %v5147 = vsel %vm4540, %v5146, %v5145
        %v5148 = vperm.slane %v4369, %v4542
        %v5149 = vsel %vm4544, %v5148, %v5147
        %v5150 = vperm.slane %v4370, %v4546
        %v5151 = vsel %vm4548, %v5150, %v5149
        %v5152 = vperm.slane %v4371, %v4536
        %v5153 = vperm.slane %v4372, %v4538
        %v5154 = vsel %vm4540, %v5153, %v5152
        %v5155 = vperm.slane %v4373, %v4542
        %v5156 = vsel %vm4544, %v5155, %v5154
        %v5157 = vperm.slane %v4374, %v4546
        %v5158 = vsel %vm4548, %v5157, %v5156
        %v5159 = vperm.slane %v4375, %v4536
        %v5160 = vperm.slane %v4376, %v4538
        %v5161 = vsel %vm4540, %v5160, %v5159
        %v5162 = vperm.slane %v4377, %v4542
        %v5163 = vsel %vm4544, %v5162, %v5161
        %v5164 = vperm.slane %v4378, %v4546
        %v5165 = vsel %vm4548, %v5164, %v5163
        %v5166 = vperm.slane %v4379, %v4536
        %v5167 = vperm.slane %v4380, %v4538
        %v5168 = vsel %vm4540, %v5167, %v5166
        %v5169 = vperm.slane %v4381, %v4542
        %v5170 = vsel %vm4544, %v5169, %v5168
        %v5171 = vperm.slane %v4382, %v4546
        %v5172 = vsel %vm4548, %v5171, %v5170
        %v5173 = vperm.slane %v4383, %v4536
        %v5174 = vperm.slane %v4384, %v4538
        %v5175 = vsel %vm4540, %v5174, %v5173
        %v5176 = vperm.slane %v4385, %v4542
        %v5177 = vsel %vm4544, %v5176, %v5175
        %v5178 = vperm.slane %v4386, %v4546
        %v5179 = vsel %vm4548, %v5178, %v5177
        %v5180 = vperm.slane %v4387, %v4536
        %v5181 = vperm.slane %v4388, %v4538
        %v5182 = vsel %vm4540, %v5181, %v5180
        %v5183 = vperm.slane %v4389, %v4542
        %v5184 = vsel %vm4544, %v5183, %v5182
        %v5185 = vperm.slane %v4390, %v4546
        %v5186 = vsel %vm4548, %v5185, %v5184
        %v5187 = vperm.slane %v4391, %v4536
        %v5188 = vperm.slane %v4392, %v4538
        %v5189 = vsel %vm4540, %v5188, %v5187
        %v5190 = vperm.slane %v4393, %v4542
        %v5191 = vsel %vm4544, %v5190, %v5189
        %v5192 = vperm.slane %v4394, %v4546
        %v5193 = vsel %vm4548, %v5192, %v5191
        %v5194 = vperm.slane %v4395, %v4536
        %v5195 = vperm.slane %v4396, %v4538
        %v5196 = vsel %vm4540, %v5195, %v5194
        %v5197 = vperm.slane %v4397, %v4542
        %v5198 = vsel %vm4544, %v5197, %v5196
        %v5199 = vperm.slane %v4398, %v4546
        %v5200 = vsel %vm4548, %v5199, %v5198
        %v5201 = vperm.slane %v4399, %v4536
        %v5202 = vperm.slane %v4400, %v4538
        %v5203 = vsel %vm4540, %v5202, %v5201
        %v5204 = vperm.slane %v4401, %v4542
        %v5205 = vsel %vm4544, %v5204, %v5203
        %v5206 = vperm.slane %v4402, %v4546
        %v5207 = vsel %vm4548, %v5206, %v5205
        %v5208 = vperm.slane %v4403, %v4536
        %v5209 = vperm.slane %v4404, %v4538
        %v5210 = vsel %vm4540, %v5209, %v5208
        %v5211 = vperm.slane %v4405, %v4542
        %v5212 = vsel %vm4544, %v5211, %v5210
        %v5213 = vperm.slane %v4406, %v4546
        %v5214 = vsel %vm4548, %v5213, %v5212
        %v5215 = vperm.slane %v4407, %v4536
        %v5216 = vperm.slane %v4408, %v4538
        %v5217 = vsel %vm4540, %v5216, %v5215
        %v5218 = vperm.slane %v4409, %v4542
        %v5219 = vsel %vm4544, %v5218, %v5217
        %v5220 = vperm.slane %v4410, %v4546
        %v5221 = vsel %vm4548, %v5220, %v5219
        %v5222 = vperm.slane %v4411, %v4536
        %v5223 = vperm.slane %v4412, %v4538
        %v5224 = vsel %vm4540, %v5223, %v5222
        %v5225 = vperm.slane %v4413, %v4542
        %v5226 = vsel %vm4544, %v5225, %v5224
        %v5227 = vperm.slane %v4414, %v4546
        %v5228 = vsel %vm4548, %v5227, %v5226
        %v5229 = vperm.slane %v4415, %v4536
        %v5230 = vperm.slane %v4416, %v4538
        %v5231 = vsel %vm4540, %v5230, %v5229
        %v5232 = vperm.slane %v4417, %v4542
        %v5233 = vsel %vm4544, %v5232, %v5231
        %v5234 = vperm.slane %v4418, %v4546
        %v5235 = vsel %vm4548, %v5234, %v5233
        %v5236 = vperm.slane %v4419, %v4536
        %v5237 = vperm.slane %v4420, %v4538
        %v5238 = vsel %vm4540, %v5237, %v5236
        %v5239 = vperm.slane %v4421, %v4542
        %v5240 = vsel %vm4544, %v5239, %v5238
        %v5241 = vperm.slane %v4422, %v4546
        %v5242 = vsel %vm4548, %v5241, %v5240
        %v5243 = vperm.slane %v4423, %v4536
        %v5244 = vperm.slane %v4424, %v4538
        %v5245 = vsel %vm4540, %v5244, %v5243
        %v5246 = vperm.slane %v4425, %v4542
        %v5247 = vsel %vm4544, %v5246, %v5245
        %v5248 = vperm.slane %v4426, %v4546
        %v5249 = vsel %vm4548, %v5248, %v5247
        %v5250 = vperm.slane %v4427, %v4536
        %v5251 = vperm.slane %v4428, %v4538
        %v5252 = vsel %vm4540, %v5251, %v5250
        %v5253 = vperm.slane %v4429, %v4542
        %v5254 = vsel %vm4544, %v5253, %v5252
        %v5255 = vperm.slane %v4430, %v4546
        %v5256 = vsel %vm4548, %v5255, %v5254
        %v5257 = vperm.slane %v4431, %v4536
        %v5258 = vperm.slane %v4432, %v4538
        %v5259 = vsel %vm4540, %v5258, %v5257
        %v5260 = vperm.slane %v4433, %v4542
        %v5261 = vsel %vm4544, %v5260, %v5259
        %v5262 = vperm.slane %v4434, %v4546
        %v5263 = vsel %vm4548, %v5262, %v5261
        %v5264 = vperm.slane %v4435, %v4536
        %v5265 = vperm.slane %v4436, %v4538
        %v5266 = vsel %vm4540, %v5265, %v5264
        %v5267 = vperm.slane %v4437, %v4542
        %v5268 = vsel %vm4544, %v5267, %v5266
        %v5269 = vperm.slane %v4438, %v4546
        %v5270 = vsel %vm4548, %v5269, %v5268
        %v5271 = vperm.slane %v4439, %v4536
        %v5272 = vperm.slane %v4440, %v4538
        %v5273 = vsel %vm4540, %v5272, %v5271
        %v5274 = vperm.slane %v4441, %v4542
        %v5275 = vsel %vm4544, %v5274, %v5273
        %v5276 = vperm.slane %v4442, %v4546
        %v5277 = vsel %vm4548, %v5276, %v5275
        %v5278 = vperm.slane %v4443, %v4536
        %v5279 = vperm.slane %v4444, %v4538
        %v5280 = vsel %vm4540, %v5279, %v5278
        %v5281 = vperm.slane %v4445, %v4542
        %v5282 = vsel %vm4544, %v5281, %v5280
        %v5283 = vperm.slane %v4446, %v4546
        %v5284 = vsel %vm4548, %v5283, %v5282
        %v5285 = vperm.slane %v4447, %v4536
        %v5286 = vperm.slane %v4448, %v4538
        %v5287 = vsel %vm4540, %v5286, %v5285
        %v5288 = vperm.slane %v4449, %v4542
        %v5289 = vsel %vm4544, %v5288, %v5287
        %v5290 = vperm.slane %v4450, %v4546
        %v5291 = vsel %vm4548, %v5290, %v5289
        %v5292 = vperm.slane %v4451, %v4536
        %v5293 = vperm.slane %v4452, %v4538
        %v5294 = vsel %vm4540, %v5293, %v5292
        %v5295 = vperm.slane %v4453, %v4542
        %v5296 = vsel %vm4544, %v5295, %v5294
        %v5297 = vperm.slane %v4454, %v4546
        %v5298 = vsel %vm4548, %v5297, %v5296
        %v5299 = vperm.slane %v4455, %v4536
        %v5300 = vperm.slane %v4456, %v4538
        %v5301 = vsel %vm4540, %v5300, %v5299
        %v5302 = vperm.slane %v4457, %v4542
        %v5303 = vsel %vm4544, %v5302, %v5301
        %v5304 = vperm.slane %v4458, %v4546
        %v5305 = vsel %vm4548, %v5304, %v5303
        %v5306 = vperm.slane %v4459, %v4536
        %v5307 = vperm.slane %v4460, %v4538
        %v5308 = vsel %vm4540, %v5307, %v5306
        %v5309 = vperm.slane %v4461, %v4542
        %v5310 = vsel %vm4544, %v5309, %v5308
        %v5311 = vperm.slane %v4462, %v4546
        %v5312 = vsel %vm4548, %v5311, %v5310
        %v5313 = vperm.slane %v4463, %v4536
        %v5314 = vperm.slane %v4464, %v4538
        %v5315 = vsel %vm4540, %v5314, %v5313
        %v5316 = vperm.slane %v4465, %v4542
        %v5317 = vsel %vm4544, %v5316, %v5315
        %v5318 = vperm.slane %v4466, %v4546
        %v5319 = vsel %vm4548, %v5318, %v5317
        %v5320 = vperm.slane %v4467, %v4536
        %v5321 = vperm.slane %v4468, %v4538
        %v5322 = vsel %vm4540, %v5321, %v5320
        %v5323 = vperm.slane %v4469, %v4542
        %v5324 = vsel %vm4544, %v5323, %v5322
        %v5325 = vperm.slane %v4470, %v4546
        %v5326 = vsel %vm4548, %v5325, %v5324
        %v5327 = vperm.slane %v4471, %v4536
        %v5328 = vperm.slane %v4472, %v4538
        %v5329 = vsel %vm4540, %v5328, %v5327
        %v5330 = vperm.slane %v4473, %v4542
        %v5331 = vsel %vm4544, %v5330, %v5329
        %v5332 = vperm.slane %v4474, %v4546
        %v5333 = vsel %vm4548, %v5332, %v5331
        %v5334 = vperm.slane %v4475, %v4536
        %v5335 = vperm.slane %v4476, %v4538
        %v5336 = vsel %vm4540, %v5335, %v5334
        %v5337 = vperm.slane %v4477, %v4542
        %v5338 = vsel %vm4544, %v5337, %v5336
        %v5339 = vperm.slane %v4478, %v4546
        %v5340 = vsel %vm4548, %v5339, %v5338
        %v5341 = vperm.slane %v4479, %v4536
        %v5342 = vperm.slane %v4480, %v4538
        %v5343 = vsel %vm4540, %v5342, %v5341
        %v5344 = vperm.slane %v4481, %v4542
        %v5345 = vsel %vm4544, %v5344, %v5343
        %v5346 = vperm.slane %v4482, %v4546
        %v5347 = vsel %vm4548, %v5346, %v5345
        %v5348 = vperm.slane %v4483, %v4536
        %v5349 = vperm.slane %v4484, %v4538
        %v5350 = vsel %vm4540, %v5349, %v5348
        %v5351 = vperm.slane %v4485, %v4542
        %v5352 = vsel %vm4544, %v5351, %v5350
        %v5353 = vperm.slane %v4486, %v4546
        %v5354 = vsel %vm4548, %v5353, %v5352
        %v5355 = vperm.slane %v4487, %v4536
        %v5356 = vperm.slane %v4488, %v4538
        %v5357 = vsel %vm4540, %v5356, %v5355
        %v5358 = vperm.slane %v4489, %v4542
        %v5359 = vsel %vm4544, %v5358, %v5357
        %v5360 = vperm.slane %v4490, %v4546
        %v5361 = vsel %vm4548, %v5360, %v5359
        %v5362 = vperm.slane %v4491, %v4536
        %v5363 = vperm.slane %v4492, %v4538
        %v5364 = vsel %vm4540, %v5363, %v5362
        %v5365 = vperm.slane %v4493, %v4542
        %v5366 = vsel %vm4544, %v5365, %v5364
        %v5367 = vperm.slane %v4494, %v4546
        %v5368 = vsel %vm4548, %v5367, %v5366
        %v5369 = vperm.slane %v4495, %v4536
        %v5370 = vperm.slane %v4496, %v4538
        %v5371 = vsel %vm4540, %v5370, %v5369
        %v5372 = vperm.slane %v4497, %v4542
        %v5373 = vsel %vm4544, %v5372, %v5371
        %v5374 = vperm.slane %v4498, %v4546
        %v5375 = vsel %vm4548, %v5374, %v5373
        %v5376 = vperm.slane %v4499, %v4536
        %v5377 = vperm.slane %v4500, %v4538
        %v5378 = vsel %vm4540, %v5377, %v5376
        %v5379 = vperm.slane %v4501, %v4542
        %v5380 = vsel %vm4544, %v5379, %v5378
        %v5381 = vperm.slane %v4502, %v4546
        %v5382 = vsel %vm4548, %v5381, %v5380
        %v5383 = vperm.slane %v4503, %v4536
        %v5384 = vperm.slane %v4504, %v4538
        %v5385 = vsel %vm4540, %v5384, %v5383
        %v5386 = vperm.slane %v4505, %v4542
        %v5387 = vsel %vm4544, %v5386, %v5385
        %v5388 = vperm.slane %v4506, %v4546
        %v5389 = vsel %vm4548, %v5388, %v5387
        %v5390 = vperm.slane %v4507, %v4536
        %v5391 = vperm.slane %v4508, %v4538
        %v5392 = vsel %vm4540, %v5391, %v5390
        %v5393 = vperm.slane %v4509, %v4542
        %v5394 = vsel %vm4544, %v5393, %v5392
        %v5395 = vperm.slane %v4510, %v4546
        %v5396 = vsel %vm4548, %v5395, %v5394
        %v5397 = vperm.slane %v4511, %v4536
        %v5398 = vperm.slane %v4512, %v4538
        %v5399 = vsel %vm4540, %v5398, %v5397
        %v5400 = vperm.slane %v4513, %v4542
        %v5401 = vsel %vm4544, %v5400, %v5399
        %v5402 = vperm.slane %v4514, %v4546
        %v5403 = vsel %vm4548, %v5402, %v5401
        %v5404 = vperm.slane %v4515, %v4536
        %v5405 = vperm.slane %v4516, %v4538
        %v5406 = vsel %vm4540, %v5405, %v5404
        %v5407 = vperm.slane %v4517, %v4542
        %v5408 = vsel %vm4544, %v5407, %v5406
        %v5409 = vperm.slane %v4518, %v4546
        %v5410 = vsel %vm4548, %v5409, %v5408
        %v5411 = vperm.slane %v4519, %v4536
        %v5412 = vperm.slane %v4520, %v4538
        %v5413 = vsel %vm4540, %v5412, %v5411
        %v5414 = vperm.slane %v4521, %v4542
        %v5415 = vsel %vm4544, %v5414, %v5413
        %v5416 = vperm.slane %v4522, %v4546
        %v5417 = vsel %vm4548, %v5416, %v5415
        %v5418 = vperm.slane %v4523, %v4536
        %v5419 = vperm.slane %v4524, %v4538
        %v5420 = vsel %vm4540, %v5419, %v5418
        %v5421 = vperm.slane %v4525, %v4542
        %v5422 = vsel %vm4544, %v5421, %v5420
        %v5423 = vperm.slane %v4526, %v4546
        %v5424 = vsel %vm4548, %v5423, %v5422
        %v5425 = vperm.slane %v4527, %v4536
        %v5426 = vperm.slane %v4528, %v4538
        %v5427 = vsel %vm4540, %v5426, %v5425
        %v5428 = vperm.slane %v4529, %v4542
        %v5429 = vsel %vm4544, %v5428, %v5427
        %v5430 = vperm.slane %v4530, %v4546
        %v5431 = vsel %vm4548, %v5430, %v5429
        %v5432 = vperm.slane %v4531, %v4536
        %v5433 = vperm.slane %v4532, %v4538
        %v5434 = vsel %vm4540, %v5433, %v5432
        %v5435 = vperm.slane %v4533, %v4542
        %v5436 = vsel %vm4544, %v5435, %v5434
        %v5437 = vperm.slane %v4534, %v4546
        %v5438 = vsel %vm4548, %v5437, %v5436
        %vm5439 = vcmask 1041409
        %v5440 = vsel %vm5439, %v4556, %v4549
        %vm5441 = vcmask 1042434
        %v5442 = vsel %vm5441, %v4563, %v5440
        %vm5443 = vcmask 1043459
        %v5444 = vsel %vm5443, %v4570, %v5442
        %vm5445 = vcmask 1044484
        %v5446 = vsel %vm5445, %v4577, %v5444
        %vm5447 = vcmask 1045509
        %v5448 = vsel %vm5447, %v4584, %v5446
        %vm5449 = vcmask 1046534
        %v5450 = vsel %vm5449, %v4591, %v5448
        %vm5451 = vcmask 1047559
        %v5452 = vsel %vm5451, %v4598, %v5450
        %v5453 = vsel %vm5439, %v4612, %v4605
        %v5454 = vsel %vm5441, %v4619, %v5453
        %v5455 = vsel %vm5443, %v4626, %v5454
        %v5456 = vsel %vm5445, %v4633, %v5455
        %v5457 = vsel %vm5447, %v4640, %v5456
        %v5458 = vsel %vm5449, %v4647, %v5457
        %v5459 = vsel %vm5451, %v4654, %v5458
        %v5460 = vsel %vm5439, %v4668, %v4661
        %v5461 = vsel %vm5441, %v4675, %v5460
        %v5462 = vsel %vm5443, %v4682, %v5461
        %v5463 = vsel %vm5445, %v4689, %v5462
        %v5464 = vsel %vm5447, %v4696, %v5463
        %v5465 = vsel %vm5449, %v4703, %v5464
        %v5466 = vsel %vm5451, %v4710, %v5465
        %v5467 = vsel %vm5439, %v4724, %v4717
        %v5468 = vsel %vm5441, %v4731, %v5467
        %v5469 = vsel %vm5443, %v4738, %v5468
        %v5470 = vsel %vm5445, %v4745, %v5469
        %v5471 = vsel %vm5447, %v4752, %v5470
        %v5472 = vsel %vm5449, %v4759, %v5471
        %v5473 = vsel %vm5451, %v4766, %v5472
        %v5474 = vsel %vm5439, %v4780, %v4773
        %v5475 = vsel %vm5441, %v4787, %v5474
        %v5476 = vsel %vm5443, %v4794, %v5475
        %v5477 = vsel %vm5445, %v4801, %v5476
        %v5478 = vsel %vm5447, %v4808, %v5477
        %v5479 = vsel %vm5449, %v4815, %v5478
        %v5480 = vsel %vm5451, %v4822, %v5479
        %v5481 = vsel %vm5439, %v4836, %v4829
        %v5482 = vsel %vm5441, %v4843, %v5481
        %v5483 = vsel %vm5443, %v4850, %v5482
        %v5484 = vsel %vm5445, %v4857, %v5483
        %v5485 = vsel %vm5447, %v4864, %v5484
        %v5486 = vsel %vm5449, %v4871, %v5485
        %v5487 = vsel %vm5451, %v4878, %v5486
        %v5488 = vsel %vm5439, %v4892, %v4885
        %v5489 = vsel %vm5441, %v4899, %v5488
        %v5490 = vsel %vm5443, %v4906, %v5489
        %v5491 = vsel %vm5445, %v4913, %v5490
        %v5492 = vsel %vm5447, %v4920, %v5491
        %v5493 = vsel %vm5449, %v4927, %v5492
        %v5494 = vsel %vm5451, %v4934, %v5493
        %v5495 = vsel %vm5439, %v4948, %v4941
        %v5496 = vsel %vm5441, %v4955, %v5495
        %v5497 = vsel %vm5443, %v4962, %v5496
        %v5498 = vsel %vm5445, %v4969, %v5497
        %v5499 = vsel %vm5447, %v4976, %v5498
        %v5500 = vsel %vm5449, %v4983, %v5499
        %v5501 = vsel %vm5451, %v4990, %v5500
        %v5502 = vsel %vm5439, %v5004, %v4997
        %v5503 = vsel %vm5441, %v5011, %v5502
        %v5504 = vsel %vm5443, %v5018, %v5503
        %v5505 = vsel %vm5445, %v5025, %v5504
        %v5506 = vsel %vm5447, %v5032, %v5505
        %v5507 = vsel %vm5449, %v5039, %v5506
        %v5508 = vsel %vm5451, %v5046, %v5507
        %v5509 = vsel %vm5439, %v5060, %v5053
        %v5510 = vsel %vm5441, %v5067, %v5509
        %v5511 = vsel %vm5443, %v5074, %v5510
        %v5512 = vsel %vm5445, %v5081, %v5511
        %v5513 = vsel %vm5447, %v5088, %v5512
        %v5514 = vsel %vm5449, %v5095, %v5513
        %v5515 = vsel %vm5451, %v5102, %v5514
        %v5516 = vsel %vm5439, %v5116, %v5109
        %v5517 = vsel %vm5441, %v5123, %v5516
        %v5518 = vsel %vm5443, %v5130, %v5517
        %v5519 = vsel %vm5445, %v5137, %v5518
        %v5520 = vsel %vm5447, %v5144, %v5519
        %v5521 = vsel %vm5449, %v5151, %v5520
        %v5522 = vsel %vm5451, %v5158, %v5521
        %v5523 = vsel %vm5439, %v5172, %v5165
        %v5524 = vsel %vm5441, %v5179, %v5523
        %v5525 = vsel %vm5443, %v5186, %v5524
        %v5526 = vsel %vm5445, %v5193, %v5525
        %v5527 = vsel %vm5447, %v5200, %v5526
        %v5528 = vsel %vm5449, %v5207, %v5527
        %v5529 = vsel %vm5451, %v5214, %v5528
        %v5530 = vsel %vm5439, %v5228, %v5221
        %v5531 = vsel %vm5441, %v5235, %v5530
        %v5532 = vsel %vm5443, %v5242, %v5531
        %v5533 = vsel %vm5445, %v5249, %v5532
        %v5534 = vsel %vm5447, %v5256, %v5533
        %v5535 = vsel %vm5449, %v5263, %v5534
        %v5536 = vsel %vm5451, %v5270, %v5535
        %v5537 = vsel %vm5439, %v5284, %v5277
        %v5538 = vsel %vm5441, %v5291, %v5537
        %v5539 = vsel %vm5443, %v5298, %v5538
        %v5540 = vsel %vm5445, %v5305, %v5539
        %v5541 = vsel %vm5447, %v5312, %v5540
        %v5542 = vsel %vm5449, %v5319, %v5541
        %v5543 = vsel %vm5451, %v5326, %v5542
        %v5544 = vsel %vm5439, %v5340, %v5333
        %v5545 = vsel %vm5441, %v5347, %v5544
        %v5546 = vsel %vm5443, %v5354, %v5545
        %v5547 = vsel %vm5445, %v5361, %v5546
        %v5548 = vsel %vm5447, %v5368, %v5547
        %v5549 = vsel %vm5449, %v5375, %v5548
        %v5550 = vsel %vm5451, %v5382, %v5549
        %v5551 = vsel %vm5439, %v5396, %v5389
        %v5552 = vsel %vm5441, %v5403, %v5551
        %v5553 = vsel %vm5443, %v5410, %v5552
        %v5554 = vsel %vm5445, %v5417, %v5553
        %v5555 = vsel %vm5447, %v5424, %v5554
        %v5556 = vsel %vm5449, %v5431, %v5555
        %v5557 = vsel %vm5451, %v5438, %v5556
        %v5558 = vpack.c.b16 %v5459, %v5452
        %v5559 = vpack.c.b16 %v5473, %v5466
        %v5560 = vpack.c.b16 %v5487, %v5480
        %v5561 = vpack.c.b16 %v5501, %v5494
        %v5562 = vpack.c.b16 %v5515, %v5508
        %v5563 = vpack.c.b16 %v5529, %v5522
        %v5564 = vpack.c.b16 %v5543, %v5536
        %v5565 = vpack.c.b16 %v5557, %v5550
        %v5570 = vunpack.c.l.b16 %v3763
        %v5571 = vunpack.c.l.b16 %v3764
        %v5572 = vunpack.c.l.b16 %v3765
        %v5573 = vunpack.c.l.b16 %v3766
        %v5574 = vpack.c.b16 %v5571, %v5570
        %v5575 = vpack.c.b16 %v5573, %v5572
        %vm5578 = vcmask 261120
        %v5580 = vsel %vm5578, %v5558, 0
        %v5583 = vsel %vm5578, %v5559, 0
        %v5586 = vsel %vm5578, %v5560, 0
        %v5589 = vsel %vm5578, %v5561, 0
        %v5592 = vsel %vm5578, %v5562, 0
        %v5595 = vsel %vm5578, %v5563, 0
        %v5598 = vsel %vm5578, %v5564, 0
        %v5601 = vsel %vm5578, %v5565, 0
        %5603 = vmatpush.bf16.msra.mxu0 0
        %5604 = vmatpush.bf16.msra.mxu0 0
        %5605 = vmatpush.bf16.msra.mxu0 0
        %5606 = vmatpush.bf16.msra.mxu0 0
        %5607 = vmatpush.bf16.msra.mxu0 0
        %5608 = vmatpush.bf16.msra.mxu0 0
        %5609 = vmatpush.bf16.msra.mxu0 %v5575
        %5610 = vmatpush.bf16.msra.mxu0 %v5574
        %5611 = vmatmul.bf16.gmra.mxu0 %v5580
        %v5612 = vpop.f32.mrf.mxu0
        %v5613 = vadd.f32 0.0, %v5612
        %v5614 = vpop.f32.mrf.mxu0
        %v5615 = vadd.f32 0.0, %v5614
        %5616 = vmatmul.bf16.gmra.mxu0 %v5583
        %v5617 = vpop.f32.mrf.mxu0
        %v5618 = vadd.f32 0.0, %v5617
        %v5619 = vpop.f32.mrf.mxu0
        %v5620 = vadd.f32 0.0, %v5619
        %5621 = vmatmul.bf16.gmra.mxu0 %v5586
        %v5622 = vpop.f32.mrf.mxu0
        %v5623 = vadd.f32 0.0, %v5622
        %v5624 = vpop.f32.mrf.mxu0
        %v5625 = vadd.f32 0.0, %v5624
        %5626 = vmatmul.bf16.gmra.mxu0 %v5589
        %v5627 = vpop.f32.mrf.mxu0
        %v5628 = vadd.f32 0.0, %v5627
        %v5629 = vpop.f32.mrf.mxu0
        %v5630 = vadd.f32 0.0, %v5629
        %5631 = vmatmul.bf16.gmra.mxu0 %v5592
        %v5632 = vpop.f32.mrf.mxu0
        %v5633 = vadd.f32 0.0, %v5632
        %v5634 = vpop.f32.mrf.mxu0
        %v5635 = vadd.f32 0.0, %v5634
        %5636 = vmatmul.bf16.gmra.mxu0 %v5595
        %v5637 = vpop.f32.mrf.mxu0
        %v5638 = vadd.f32 0.0, %v5637
        %v5639 = vpop.f32.mrf.mxu0
        %v5640 = vadd.f32 0.0, %v5639
        %5641 = vmatmul.bf16.gmra.mxu0 %v5598
        %v5642 = vpop.f32.mrf.mxu0
        %v5643 = vadd.f32 0.0, %v5642
        %v5644 = vpop.f32.mrf.mxu0
        %v5645 = vadd.f32 0.0, %v5644
        %5646 = vmatmul.bf16.gmra.mxu0 %v5601
        %v5647 = vpop.f32.mrf.mxu0
        %v5648 = vadd.f32 0.0, %v5647
        %v5649 = vpop.f32.mrf.mxu0
        %v5650 = vadd.f32 0.0, %v5649
        %5651 = vdwg.mxu0
        %v5652 = vld [vmem:[%s2] sm:$0xf]
        %v5653 = vld [vmem:[%s2 + $0x4] sm:$0xf]
        %v5654 = vld [vmem:[%s2 + $0x8] sm:$0xf]
        %v5655 = vld [vmem:[%s2 + $0xc] sm:$0xf]
        %v5656 = vld [vmem:[%s2 + $0x10] sm:$0xf]
        %v5657 = vld [vmem:[%s2 + $0x14] sm:$0xf]
        %v5658 = vld [vmem:[%s2 + $0x18] sm:$0xf]
        %v5659 = vld [vmem:[%s2 + $0x1c] sm:$0xf]
        %v5660 = vld [vmem:[%s2 + $0x20] sm:$0xf]
        %v5661 = vld [vmem:[%s2 + $0x24] sm:$0xf]
        %v5662 = vld [vmem:[%s2 + $0x28] sm:$0xf]
        %v5663 = vld [vmem:[%s2 + $0x2c] sm:$0xf]
        %v5664 = vld [vmem:[%s2 + $0x30] sm:$0xf]
        %v5665 = vld [vmem:[%s2 + $0x34] sm:$0xf]
        %v5666 = vld [vmem:[%s2 + $0x38] sm:$0xf]
        %v5667 = vld [vmem:[%s2 + $0x3c] sm:$0xf]
        %v5668 = vld [vmem:[%s2 + $0x40] sm:$0x1]
        %v5669 = vunpack.c.l.bf16 %v5668
        %v5670 = vpack.c.bf16 %v5615, %v5613
        %v5671 = vpack.c.bf16 %v5620, %v5618
        %v5672 = vpack.c.bf16 %v5625, %v5623
        %v5673 = vpack.c.bf16 %v5630, %v5628
        %v5674 = vpack.c.bf16 %v5635, %v5633
        %v5675 = vpack.c.bf16 %v5640, %v5638
        %v5676 = vpack.c.bf16 %v5645, %v5643
        %v5677 = vpack.c.bf16 %v5650, %v5648
        %v5678 = vperm.slane %v5669, 0
        %v5695 = vunpack.c.l.b16 %v5652
        %v5696 = vunpack.c.l.b16 %v5653
        %v5697 = vunpack.c.l.b16 %v5654
        %v5698 = vunpack.c.l.b16 %v5655
        %v5699 = vunpack.c.l.b16 %v5656
        %v5700 = vunpack.c.l.b16 %v5657
        %v5701 = vunpack.c.l.b16 %v5658
        %v5702 = vunpack.c.l.b16 %v5659
        %v5703 = vunpack.c.l.b16 %v5660
        %v5704 = vunpack.c.l.b16 %v5661
        %v5705 = vunpack.c.l.b16 %v5662
        %v5706 = vunpack.c.l.b16 %v5663
        %v5707 = vunpack.c.l.b16 %v5664
        %v5708 = vunpack.c.l.b16 %v5665
        %v5709 = vunpack.c.l.b16 %v5666
        %v5710 = vunpack.c.l.b16 %v5667
        %v5711 = vpack.c.b16 %v5696, %v5695
        %v5712 = vpack.c.b16 %v5698, %v5697
        %v5713 = vpack.c.b16 %v5700, %v5699
        %v5714 = vpack.c.b16 %v5702, %v5701
        %v5715 = vpack.c.b16 %v5704, %v5703
        %v5716 = vpack.c.b16 %v5706, %v5705
        %v5717 = vpack.c.b16 %v5708, %v5707
        %v5718 = vpack.c.b16 %v5710, %v5709
        %5727 = vmatpush.bf16.msra.mxu0 %v5718
        %5728 = vmatpush.bf16.msra.mxu0 %v5717
        %5729 = vmatpush.bf16.msra.mxu0 %v5716
        %5730 = vmatpush.bf16.msra.mxu0 %v5715
        %5731 = vmatpush.bf16.msra.mxu0 %v5714
        %5732 = vmatpush.bf16.msra.mxu0 %v5713
        %5733 = vmatpush.bf16.msra.mxu0 %v5712
        %5734 = vmatpush.bf16.msra.mxu0 %v5711
        %5735 = vmatmul.bf16.gmra.mxu0 %v5670
        %v5736 = vpop.f32.mrf.mxu0
        %v5737 = vadd.f32 %v5678, %v5736
        %v5738 = vpop.f32.mrf.mxu0
        %v5739 = vadd.f32 %v5678, %v5738
        %5740 = vmatmul.bf16.gmra.mxu0 %v5671
        %v5741 = vpop.f32.mrf.mxu0
        %v5742 = vadd.f32 %v5678, %v5741
        %v5743 = vpop.f32.mrf.mxu0
        %v5744 = vadd.f32 %v5678, %v5743
        %5745 = vmatmul.bf16.gmra.mxu0 %v5672
        %v5746 = vpop.f32.mrf.mxu0
        %v5747 = vadd.f32 %v5678, %v5746
        %v5748 = vpop.f32.mrf.mxu0
        %v5749 = vadd.f32 %v5678, %v5748
        %5750 = vmatmul.bf16.gmra.mxu0 %v5673
        %v5751 = vpop.f32.mrf.mxu0
        %v5752 = vadd.f32 %v5678, %v5751
        %v5753 = vpop.f32.mrf.mxu0
        %v5754 = vadd.f32 %v5678, %v5753
        %5755 = vmatmul.bf16.gmra.mxu0 %v5674
        %v5756 = vpop.f32.mrf.mxu0
        %v5757 = vadd.f32 %v5678, %v5756
        %v5758 = vpop.f32.mrf.mxu0
        %v5759 = vadd.f32 %v5678, %v5758
        %5760 = vmatmul.bf16.gmra.mxu0 %v5675
        %v5761 = vpop.f32.mrf.mxu0
        %v5762 = vadd.f32 %v5678, %v5761
        %v5763 = vpop.f32.mrf.mxu0
        %v5764 = vadd.f32 %v5678, %v5763
        %5765 = vmatmul.bf16.gmra.mxu0 %v5676
        %v5766 = vpop.f32.mrf.mxu0
        %v5767 = vadd.f32 %v5678, %v5766
        %v5768 = vpop.f32.mrf.mxu0
        %v5769 = vadd.f32 %v5678, %v5768
        %5770 = vmatmul.bf16.gmra.mxu0 %v5677
        %v5771 = vpop.f32.mrf.mxu0
        %v5772 = vadd.f32 %v5678, %v5771
        %v5773 = vpop.f32.mrf.mxu0
        %v5774 = vadd.f32 %v5678, %v5773
        %5775 = vdwg.mxu0
        %v5776 = vtanh.pop %v5737
        %v5777 = vtanh.pop %v5739
        %v5778 = vtanh.pop %v5742
        %v5779 = vtanh.pop %v5744
        %v5780 = vtanh.pop %v5747
        %v5781 = vtanh.pop %v5749
        %v5782 = vtanh.pop %v5752
        %v5783 = vtanh.pop %v5754
        %v5784 = vtanh.pop %v5757
        %v5785 = vtanh.pop %v5759
        %v5786 = vtanh.pop %v5762
        %v5787 = vtanh.pop %v5764
        %v5788 = vtanh.pop %v5767
        %v5789 = vtanh.pop %v5769
        %v5790 = vtanh.pop %v5772
        %v5791 = vtanh.pop %v5774
        %v5792 = vld [vmem:[%s2 + $0x48] sm:$0xf]
        %v5793 = vld [vmem:[%s2 + $0x4c] sm:$0xf]
        %v5794 = vld [vmem:[%s2 + $0x50] sm:$0xf]
        %v5795 = vld [vmem:[%s2 + $0x54] sm:$0xf]
        %v5796 = vld [vmem:[%s2 + $0x58] sm:$0xf]
        %v5797 = vld [vmem:[%s2 + $0x5c] sm:$0xf]
        %v5798 = vld [vmem:[%s2 + $0x60] sm:$0xf]
        %v5799 = vld [vmem:[%s2 + $0x64] sm:$0xf]
        %v5800 = vld [vmem:[%s2 + $0x68] sm:$0xf]
        %v5801 = vld [vmem:[%s2 + $0x6c] sm:$0xf]
        %v5802 = vld [vmem:[%s2 + $0x70] sm:$0xf]
        %v5803 = vld [vmem:[%s2 + $0x74] sm:$0xf]
        %v5804 = vld [vmem:[%s2 + $0x78] sm:$0xf]
        %v5805 = vld [vmem:[%s2 + $0x7c] sm:$0xf]
        %v5806 = vld [vmem:[%s2 + $0x80] sm:$0xf]
        %v5807 = vld [vmem:[%s2 + $0x84] sm:$0xf]
        %v5808 = vld [vmem:[%s2 + $0x88] sm:$0x1]
        %v5809 = vunpack.c.l.bf16 %v5808
        %v5810 = vpack.c.bf16 %v5777, %v5776
        %v5811 = vpack.c.bf16 %v5779, %v5778
        %v5812 = vpack.c.bf16 %v5781, %v5780
        %v5813 = vpack.c.bf16 %v5783, %v5782
        %v5814 = vpack.c.bf16 %v5785, %v5784
        %v5815 = vpack.c.bf16 %v5787, %v5786
        %v5816 = vpack.c.bf16 %v5789, %v5788
        %v5817 = vpack.c.bf16 %v5791, %v5790
        %v5818 = vperm.slane %v5809, 0
        %v5835 = vunpack.c.l.b16 %v5792
        %v5836 = vunpack.c.l.b16 %v5793
        %v5837 = vunpack.c.l.b16 %v5794
        %v5838 = vunpack.c.l.b16 %v5795
        %v5839 = vunpack.c.l.b16 %v5796
        %v5840 = vunpack.c.l.b16 %v5797
        %v5841 = vunpack.c.l.b16 %v5798
        %v5842 = vunpack.c.l.b16 %v5799
        %v5843 = vunpack.c.l.b16 %v5800
        %v5844 = vunpack.c.l.b16 %v5801
        %v5845 = vunpack.c.l.b16 %v5802
        %v5846 = vunpack.c.l.b16 %v5803
        %v5847 = vunpack.c.l.b16 %v5804
        %v5848 = vunpack.c.l.b16 %v5805
        %v5849 = vunpack.c.l.b16 %v5806
        %v5850 = vunpack.c.l.b16 %v5807
        %v5851 = vpack.c.b16 %v5836, %v5835
        %v5852 = vpack.c.b16 %v5838, %v5837
        %v5853 = vpack.c.b16 %v5840, %v5839
        %v5854 = vpack.c.b16 %v5842, %v5841
        %v5855 = vpack.c.b16 %v5844, %v5843
        %v5856 = vpack.c.b16 %v5846, %v5845
        %v5857 = vpack.c.b16 %v5848, %v5847
        %v5858 = vpack.c.b16 %v5850, %v5849
        %5867 = vmatpush.bf16.msra.mxu0 %v5858
        %5868 = vmatpush.bf16.msra.mxu0 %v5857
        %5869 = vmatpush.bf16.msra.mxu0 %v5856
        %5870 = vmatpush.bf16.msra.mxu0 %v5855
        %5871 = vmatpush.bf16.msra.mxu0 %v5854
        %5872 = vmatpush.bf16.msra.mxu0 %v5853
        %5873 = vmatpush.bf16.msra.mxu0 %v5852
        %5874 = vmatpush.bf16.msra.mxu0 %v5851
        %5875 = vmatmul.bf16.gmra.mxu0 %v5810
        %v5876 = vpop.f32.mrf.mxu0
        %v5877 = vadd.f32 %v5818, %v5876
        %v5878 = vpop.f32.mrf.mxu0
        %v5879 = vadd.f32 %v5818, %v5878
        %5880 = vmatmul.bf16.gmra.mxu0 %v5811
        %v5881 = vpop.f32.mrf.mxu0
        %v5882 = vadd.f32 %v5818, %v5881
        %v5883 = vpop.f32.mrf.mxu0
        %v5884 = vadd.f32 %v5818, %v5883
        %5885 = vmatmul.bf16.gmra.mxu0 %v5812
        %v5886 = vpop.f32.mrf.mxu0
        %v5887 = vadd.f32 %v5818, %v5886
        %v5888 = vpop.f32.mrf.mxu0
        %v5889 = vadd.f32 %v5818, %v5888
        %5890 = vmatmul.bf16.gmra.mxu0 %v5813
        %v5891 = vpop.f32.mrf.mxu0
        %v5892 = vadd.f32 %v5818, %v5891
        %v5893 = vpop.f32.mrf.mxu0
        %v5894 = vadd.f32 %v5818, %v5893
        %5895 = vmatmul.bf16.gmra.mxu0 %v5814
        %v5896 = vpop.f32.mrf.mxu0
        %v5897 = vadd.f32 %v5818, %v5896
        %v5898 = vpop.f32.mrf.mxu0
        %v5899 = vadd.f32 %v5818, %v5898
        %5900 = vmatmul.bf16.gmra.mxu0 %v5815
        %v5901 = vpop.f32.mrf.mxu0
        %v5902 = vadd.f32 %v5818, %v5901
        %v5903 = vpop.f32.mrf.mxu0
        %v5904 = vadd.f32 %v5818, %v5903
        %5905 = vmatmul.bf16.gmra.mxu0 %v5816
        %v5906 = vpop.f32.mrf.mxu0
        %v5907 = vadd.f32 %v5818, %v5906
        %v5908 = vpop.f32.mrf.mxu0
        %v5909 = vadd.f32 %v5818, %v5908
        %5910 = vmatmul.bf16.gmra.mxu0 %v5817
        %v5911 = vpop.f32.mrf.mxu0
        %v5912 = vadd.f32 %v5818, %v5911
        %v5913 = vpop.f32.mrf.mxu0
        %v5914 = vadd.f32 %v5818, %v5913
        %5915 = vdwg.mxu0
        %v5916 = vtanh.pop %v5877
        %v5917 = vtanh.pop %v5879
        %v5918 = vtanh.pop %v5882
        %v5919 = vtanh.pop %v5884
        %v5920 = vtanh.pop %v5887
        %v5921 = vtanh.pop %v5889
        %v5922 = vtanh.pop %v5892
        %v5923 = vtanh.pop %v5894
        %v5924 = vtanh.pop %v5897
        %v5925 = vtanh.pop %v5899
        %v5926 = vtanh.pop %v5902
        %v5927 = vtanh.pop %v5904
        %v5928 = vtanh.pop %v5907
        %v5929 = vtanh.pop %v5909
        %v5930 = vtanh.pop %v5912
        %v5931 = vtanh.pop %v5914
        %v5932 = vld [vmem:[%s2 + $0x90] sm:$0xf]
        %v5933 = vld [vmem:[%s2 + $0x94] sm:$0xf]
        %v5934 = vld [vmem:[%s2 + $0x98] sm:$0xf]
        %v5935 = vld [vmem:[%s2 + $0x9c] sm:$0xf]
        %v5936 = vld [vmem:[%s2 + $0xa0] sm:$0xf]
        %v5937 = vld [vmem:[%s2 + $0xa4] sm:$0xf]
        %v5938 = vld [vmem:[%s2 + $0xa8] sm:$0xf]
        %v5939 = vld [vmem:[%s2 + $0xac] sm:$0xf]
        %v5940 = vld [vmem:[%s2 + $0xb0] sm:$0xf]
        %v5941 = vld [vmem:[%s2 + $0xb4] sm:$0xf]
        %v5942 = vld [vmem:[%s2 + $0xb8] sm:$0xf]
        %v5943 = vld [vmem:[%s2 + $0xbc] sm:$0xf]
        %v5944 = vld [vmem:[%s2 + $0xc0] sm:$0xf]
        %v5945 = vld [vmem:[%s2 + $0xc4] sm:$0xf]
        %v5946 = vld [vmem:[%s2 + $0xc8] sm:$0xf]
        %v5947 = vld [vmem:[%s2 + $0xcc] sm:$0xf]
        %v5948 = vld [vmem:[%s2 + $0xd0] sm:$0x1]
        %v5949 = vunpack.c.l.bf16 %v5948
        %v5950 = vpack.c.bf16 %v5917, %v5916
        %v5951 = vpack.c.bf16 %v5919, %v5918
        %v5952 = vpack.c.bf16 %v5921, %v5920
        %v5953 = vpack.c.bf16 %v5923, %v5922
        %v5954 = vpack.c.bf16 %v5925, %v5924
        %v5955 = vpack.c.bf16 %v5927, %v5926
        %v5956 = vpack.c.bf16 %v5929, %v5928
        %v5957 = vpack.c.bf16 %v5931, %v5930
        %v5958 = vperm.slane %v5949, 0
        %v5975 = vunpack.c.l.b16 %v5932
        %v5976 = vunpack.c.l.b16 %v5933
        %v5977 = vunpack.c.l.b16 %v5934
        %v5978 = vunpack.c.l.b16 %v5935
        %v5979 = vunpack.c.l.b16 %v5936
        %v5980 = vunpack.c.l.b16 %v5937
        %v5981 = vunpack.c.l.b16 %v5938
        %v5982 = vunpack.c.l.b16 %v5939
        %v5983 = vunpack.c.l.b16 %v5940
        %v5984 = vunpack.c.l.b16 %v5941
        %v5985 = vunpack.c.l.b16 %v5942
        %v5986 = vunpack.c.l.b16 %v5943
        %v5987 = vunpack.c.l.b16 %v5944
        %v5988 = vunpack.c.l.b16 %v5945
        %v5989 = vunpack.c.l.b16 %v5946
        %v5990 = vunpack.c.l.b16 %v5947
        %v5991 = vpack.c.b16 %v5976, %v5975
        %v5992 = vpack.c.b16 %v5978, %v5977
        %v5993 = vpack.c.b16 %v5980, %v5979
        %v5994 = vpack.c.b16 %v5982, %v5981
        %v5995 = vpack.c.b16 %v5984, %v5983
        %v5996 = vpack.c.b16 %v5986, %v5985
        %v5997 = vpack.c.b16 %v5988, %v5987
        %v5998 = vpack.c.b16 %v5990, %v5989
        %6007 = vmatpush.bf16.msra.mxu0 %v5998
        %6008 = vmatpush.bf16.msra.mxu0 %v5997
        %6009 = vmatpush.bf16.msra.mxu0 %v5996
        %6010 = vmatpush.bf16.msra.mxu0 %v5995
        %6011 = vmatpush.bf16.msra.mxu0 %v5994
        %6012 = vmatpush.bf16.msra.mxu0 %v5993
        %6013 = vmatpush.bf16.msra.mxu0 %v5992
        %6014 = vmatpush.bf16.msra.mxu0 %v5991
        %6015 = vmatmul.bf16.gmra.mxu0 %v5950
        %v6016 = vpop.f32.mrf.mxu0
        %v6017 = vadd.f32 %v5958, %v6016
        %v6018 = vpop.f32.mrf.mxu0
        %v6019 = vadd.f32 %v5958, %v6018
        %6020 = vmatmul.bf16.gmra.mxu0 %v5951
        %v6021 = vpop.f32.mrf.mxu0
        %v6022 = vadd.f32 %v5958, %v6021
        %v6023 = vpop.f32.mrf.mxu0
        %v6024 = vadd.f32 %v5958, %v6023
        %6025 = vmatmul.bf16.gmra.mxu0 %v5952
        %v6026 = vpop.f32.mrf.mxu0
        %v6027 = vadd.f32 %v5958, %v6026
        %v6028 = vpop.f32.mrf.mxu0
        %v6029 = vadd.f32 %v5958, %v6028
        %6030 = vmatmul.bf16.gmra.mxu0 %v5953
        %v6031 = vpop.f32.mrf.mxu0
        %v6032 = vadd.f32 %v5958, %v6031
        %v6033 = vpop.f32.mrf.mxu0
        %v6034 = vadd.f32 %v5958, %v6033
        %6035 = vmatmul.bf16.gmra.mxu0 %v5954
        %v6036 = vpop.f32.mrf.mxu0
        %v6037 = vadd.f32 %v5958, %v6036
        %v6038 = vpop.f32.mrf.mxu0
        %v6039 = vadd.f32 %v5958, %v6038
        %6040 = vmatmul.bf16.gmra.mxu0 %v5955
        %v6041 = vpop.f32.mrf.mxu0
        %v6042 = vadd.f32 %v5958, %v6041
        %v6043 = vpop.f32.mrf.mxu0
        %v6044 = vadd.f32 %v5958, %v6043
        %6045 = vmatmul.bf16.gmra.mxu0 %v5956
        %v6046 = vpop.f32.mrf.mxu0
        %v6047 = vadd.f32 %v5958, %v6046
        %v6048 = vpop.f32.mrf.mxu0
        %v6049 = vadd.f32 %v5958, %v6048
        %6050 = vmatmul.bf16.gmra.mxu0 %v5957
        %v6051 = vpop.f32.mrf.mxu0
        %v6052 = vadd.f32 %v5958, %v6051
        %v6053 = vpop.f32.mrf.mxu0
        %v6054 = vadd.f32 %v5958, %v6053
        %6055 = vdwg.mxu0
        %6056 = vst [vmem:[%s164] sm:$0xff] %v6017
        %6057 = vst [vmem:[%s164 + $0x8] sm:$0xff] %v6019
        %6058 = vst [vmem:[%s164 + $0x10] sm:$0xff] %v6022
        %6059 = vst [vmem:[%s164 + $0x18] sm:$0xff] %v6024
        %6060 = vst [vmem:[%s164 + $0x20] sm:$0xff] %v6027
        %6061 = vst [vmem:[%s164 + $0x28] sm:$0xff] %v6029
        %6062 = vst [vmem:[%s164 + $0x30] sm:$0xff] %v6032
        %6063 = vst [vmem:[%s164 + $0x38] sm:$0xff] %v6034
        %6064 = vst [vmem:[%s164 + $0x40] sm:$0xff] %v6037
        %6065 = vst [vmem:[%s164 + $0x48] sm:$0xff] %v6039
        %6066 = vst [vmem:[%s164 + $0x50] sm:$0xff] %v6042
        %6067 = vst [vmem:[%s164 + $0x58] sm:$0xff] %v6044
        %6068 = vst [vmem:[%s164 + $0x60] sm:$0xff] %v6047
        %6069 = vst [vmem:[%s164 + $0x68] sm:$0xff] %v6049
        %6070 = vst [vmem:[%s164 + $0x70] sm:$0xff] %v6052
        %6071 = vst [vmem:[%s164 + $0x78] sm:$0xff] %v6054
        %s6072 = sand.u32 %s93, 1
        %s6073 = scalar_lea.sflag [#allocation3], %s6072
        %s6074 = sand.u32 %s93, 1
        %s6075 = smul.addr %s6074, 128
        %s6076 = scalar_lea.vmem [#allocation2], %s6075
        // Predicated region
        $region33: #{tpu_custom_call.1} parent=31 // pred_check
          %p6077 = pneg %p103
        $region34: #{tpu_custom_call.1} parent=31 // pred_check_branch
          %6079 = sbr.rel (%p6077) target = $region36
        $region35: #{tpu_custom_call.1} parent=31 // pred_region
          %s6080 = smul.u32 16, %s17
          %6082 = vsyncadd %s6073, 0
          %s6083 = smul.addr %s6080, 8
          %s6084 = scalar_lea.hbm %s3, %s6083
          %s6085 = sshll.u32 %s6076, 4
          %s6086 = int_to_ptr.vmem [resolvable:$true] %s6085
          %s6087 = sshll.u32 %s6084, 4
          %s6088 = int_to_ptr.hbm [resolvable:$true] %s6087
          %6093 = dma.vmem_to_hbm [thread:$0]  %s6086, 2048, %s6088, %s6073, 128, 128, 8
        $region36: #{tpu_custom_call.1} parent=31 // pred_fallthru
          _
      $region32: #{tpu_custom_call.1} parent=5 // pred_fallthru
        _
      %p6094 = scmp.le.s32.totalorder 2, %s12
      // Predicated region
      $region37: #{tpu_custom_call.1} parent=5 // pred_check
        %p6095 = pneg %p6094
      $region38: #{tpu_custom_call.1} parent=5 // pred_check_branch
        %6097 = sbr.rel (%p6095) target = $region40
      $region39: #{tpu_custom_call.1} parent=5 // pred_region
        %s6098 = ssub.s32 %s12, 2
        // Predicated region
        $region41: #{tpu_custom_call.1} parent=39 // pred_check
          %p6099 = pneg %p109
        $region42: #{tpu_custom_call.1} parent=39 // pred_check_branch
          %6101 = sbr.rel (%p6099) target = $region44
        $region43: #{tpu_custom_call.1} parent=39 // pred_region
          %s6102 = sand.u32 %s94, 1
          %s6103 = scalar_lea.sflag [#allocation3], %s6102
          %s6104 = sand.u32 %s94, 1
          %s6105 = smul.addr %s6104, 128
          %s6106 = scalar_lea.vmem [#allocation2], %s6105
          %6108 = dma.done %s6103, 2048
        $region44: #{tpu_custom_call.1} parent=39 // pred_fallthru
          _
      $region40: #{tpu_custom_call.1} parent=5 // pred_fallthru
        _
    $region6: #{tpu_custom_call.1} parent=1 // loop_footer
      %s16 = sadd.s32 1, %s12
    $region7: #{tpu_custom_call.1} parent=1 // loop_footer_branch
      %11 = sbr.rel target = $region3
    $region8: #{tpu_custom_call.1} parent=1 // loop_exit
      _
    %6109 = vsyncpa [#allocation3], 1
    %s6110 = scalar_lea.sflag [#allocation3], 1
    %6111 = vsyncpa %s6110, 1

</llo_original>
